<compile_context>
chip_gen: v7x
topology: tpu7x:2x2x1
jax: 0.10.0
libtpu: 0.0.40
codegen_flags: <defaults>
</compile_context>

<pallas_src>
import functools
import math

import numpy as np
import jax
import jax.numpy as jnp
from jax.experimental import pallas as pl
from jax.experimental.pallas import tpu as pltpu


# ----------------------------------------------------------------------------
# fused decoder-stack kernel (all layers + vocab projection in one pallas_call)
# ----------------------------------------------------------------------------
def decoder_stack_kernel(num_heads, seq_len, compute_dtype,
                         x_ref, enc_ref, mask_ref,
                         wbig_ref, w2_ref, vec_ref, pw_ref, pb_ref,
                         out_ref, act_ref, ctx_ref):
    layer = pl.program_id(1)
    rows, E = x_ref.shape            # rows = Bt * S (batch tile, flattened)
    S = seq_len
    Bt = rows // S
    H = num_heads
    dh = E // H
    F = w2_ref.shape[1]
    scale = 1.0 / math.sqrt(dh)

    # First layer of this batch tile: load the (pre-flattened) decoder input
    # into the VMEM-resident activation scratch.
    @pl.when(layer == 0)
    def _():
        act_ref[...] = x_ref[...]

    x = act_ref[...]                 # (rows, E) f32, resident across layers
    addmask = mask_ref[...]          # (Bt, S, S) additive f32 mask (0 / -1e9)
    vec = vec_ref[0]                 # (12, Wv) f32: biases + LayerNorm gamma/beta

    # Column layout of the per-layer bf16 weight slab (E rows):
    #   [0,3E): Wq|Wk|Wv (self)   [3E,4E): Wq (cross)   [4E,6E): Wk|Wv (cross)
    #   [6E,7E): Wo (self)        [7E,8E): Wo (cross)   [8E,8E+F): W1 (FFN)
    def W(c0, c1):
        return wbig_ref[0, :, c0:c1]

    def vrow(r, c0, c1):
        return vec[r:r + 1, c0:c1]

    def mm(a, w):                    # f32 activation x compute_dtype weight
        return jnp.dot(a.astype(compute_dtype), w,
                       preferred_element_type=jnp.float32)

    def bmm(eq, a, b):               # batched act x act (single batch dim)
        return jnp.einsum(eq, a.astype(compute_dtype), b.astype(compute_dtype),
                          preferred_element_type=jnp.float32)

    def softmax_last(s):
        m = jnp.max(s, axis=-1, keepdims=True)
        p = jnp.exp(s - m)
        denom = jnp.sum(p, axis=-1, keepdims=True)
        return p * pl.reciprocal(denom, approx=True)   # EUP slot, not VPU divide

    def layernorm(v, gamma, beta, eps=1e-10):
        mean = jnp.mean(v, axis=-1, keepdims=True)
        var = jnp.mean(v * v, axis=-1, keepdims=True) - mean * mean
        return gamma * ((v - mean) * jax.lax.rsqrt(var + eps)) + beta

    def attend(q, k, v, wo, bo, mask_add):
        # Per-head attention (q pre-scaled).  Head contexts are written to
        # static lane offsets of ctx_ref; the head concat then costs nothing
        # and the output projection is a single K=E MXU contraction.
        for h in range(H):
            sl = slice(h * dh, (h + 1) * dh)
            qh = q[:, sl].reshape(Bt, S, dh)
            kh = k[:, sl].reshape(Bt, S, dh)
            vh = v[:, sl].reshape(Bt, S, dh)
            s = bmm('bqd,bkd->bqk', qh, kh)                       # (Bt, S, S)
            if mask_add is not None:
                s = s + mask_add
            p = softmax_last(s)
            ctx_ref[:, sl] = bmm('bqk,bkd->bqd', p, vh).reshape(rows, dh)
        return mm(ctx_ref[...], wo) + bo

    # ---- masked self-attention + residual + norm1 -------------------------
    qkv = mm(x, W(0, 3 * E)) + vrow(0, 0, 3 * E)
    a1 = attend(qkv[:, :E] * scale, qkv[:, E:2 * E], qkv[:, 2 * E:],
                W(6 * E, 7 * E), vrow(3, 0, E), addmask)
    h1 = layernorm(x + a1, vrow(4, 0, E), vrow(5, 0, E))

    # ---- cross-attention (keys/values from encoder) + residual + norm2 ----
    enc = enc_ref[...]
    q2 = (mm(h1, W(3 * E, 4 * E)) + vrow(1, 0, E)) * scale
    kv2 = mm(enc, W(4 * E, 6 * E)) + vrow(1, E, 3 * E)
    a2 = attend(q2, kv2[:, :E], kv2[:, E:],
                W(7 * E, 8 * E), vrow(6, 0, E), None)
    h2 = layernorm(h1 + a2, vrow(7, 0, E), vrow(8, 0, E))

    # ---- FFN (linear - relu - linear) + residual + norm3 ------------------
    hid = jnp.maximum(mm(h2, W(8 * E, 8 * E + F)) + vrow(2, 0, F), 0.0)
    new_x = layernorm(h2 + mm(hid, w2_ref[0]) + vrow(9, 0, E),
                      vrow(10, 0, E), vrow(11, 0, E))
    act_ref[...] = new_x

    # ---- vocab projection + single HBM writeback on the last layer --------
    @pl.when(layer == pl.num_programs(1) - 1)
    def _():
        out_ref[...] = (mm(new_x, pw_ref[...]) + pb_ref[...]).astype(out_ref.dtype)


# ----------------------------------------------------------------------------
# host-side parameter packing (bf16 weight slabs + small f32 bias/LN slab)
# ----------------------------------------------------------------------------
def pack_decoder_params(layer_params, compute_dtype):
    E = layer_params[0]["wq1"].shape[0]
    F = layer_params[0]["w1"].shape[1]
    Wv = max(3 * E, F)

    def big(p):
        return jnp.concatenate(
            [p["wq1"], p["wk1"], p["wv1"],           # self-attn fused QKV
             p["wq2"], p["wk2"], p["wv2"],           # cross Q, fused KV
             p["wo1"], p["wo2"], p["w1"]], axis=1)   # out-projs, FFN-1

    def pad_row(r):
        return jnp.pad(r, ((0, 0), (0, Wv - r.shape[1])))

    def vec_slab(p):
        rows = [jnp.concatenate([p["bq1"], p["bk1"], p["bv1"]], axis=1),  # 0
                jnp.concatenate([p["bq2"], p["bk2"], p["bv2"]], axis=1),  # 1
                p["b1"],                                                  # 2
                p["bo1"], p["g1"], p["be1"],                              # 3-5
                p["bo2"], p["g2"], p["be2"],                              # 6-8
                p["b2"], p["g3"], p["be3"]]                               # 9-11
        return jnp.concatenate([pad_row(r) for r in rows], axis=0)        # (12, Wv)

    return dict(
        wbig=jnp.stack([big(p) for p in layer_params]).astype(compute_dtype),
        w2=jnp.stack([p["w2"] for p in layer_params]).astype(compute_dtype),
        vec=jnp.stack([vec_slab(p) for p in layer_params]).astype(jnp.float32),
    )


# ----------------------------------------------------------------------------
# wrapper
# ----------------------------------------------------------------------------
def decoder_pallas(tgt_seq, enc_out, mask_bool, layer_params, proj_w, proj_b,
                   num_heads, compute_dtype=jnp.bfloat16, batch_tiles=1):
    B, S, E = tgt_seq.shape
    L = len(layer_params)
    V = proj_w.shape[1]
    assert E % num_heads == 0 and B % batch_tiles == 0
    Bt = B // batch_tiles

    packed = pack_decoder_params(layer_params, compute_dtype)
    x_flat = tgt_seq.reshape(B * S, E)
    enc_flat = enc_out.reshape(B * S, E)
    addmask = jnp.where(mask_bool, -1e9, 0.0).astype(jnp.float32)
    pw = proj_w.astype(compute_dtype)
    pb = proj_b.astype(jnp.float32)

    # Explicit VMEM budget: per-layer slabs are double-buffered by the
    # pipeline; constants/output/scratch are resident once.
    itm = lambda a: int(a.size) * a.dtype.itemsize
    per_layer = (itm(packed["wbig"]) + itm(packed["w2"]) + itm(packed["vec"])) // L
    const_in = (itm(x_flat) + itm(enc_flat) + itm(addmask)) // batch_tiles \
        + itm(pw) + itm(pb)
    out_block = Bt * S * V * 4
    scratch = 2 * Bt * S * E * 4
    vmem_limit = int(min(2 * (per_layer + out_block) + const_in + scratch
                         + (8 << 20), 64 << 20))

    grid_spec = pltpu.PrefetchScalarGridSpec(
        num_scalar_prefetch=0,
        grid=(batch_tiles, L),
        in_specs=[
            pl.BlockSpec((Bt * S, E), lambda b, l: (b, 0)),          # decoder in
            pl.BlockSpec((Bt * S, E), lambda b, l: (b, 0)),          # encoder out
            pl.BlockSpec((Bt, S, S), lambda b, l: (b, 0, 0)),        # additive mask
            pl.BlockSpec((1,) + packed["wbig"].shape[1:], lambda b, l: (l, 0, 0)),
            pl.BlockSpec((1,) + packed["w2"].shape[1:], lambda b, l: (l, 0, 0)),
            pl.BlockSpec((1,) + packed["vec"].shape[1:], lambda b, l: (l, 0, 0)),
            pl.BlockSpec((E, V), lambda b, l: (0, 0)),               # vocab W
            pl.BlockSpec((1, V), lambda b, l: (0, 0)),               # vocab b
        ],
        out_specs=pl.BlockSpec((Bt * S, V), lambda b, l: (b, 0)),
        scratch_shapes=[pltpu.VMEM((Bt * S, E), jnp.float32),        # resident acts
                        pltpu.VMEM((Bt * S, E), jnp.float32)],       # head-ctx slab
    )

    out_flat = pl.pallas_call(
        functools.partial(decoder_stack_kernel, num_heads, S, compute_dtype),
        grid_spec=grid_spec,
        out_shape=jax.ShapeDtypeStruct((B * S, V), jnp.float32),
        compiler_params=pltpu.CompilerParams(
            dimension_semantics=("parallel", "arbitrary"),
            vmem_limit_bytes=vmem_limit),
    )(x_flat, enc_flat, addmask,
      packed["wbig"], packed["w2"], packed["vec"], pw, pb)
    return out_flat.reshape(B, S, V)


# ----------------------------------------------------------------------------
# pure-JAX reference (mirrors the PyTorch forward exactly) for verification
# ----------------------------------------------------------------------------
def _ref_mha(q_in, kv_in, wq, bq, wk, bk, wv, bv, wo, bo, mask, num_heads):
    q = q_in @ wq + bq
    k = kv_in @ wk + bk
    v = kv_in @ wv + bv
    dh = q.shape[-1] // num_heads
    outs = []
    for h in range(num_heads):
        qh = q[..., h * dh:(h + 1) * dh]
        kh = k[..., h * dh:(h + 1) * dh]
        vh = v[..., h * dh:(h + 1) * dh]
        s = jnp.einsum("bqd,bkd->bqk", qh, kh) / math.sqrt(dh)
        if mask is not None:
            s = jnp.where(mask, -1e9, s)
        p = jax.nn.softmax(s, axis=-1)
        outs.append(jnp.einsum("bqk,bkd->bqd", p, vh))
    return jnp.concatenate(outs, axis=-1) @ wo + bo


def _ref_ln(x, g, b, eps=1e-10):
    mean = jnp.mean(x, axis=-1, keepdims=True)
    var = jnp.mean((x - mean) ** 2, axis=-1, keepdims=True)
    return g * ((x - mean) / jnp.sqrt(var + eps)) + b


def decoder_ref(tgt_seq, enc_out, mask_bool, layer_params, proj_w, proj_b,
                num_heads):
    x = tgt_seq
    for p in layer_params:
        h1 = _ref_ln(x + _ref_mha(x, x, p["wq1"], p["bq1"], p["wk1"], p["bk1"],
                                  p["wv1"], p["bv1"], p["wo1"], p["bo1"],
                                  mask_bool, num_heads), p["g1"], p["be1"])
        h2 = _ref_ln(h1 + _ref_mha(h1, enc_out, p["wq2"], p["bq2"], p["wk2"],
                                   p["bk2"], p["wv2"], p["bv2"], p["wo2"],
                                   p["bo2"], None, num_heads),
                     p["g2"], p["be2"])
        hid = jnp.maximum(h2 @ p["w1"] + p["b1"], 0.0)
        x = _ref_ln(h2 + hid @ p["w2"] + p["b2"], p["g3"], p["be3"])
    return x @ proj_w + proj_b


# ----------------------------------------------------------------------------
# deterministic parameter construction
# ----------------------------------------------------------------------------
def make_params(key, num_layers, num_heads, emb_dim, ffn_dim, vocab_len):
    layer_params = []
    for _ in range(num_layers):
        p = {}
        c = math.sqrt(6.0 / (2 * emb_dim))
        for name in ["wq1", "wk1", "wv1", "wo1", "wq2", "wk2", "wv2", "wo2"]:
            key, sub = jax.random.split(key)
            p[name] = jax.random.uniform(sub, (emb_dim, emb_dim), jnp.float32,
                                         -c, c)
        for name in ["bq1", "bk1", "bv1", "bo1", "bq2", "bk2", "bv2", "bo2"]:
            key, sub = jax.random.split(key)
            p[name] = jax.random.uniform(sub, (1, emb_dim), jnp.float32,
                                         -0.1, 0.1)
        c = math.sqrt(6.0 / (emb_dim + ffn_dim))
        key, sub = jax.random.split(key)
        p["w1"] = jax.random.uniform(sub, (emb_dim, ffn_dim), jnp.float32, -c, c)
        key, sub = jax.random.split(key)
        p["b1"] = jax.random.uniform(sub, (1, ffn_dim), jnp.float32, -0.1, 0.1)
        key, sub = jax.random.split(key)
        p["w2"] = jax.random.uniform(sub, (ffn_dim, emb_dim), jnp.float32, -c, c)
        key, sub = jax.random.split(key)
        p["b2"] = jax.random.uniform(sub, (1, emb_dim), jnp.float32, -0.1, 0.1)
        for g, b in [("g1", "be1"), ("g2", "be2"), ("g3", "be3")]:
            key, sub = jax.random.split(key)
            p[g] = jax.random.uniform(sub, (1, emb_dim), jnp.float32, 0.5, 1.5)
            key, sub = jax.random.split(key)
            p[b] = jax.random.uniform(sub, (1, emb_dim), jnp.float32, -0.1, 0.1)
        layer_params.append(p)
    a = math.sqrt(6.0 / (emb_dim + vocab_len))
    key, sub = jax.random.split(key)
    proj_w = jax.random.uniform(sub, (emb_dim, vocab_len), jnp.float32, -a, a)
    key, sub = jax.random.split(key)
    proj_b = jax.random.uniform(sub, (1, vocab_len), jnp.float32, -0.1, 0.1)
    return layer_params, proj_w, proj_b


# ----------------------------------------------------------------------------
if __name__ == "__main__":
    # Small but lane-dense shapes (last dims are multiples of 128).
    B, S, E = 2, 16, 128
    NUM_HEADS, FFN_DIM, NUM_LAYERS, VOCAB = 4, 256, 2, 256

    key = jax.random.PRNGKey(0)
    key, kx, ke = jax.random.split(key, 3)
    tgt_seq = jax.random.normal(kx, (B, S, E), jnp.float32)
    enc_out = jax.random.normal(ke, (B, S, E), jnp.float32)
    # causal mask: True (masked) where key position > query position
    causal = jnp.triu(jnp.ones((S, S), dtype=bool), k=1)
    mask = jnp.broadcast_to(causal, (B, S, S))

    layer_params, proj_w, proj_b = make_params(
        key, NUM_LAYERS, NUM_HEADS, E, FFN_DIM, VOCAB)

    out = decoder_pallas(tgt_seq, enc_out, mask, layer_params, proj_w, proj_b,
                         NUM_HEADS, compute_dtype=jnp.bfloat16, batch_tiles=1)
    out = jax.block_until_ready(out)

    ref = decoder_ref(tgt_seq, enc_out, mask, layer_params, proj_w, proj_b,
                      NUM_HEADS)
    assert out.shape == (B, S, VOCAB)
    # bf16 MXU operands + approx reciprocal -> loose (but bug-catching) tol.
    assert np.allclose(np.asarray(out), np.asarray(ref), rtol=5e-2, atol=1e-1)

    print("KERNEL_OK")
</pallas_src>

<mosaic_0001>
module attributes {stable_mosaic.version = 11 : i64} {
  func.func @decoder_stack_kernel(%arg0: i32, %arg1: i32, %arg2: memref<32x128xf32, #tpu.memory_space<vmem>>, %arg3: memref<32x128xf32, #tpu.memory_space<vmem>>, %arg4: memref<2x16x16xf32, #tpu.memory_space<vmem>>, %arg5: memref<1x128x1280xbf16, #tpu.memory_space<vmem>>, %arg6: memref<1x256x128xbf16, #tpu.memory_space<vmem>>, %arg7: memref<1x12x384xf32, #tpu.memory_space<vmem>>, %arg8: memref<128x256xbf16, #tpu.memory_space<vmem>>, %arg9: memref<1x256xf32, #tpu.memory_space<vmem>>, %arg10: memref<32x256xf32, #tpu.memory_space<vmem>>, %arg11: memref<32x128xf32, #tpu.memory_space<vmem>>, %arg12: memref<32x128xf32, #tpu.memory_space<vmem>>) attributes {dimension_semantics = [#tpu.dimension_semantics<parallel>, #tpu.dimension_semantics<arbitrary>], iteration_bounds = array<i64: 1, 2>, scalar_prefetch = 0 : i64, scratch_operands = 2 : i64, tpu.core_type = #tpu.core_type<tc>, window_params = [{transform_indices = @transform_0, window_bounds = array<i64: 32, 128>}, {transform_indices = @transform_1, window_bounds = array<i64: 32, 128>}, {transform_indices = @transform_2, window_bounds = array<i64: 2, 16, 16>}, {transform_indices = @transform_3, window_bounds = array<i64: 1, 128, 1280>}, {transform_indices = @transform_4, window_bounds = array<i64: 1, 256, 128>}, {transform_indices = @transform_5, window_bounds = array<i64: 1, 12, 384>}, {pipeline_mode = #tpu.pipeline_mode<synchronous>, transform_indices = @transform_6, window_bounds = array<i64: 128, 256>}, {pipeline_mode = #tpu.pipeline_mode<synchronous>, transform_indices = @transform_7, window_bounds = array<i64: 1, 256>}, {transform_indices = @transform_8, window_bounds = array<i64: 32, 256>}]} {
    %c0_i32 = arith.constant 0 : i32
    %0 = arith.cmpi eq, %arg1, %c0_i32 : i32
    %1 = arith.extui %0 : i1 to i32
    %c0_i32_0 = arith.constant 0 : i32
    %2 = arith.cmpi ne, %1, %c0_i32_0 : i32
    scf.if %2 {
      %c0_102 = arith.constant 0 : index
      %c0_103 = arith.constant 0 : index
      %345 = vector.load %arg2[%c0_102, %c0_103] : memref<32x128xf32, #tpu.memory_space<vmem>>, vector<32x128xf32>
      %c0_104 = arith.constant 0 : index
      %c0_105 = arith.constant 0 : index
      %346 = vector.load %arg11[%c0_104, %c0_105] : memref<32x128xf32, #tpu.memory_space<vmem>>, vector<32x128xf32>
      tpu.vector_store %arg11[%c0_104, %c0_105], %345 {strides = array<i32>} : memref<32x128xf32, #tpu.memory_space<vmem>>, vector<32x128xf32>,
    } else {
    }
    %c0 = arith.constant 0 : index
    %c0_1 = arith.constant 0 : index
    %3 = vector.load %arg11[%c0, %c0_1] : memref<32x128xf32, #tpu.memory_space<vmem>>, vector<32x128xf32>
    %c0_2 = arith.constant 0 : index
    %c0_3 = arith.constant 0 : index
    %c0_4 = arith.constant 0 : index
    %4 = vector.load %arg4[%c0_2, %c0_3, %c0_4] : memref<2x16x16xf32, #tpu.memory_space<vmem>>, vector<2x16x16xf32>
    %c0_5 = arith.constant 0 : index
    %c0_6 = arith.constant 0 : index
    %c0_7 = arith.constant 0 : index
    %5 = vector.load %arg7[%c0_5, %c0_6, %c0_7] : memref<1x12x384xf32, #tpu.memory_space<vmem>>, vector<1x12x384xf32>
    %6 = vector.shape_cast %5 : vector<1x12x384xf32> to vector<12x384xf32>
    %c0_8 = arith.constant 0 : index
    %c0_9 = arith.constant 0 : index
    %c0_10 = arith.constant 0 : index
    %7 = vector.load %arg5[%c0_8, %c0_9, %c0_10] : memref<1x128x1280xbf16, #tpu.memory_space<vmem>>, vector<1x128x384xbf16>
    %8 = vector.shape_cast %7 : vector<1x128x384xbf16> to vector<128x384xbf16>
    %9 = arith.truncf %3 : vector<32x128xf32> to vector<32x128xbf16>
    %cst = arith.constant dense<0.000000e+00> : vector<32x384xf32>
    %10 = tpu.matmul %9, %8, %cst {dimension_numbers = #tpu.dot_dimension_numbers<[1], [0], [0], [1], [0, 0, 1, 1], [], []>} : vector<32x128xbf16>, vector<128x384xbf16>, vector<32x384xf32> -> vector<32x384xf32>
    %11 = vector.extract_strided_slice %6 {offsets = [0, 0], sizes = [1, 384], strides = [1, 1]} : vector<12x384xf32> to vector<1x384xf32>
    %12 = vector.broadcast %11 : vector<1x384xf32> to vector<32x384xf32>
    %13 = arith.addf %10, %12 : vector<32x384xf32>
    %14 = vector.extract_strided_slice %13 {offsets = [0, 0], sizes = [32, 128], strides = [1, 1]} : vector<32x384xf32> to vector<32x128xf32>
    %cst_11 = arith.constant 0.176776692 : f32
    %15 = vector.broadcast %cst_11 : f32 to vector<32x128xf32>
    %16 = arith.mulf %14, %15 : vector<32x128xf32>
    %17 = vector.extract_strided_slice %13 {offsets = [0, 128], sizes = [32, 128], strides = [1, 1]} : vector<32x384xf32> to vector<32x128xf32>
    %18 = vector.extract_strided_slice %13 {offsets = [0, 256], sizes = [32, 128], strides = [1, 1]} : vector<32x384xf32> to vector<32x128xf32>
    %c0_12 = arith.constant 0 : index
    %c0_13 = arith.constant 0 : index
    %c768 = arith.constant 768 : index
    %19 = vector.load %arg5[%c0_12, %c0_13, %c768] : memref<1x128x1280xbf16, #tpu.memory_space<vmem>>, vector<1x128x128xbf16>
    %20 = vector.shape_cast %19 : vector<1x128x128xbf16> to vector<128x128xbf16>
    %21 = vector.extract_strided_slice %6 {offsets = [3, 0], sizes = [1, 128], strides = [1, 1]} : vector<12x384xf32> to vector<1x128xf32>
    %22 = vector.extract_strided_slice %16 {offsets = [0, 0], sizes = [32, 32], strides = [1, 1]} : vector<32x128xf32> to vector<32x32xf32>
    %23 = vector.shape_cast %22 : vector<32x32xf32> to vector<2x16x32xf32>
    %24 = vector.extract_strided_slice %17 {offsets = [0, 0], sizes = [32, 32], strides = [1, 1]} : vector<32x128xf32> to vector<32x32xf32>
    %25 = vector.shape_cast %24 : vector<32x32xf32> to vector<2x16x32xf32>
    %26 = vector.extract_strided_slice %18 {offsets = [0, 0], sizes = [32, 32], strides = [1, 1]} : vector<32x128xf32> to vector<32x32xf32>
    %27 = vector.shape_cast %26 : vector<32x32xf32> to vector<2x16x32xf32>
    %28 = arith.truncf %23 : vector<2x16x32xf32> to vector<2x16x32xbf16>
    %29 = arith.truncf %25 : vector<2x16x32xf32> to vector<2x16x32xbf16>
    "tpu.trace_start"() <{level = 10 : i32, message = "bqd,bkd->bqk"}> : () -> ()
    %cst_14 = arith.constant dense<0.000000e+00> : vector<2x16x16xf32>
    %30 = tpu.matmul %28, %29, %cst_14 {dimension_numbers = #tpu.dot_dimension_numbers<[2], [2], [1], [1], [0, 0, 0, 1, 1, 1], [0], [0]>} : vector<2x16x32xbf16>, vector<2x16x32xbf16>, vector<2x16x16xf32> -> vector<2x16x16xf32>
    "tpu.trace_stop"() : () -> ()
    %31 = arith.addf %30, %4 : vector<2x16x16xf32>
    %cst_15 = arith.constant dense<0xFF800000> : vector<2x16xf32>
    %32 = vector.multi_reduction <maximumf>, %31, %cst_15 [2] : vector<2x16x16xf32> to vector<2x16xf32>
    %33 = vector.shape_cast %32 : vector<2x16xf32> to vector<2x16x1xf32>
    %34 = vector.broadcast %33 : vector<2x16x1xf32> to vector<2x16x16xf32>
    %35 = arith.subf %31, %34 : vector<2x16x16xf32>
    %36 = math.exp %35 : vector<2x16x16xf32>
    %cst_16 = arith.constant dense<0.000000e+00> : vector<2x16xf32>
    %37 = vector.multi_reduction <add>, %36, %cst_16 [2] : vector<2x16x16xf32> to vector<2x16xf32>
    %38 = vector.shape_cast %37 : vector<2x16xf32> to vector<2x16x1xf32>
    %39 = tpu.reciprocal %38 {approx = true} : vector<2x16x1xf32> -> vector<2x16x1xf32>
    %40 = vector.broadcast %39 : vector<2x16x1xf32> to vector<2x16x16xf32>
    %41 = arith.mulf %36, %40 : vector<2x16x16xf32>
    %42 = arith.truncf %41 : vector<2x16x16xf32> to vector<2x16x16xbf16>
    %43 = arith.truncf %27 : vector<2x16x32xf32> to vector<2x16x32xbf16>
    "tpu.trace_start"() <{level = 10 : i32, message = "bqk,bkd->bqd"}> : () -> ()
    %cst_17 = arith.constant dense<0.000000e+00> : vector<2x16x32xf32>
    %44 = tpu.matmul %42, %43, %cst_17 {dimension_numbers = #tpu.dot_dimension_numbers<[2], [1], [1], [2], [0, 0, 0, 1, 1, 2], [0], [0]>} : vector<2x16x16xbf16>, vector<2x16x32xbf16>, vector<2x16x32xf32> -> vector<2x16x32xf32>
    "tpu.trace_stop"() : () -> ()
    %45 = vector.shape_cast %44 : vector<2x16x32xf32> to vector<32x32xf32>
    %c0_18 = arith.constant 0 : index
    %c0_19 = arith.constant 0 : index
    %46 = vector.load %arg12[%c0_18, %c0_19] : memref<32x128xf32, #tpu.memory_space<vmem>>, vector<32x32xf32>
    tpu.vector_store %arg12[%c0_18, %c0_19], %45 {strides = array<i32>} : memref<32x128xf32, #tpu.memory_space<vmem>>, vector<32x32xf32>,
    %47 = vector.extract_strided_slice %16 {offsets = [0, 32], sizes = [32, 32], strides = [1, 1]} : vector<32x128xf32> to vector<32x32xf32>
    %48 = vector.shape_cast %47 : vector<32x32xf32> to vector<2x16x32xf32>
    %49 = vector.extract_strided_slice %17 {offsets = [0, 32], sizes = [32, 32], strides = [1, 1]} : vector<32x128xf32> to vector<32x32xf32>
    %50 = vector.shape_cast %49 : vector<32x32xf32> to vector<2x16x32xf32>
    %51 = vector.extract_strided_slice %18 {offsets = [0, 32], sizes = [32, 32], strides = [1, 1]} : vector<32x128xf32> to vector<32x32xf32>
    %52 = vector.shape_cast %51 : vector<32x32xf32> to vector<2x16x32xf32>
    %53 = arith.truncf %48 : vector<2x16x32xf32> to vector<2x16x32xbf16>
    %54 = arith.truncf %50 : vector<2x16x32xf32> to vector<2x16x32xbf16>
    "tpu.trace_start"() <{level = 10 : i32, message = "bqd,bkd->bqk"}> : () -> ()
    %cst_20 = arith.constant dense<0.000000e+00> : vector<2x16x16xf32>
    %55 = tpu.matmul %53, %54, %cst_20 {dimension_numbers = #tpu.dot_dimension_numbers<[2], [2], [1], [1], [0, 0, 0, 1, 1, 1], [0], [0]>} : vector<2x16x32xbf16>, vector<2x16x32xbf16>, vector<2x16x16xf32> -> vector<2x16x16xf32>
    "tpu.trace_stop"() : () -> ()
    %56 = arith.addf %55, %4 : vector<2x16x16xf32>
    %cst_21 = arith.constant dense<0xFF800000> : vector<2x16xf32>
    %57 = vector.multi_reduction <maximumf>, %56, %cst_21 [2] : vector<2x16x16xf32> to vector<2x16xf32>
    %58 = vector.shape_cast %57 : vector<2x16xf32> to vector<2x16x1xf32>
    %59 = vector.broadcast %58 : vector<2x16x1xf32> to vector<2x16x16xf32>
    %60 = arith.subf %56, %59 : vector<2x16x16xf32>
    %61 = math.exp %60 : vector<2x16x16xf32>
    %cst_22 = arith.constant dense<0.000000e+00> : vector<2x16xf32>
    %62 = vector.multi_reduction <add>, %61, %cst_22 [2] : vector<2x16x16xf32> to vector<2x16xf32>
    %63 = vector.shape_cast %62 : vector<2x16xf32> to vector<2x16x1xf32>
    %64 = tpu.reciprocal %63 {approx = true} : vector<2x16x1xf32> -> vector<2x16x1xf32>
    %65 = vector.broadcast %64 : vector<2x16x1xf32> to vector<2x16x16xf32>
    %66 = arith.mulf %61, %65 : vector<2x16x16xf32>
    %67 = arith.truncf %66 : vector<2x16x16xf32> to vector<2x16x16xbf16>
    %68 = arith.truncf %52 : vector<2x16x32xf32> to vector<2x16x32xbf16>
    "tpu.trace_start"() <{level = 10 : i32, message = "bqk,bkd->bqd"}> : () -> ()
    %cst_23 = arith.constant dense<0.000000e+00> : vector<2x16x32xf32>
    %69 = tpu.matmul %67, %68, %cst_23 {dimension_numbers = #tpu.dot_dimension_numbers<[2], [1], [1], [2], [0, 0, 0, 1, 1, 2], [0], [0]>} : vector<2x16x16xbf16>, vector<2x16x32xbf16>, vector<2x16x32xf32> -> vector<2x16x32xf32>
    "tpu.trace_stop"() : () -> ()
    %70 = vector.shape_cast %69 : vector<2x16x32xf32> to vector<32x32xf32>
    %c0_24 = arith.constant 0 : index
    %c32 = arith.constant 32 : index
    %71 = vector.load %arg12[%c0_24, %c32] : memref<32x128xf32, #tpu.memory_space<vmem>>, vector<32x32xf32>
    tpu.vector_store %arg12[%c0_24, %c32], %70 {strides = array<i32>} : memref<32x128xf32, #tpu.memory_space<vmem>>, vector<32x32xf32>,
    %72 = vector.extract_strided_slice %16 {offsets = [0, 64], sizes = [32, 32], strides = [1, 1]} : vector<32x128xf32> to vector<32x32xf32>
    %73 = vector.shape_cast %72 : vector<32x32xf32> to vector<2x16x32xf32>
    %74 = vector.extract_strided_slice %17 {offsets = [0, 64], sizes = [32, 32], strides = [1, 1]} : vector<32x128xf32> to vector<32x32xf32>
    %75 = vector.shape_cast %74 : vector<32x32xf32> to vector<2x16x32xf32>
    %76 = vector.extract_strided_slice %18 {offsets = [0, 64], sizes = [32, 32], strides = [1, 1]} : vector<32x128xf32> to vector<32x32xf32>
    %77 = vector.shape_cast %76 : vector<32x32xf32> to vector<2x16x32xf32>
    %78 = arith.truncf %73 : vector<2x16x32xf32> to vector<2x16x32xbf16>
    %79 = arith.truncf %75 : vector<2x16x32xf32> to vector<2x16x32xbf16>
    "tpu.trace_start"() <{level = 10 : i32, message = "bqd,bkd->bqk"}> : () -> ()
    %cst_25 = arith.constant dense<0.000000e+00> : vector<2x16x16xf32>
    %80 = tpu.matmul %78, %79, %cst_25 {dimension_numbers = #tpu.dot_dimension_numbers<[2], [2], [1], [1], [0, 0, 0, 1, 1, 1], [0], [0]>} : vector<2x16x32xbf16>, vector<2x16x32xbf16>, vector<2x16x16xf32> -> vector<2x16x16xf32>
    "tpu.trace_stop"() : () -> ()
    %81 = arith.addf %80, %4 : vector<2x16x16xf32>
    %cst_26 = arith.constant dense<0xFF800000> : vector<2x16xf32>
    %82 = vector.multi_reduction <maximumf>, %81, %cst_26 [2] : vector<2x16x16xf32> to vector<2x16xf32>
    %83 = vector.shape_cast %82 : vector<2x16xf32> to vector<2x16x1xf32>
    %84 = vector.broadcast %83 : vector<2x16x1xf32> to vector<2x16x16xf32>
    %85 = arith.subf %81, %84 : vector<2x16x16xf32>
    %86 = math.exp %85 : vector<2x16x16xf32>
    %cst_27 = arith.constant dense<0.000000e+00> : vector<2x16xf32>
    %87 = vector.multi_reduction <add>, %86, %cst_27 [2] : vector<2x16x16xf32> to vector<2x16xf32>
    %88 = vector.shape_cast %87 : vector<2x16xf32> to vector<2x16x1xf32>
    %89 = tpu.reciprocal %88 {approx = true} : vector<2x16x1xf32> -> vector<2x16x1xf32>
    %90 = vector.broadcast %89 : vector<2x16x1xf32> to vector<2x16x16xf32>
    %91 = arith.mulf %86, %90 : vector<2x16x16xf32>
    %92 = arith.truncf %91 : vector<2x16x16xf32> to vector<2x16x16xbf16>
    %93 = arith.truncf %77 : vector<2x16x32xf32> to vector<2x16x32xbf16>
    "tpu.trace_start"() <{level = 10 : i32, message = "bqk,bkd->bqd"}> : () -> ()
    %cst_28 = arith.constant dense<0.000000e+00> : vector<2x16x32xf32>
    %94 = tpu.matmul %92, %93, %cst_28 {dimension_numbers = #tpu.dot_dimension_numbers<[2], [1], [1], [2], [0, 0, 0, 1, 1, 2], [0], [0]>} : vector<2x16x16xbf16>, vector<2x16x32xbf16>, vector<2x16x32xf32> -> vector<2x16x32xf32>
    "tpu.trace_stop"() : () -> ()
    %95 = vector.shape_cast %94 : vector<2x16x32xf32> to vector<32x32xf32>
    %c0_29 = arith.constant 0 : index
    %c64 = arith.constant 64 : index
    %96 = vector.load %arg12[%c0_29, %c64] : memref<32x128xf32, #tpu.memory_space<vmem>>, vector<32x32xf32>
    tpu.vector_store %arg12[%c0_29, %c64], %95 {strides = array<i32>} : memref<32x128xf32, #tpu.memory_space<vmem>>, vector<32x32xf32>,
    %97 = vector.extract_strided_slice %16 {offsets = [0, 96], sizes = [32, 32], strides = [1, 1]} : vector<32x128xf32> to vector<32x32xf32>
    %98 = vector.shape_cast %97 : vector<32x32xf32> to vector<2x16x32xf32>
    %99 = vector.extract_strided_slice %17 {offsets = [0, 96], sizes = [32, 32], strides = [1, 1]} : vector<32x128xf32> to vector<32x32xf32>
    %100 = vector.shape_cast %99 : vector<32x32xf32> to vector<2x16x32xf32>
    %101 = vector.extract_strided_slice %18 {offsets = [0, 96], sizes = [32, 32], strides = [1, 1]} : vector<32x128xf32> to vector<32x32xf32>
    %102 = vector.shape_cast %101 : vector<32x32xf32> to vector<2x16x32xf32>
    %103 = arith.truncf %98 : vector<2x16x32xf32> to vector<2x16x32xbf16>
    %104 = arith.truncf %100 : vector<2x16x32xf32> to vector<2x16x32xbf16>
    "tpu.trace_start"() <{level = 10 : i32, message = "bqd,bkd->bqk"}> : () -> ()
    %cst_30 = arith.constant dense<0.000000e+00> : vector<2x16x16xf32>
    %105 = tpu.matmul %103, %104, %cst_30 {dimension_numbers = #tpu.dot_dimension_numbers<[2], [2], [1], [1], [0, 0, 0, 1, 1, 1], [0], [0]>} : vector<2x16x32xbf16>, vector<2x16x32xbf16>, vector<2x16x16xf32> -> vector<2x16x16xf32>
    "tpu.trace_stop"() : () -> ()
    %106 = arith.addf %105, %4 : vector<2x16x16xf32>
    %cst_31 = arith.constant dense<0xFF800000> : vector<2x16xf32>
    %107 = vector.multi_reduction <maximumf>, %106, %cst_31 [2] : vector<2x16x16xf32> to vector<2x16xf32>
    %108 = vector.shape_cast %107 : vector<2x16xf32> to vector<2x16x1xf32>
    %109 = vector.broadcast %108 : vector<2x16x1xf32> to vector<2x16x16xf32>
    %110 = arith.subf %106, %109 : vector<2x16x16xf32>
    %111 = math.exp %110 : vector<2x16x16xf32>
    %cst_32 = arith.constant dense<0.000000e+00> : vector<2x16xf32>
    %112 = vector.multi_reduction <add>, %111, %cst_32 [2] : vector<2x16x16xf32> to vector<2x16xf32>
    %113 = vector.shape_cast %112 : vector<2x16xf32> to vector<2x16x1xf32>
    %114 = tpu.reciprocal %113 {approx = true} : vector<2x16x1xf32> -> vector<2x16x1xf32>
    %115 = vector.broadcast %114 : vector<2x16x1xf32> to vector<2x16x16xf32>
    %116 = arith.mulf %111, %115 : vector<2x16x16xf32>
    %117 = arith.truncf %116 : vector<2x16x16xf32> to vector<2x16x16xbf16>
    %118 = arith.truncf %102 : vector<2x16x32xf32> to vector<2x16x32xbf16>
    "tpu.trace_start"() <{level = 10 : i32, message = "bqk,bkd->bqd"}> : () -> ()
    %cst_33 = arith.constant dense<0.000000e+00> : vector<2x16x32xf32>
    %119 = tpu.matmul %117, %118, %cst_33 {dimension_numbers = #tpu.dot_dimension_numbers<[2], [1], [1], [2], [0, 0, 0, 1, 1, 2], [0], [0]>} : vector<2x16x16xbf16>, vector<2x16x32xbf16>, vector<2x16x32xf32> -> vector<2x16x32xf32>
    "tpu.trace_stop"() : () -> ()
    %120 = vector.shape_cast %119 : vector<2x16x32xf32> to vector<32x32xf32>
    %c0_34 = arith.constant 0 : index
    %c96 = arith.constant 96 : index
    %121 = vector.load %arg12[%c0_34, %c96] : memref<32x128xf32, #tpu.memory_space<vmem>>, vector<32x32xf32>
    tpu.vector_store %arg12[%c0_34, %c96], %120 {strides = array<i32>} : memref<32x128xf32, #tpu.memory_space<vmem>>, vector<32x32xf32>,
    %c0_35 = arith.constant 0 : index
    %c0_36 = arith.constant 0 : index
    %122 = vector.load %arg12[%c0_35, %c0_36] : memref<32x128xf32, #tpu.memory_space<vmem>>, vector<32x128xf32>
    %123 = arith.truncf %122 : vector<32x128xf32> to vector<32x128xbf16>
    %cst_37 = arith.constant dense<0.000000e+00> : vector<32x128xf32>
    %124 = tpu.matmul %123, %20, %cst_37 {dimension_numbers = #tpu.dot_dimension_numbers<[1], [0], [0], [1], [0, 0, 1, 1], [], []>} : vector<32x128xbf16>, vector<128x128xbf16>, vector<32x128xf32> -> vector<32x128xf32>
    %125 = vector.broadcast %21 : vector<1x128xf32> to vector<32x128xf32>
    %126 = arith.addf %124, %125 : vector<32x128xf32>
    %127 = arith.addf %3, %126 : vector<32x128xf32>
    %128 = vector.extract_strided_slice %6 {offsets = [4, 0], sizes = [1, 128], strides = [1, 1]} : vector<12x384xf32> to vector<1x128xf32>
    %129 = vector.extract_strided_slice %6 {offsets = [5, 0], sizes = [1, 128], strides = [1, 1]} : vector<12x384xf32> to vector<1x128xf32>
    %cst_38 = arith.constant dense<0.000000e+00> : vector<32xf32>
    %130 = vector.multi_reduction <add>, %127, %cst_38 [1] : vector<32x128xf32> to vector<32xf32>
    %131 = vector.shape_cast %130 : vector<32xf32> to vector<32x1xf32>
    %cst_39 = arith.constant 1.280000e+02 : f32
    %132 = vector.broadcast %cst_39 : f32 to vector<32x1xf32>
    %133 = arith.divf %131, %132 : vector<32x1xf32>
    %134 = arith.mulf %127, %127 : vector<32x128xf32>
    %cst_40 = arith.constant dense<0.000000e+00> : vector<32xf32>
    %135 = vector.multi_reduction <add>, %134, %cst_40 [1] : vector<32x128xf32> to vector<32xf32>
    %136 = vector.shape_cast %135 : vector<32xf32> to vector<32x1xf32>
    %cst_41 = arith.constant 1.280000e+02 : f32
    %137 = vector.broadcast %cst_41 : f32 to vector<32x1xf32>
    %138 = arith.divf %136, %137 : vector<32x1xf32>
    %139 = arith.mulf %133, %133 : vector<32x1xf32>
    %140 = arith.subf %138, %139 : vector<32x1xf32>
    %141 = vector.broadcast %133 : vector<32x1xf32> to vector<32x128xf32>
    %142 = arith.subf %127, %141 : vector<32x128xf32>
    %cst_42 = arith.constant 1.000000e-10 : f32
    %143 = vector.broadcast %cst_42 : f32 to vector<32x1xf32>
    %144 = arith.addf %140, %143 : vector<32x1xf32>
    %145 = math.rsqrt %144 : vector<32x1xf32>
    %146 = vector.broadcast %145 : vector<32x1xf32> to vector<32x128xf32>
    %147 = arith.mulf %142, %146 : vector<32x128xf32>
    %148 = vector.broadcast %128 : vector<1x128xf32> to vector<32x128xf32>
    %149 = arith.mulf %148, %147 : vector<32x128xf32>
    %150 = vector.broadcast %129 : vector<1x128xf32> to vector<32x128xf32>
    %151 = arith.addf %149, %150 : vector<32x128xf32>
    %c0_43 = arith.constant 0 : index
    %c0_44 = arith.constant 0 : index
    %152 = vector.load %arg3[%c0_43, %c0_44] : memref<32x128xf32, #tpu.memory_space<vmem>>, vector<32x128xf32>
    %c0_45 = arith.constant 0 : index
    %c0_46 = arith.constant 0 : index
    %c384 = arith.constant 384 : index
    %153 = vector.load %arg5[%c0_45, %c0_46, %c384] : memref<1x128x1280xbf16, #tpu.memory_space<vmem>>, vector<1x128x128xbf16>
    %154 = vector.shape_cast %153 : vector<1x128x128xbf16> to vector<128x128xbf16>
    %155 = arith.truncf %151 : vector<32x128xf32> to vector<32x128xbf16>
    %cst_47 = arith.constant dense<0.000000e+00> : vector<32x128xf32>
    %156 = tpu.matmul %155, %154, %cst_47 {dimension_numbers = #tpu.dot_dimension_numbers<[1], [0], [0], [1], [0, 0, 1, 1], [], []>} : vector<32x128xbf16>, vector<128x128xbf16>, vector<32x128xf32> -> vector<32x128xf32>
    %157 = vector.extract_strided_slice %6 {offsets = [1, 0], sizes = [1, 128], strides = [1, 1]} : vector<12x384xf32> to vector<1x128xf32>
    %158 = vector.broadcast %157 : vector<1x128xf32> to vector<32x128xf32>
    %159 = arith.addf %156, %158 : vector<32x128xf32>
    %cst_48 = arith.constant 0.176776692 : f32
    %160 = vector.broadcast %cst_48 : f32 to vector<32x128xf32>
    %161 = arith.mulf %159, %160 : vector<32x128xf32>
    %c0_49 = arith.constant 0 : index
    %c0_50 = arith.constant 0 : index
    %c512 = arith.constant 512 : index
    %162 = vector.load %arg5[%c0_49, %c0_50, %c512] : memref<1x128x1280xbf16, #tpu.memory_space<vmem>>, vector<1x128x256xbf16>
    %163 = vector.shape_cast %162 : vector<1x128x256xbf16> to vector<128x256xbf16>
    %164 = arith.truncf %152 : vector<32x128xf32> to vector<32x128xbf16>
    %cst_51 = arith.constant dense<0.000000e+00> : vector<32x256xf32>
    %165 = tpu.matmul %164, %163, %cst_51 {dimension_numbers = #tpu.dot_dimension_numbers<[1], [0], [0], [1], [0, 0, 1, 1], [], []>} : vector<32x128xbf16>, vector<128x256xbf16>, vector<32x256xf32> -> vector<32x256xf32>
    %166 = vector.extract_strided_slice %6 {offsets = [1, 128], sizes = [1, 256], strides = [1, 1]} : vector<12x384xf32> to vector<1x256xf32>
    %167 = vector.broadcast %166 : vector<1x256xf32> to vector<32x256xf32>
    %168 = arith.addf %165, %167 : vector<32x256xf32>
    %169 = vector.extract_strided_slice %168 {offsets = [0, 0], sizes = [32, 128], strides = [1, 1]} : vector<32x256xf32> to vector<32x128xf32>
    %170 = vector.extract_strided_slice %168 {offsets = [0, 128], sizes = [32, 128], strides = [1, 1]} : vector<32x256xf32> to vector<32x128xf32>
    %c0_52 = arith.constant 0 : index
    %c0_53 = arith.constant 0 : index
    %c896 = arith.constant 896 : index
    %171 = vector.load %arg5[%c0_52, %c0_53, %c896] : memref<1x128x1280xbf16, #tpu.memory_space<vmem>>, vector<1x128x128xbf16>
    %172 = vector.shape_cast %171 : vector<1x128x128xbf16> to vector<128x128xbf16>
    %173 = vector.extract_strided_slice %6 {offsets = [6, 0], sizes = [1, 128], strides = [1, 1]} : vector<12x384xf32> to vector<1x128xf32>
    %174 = vector.extract_strided_slice %161 {offsets = [0, 0], sizes = [32, 32], strides = [1, 1]} : vector<32x128xf32> to vector<32x32xf32>
    %175 = vector.shape_cast %174 : vector<32x32xf32> to vector<2x16x32xf32>
    %176 = vector.extract_strided_slice %169 {offsets = [0, 0], sizes = [32, 32], strides = [1, 1]} : vector<32x128xf32> to vector<32x32xf32>
    %177 = vector.shape_cast %176 : vector<32x32xf32> to vector<2x16x32xf32>
    %178 = vector.extract_strided_slice %170 {offsets = [0, 0], sizes = [32, 32], strides = [1, 1]} : vector<32x128xf32> to vector<32x32xf32>
    %179 = vector.shape_cast %178 : vector<32x32xf32> to vector<2x16x32xf32>
    %180 = arith.truncf %175 : vector<2x16x32xf32> to vector<2x16x32xbf16>
    %181 = arith.truncf %177 : vector<2x16x32xf32> to vector<2x16x32xbf16>
    "tpu.trace_start"() <{level = 10 : i32, message = "bqd,bkd->bqk"}> : () -> ()
    %cst_54 = arith.constant dense<0.000000e+00> : vector<2x16x16xf32>
    %182 = tpu.matmul %180, %181, %cst_54 {dimension_numbers = #tpu.dot_dimension_numbers<[2], [2], [1], [1], [0, 0, 0, 1, 1, 1], [0], [0]>} : vector<2x16x32xbf16>, vector<2x16x32xbf16>, vector<2x16x16xf32> -> vector<2x16x16xf32>
    "tpu.trace_stop"() : () -> ()
    %cst_55 = arith.constant dense<0xFF800000> : vector<2x16xf32>
    %183 = vector.multi_reduction <maximumf>, %182, %cst_55 [2] : vector<2x16x16xf32> to vector<2x16xf32>
    %184 = vector.shape_cast %183 : vector<2x16xf32> to vector<2x16x1xf32>
    %185 = vector.broadcast %184 : vector<2x16x1xf32> to vector<2x16x16xf32>
    %186 = arith.subf %182, %185 : vector<2x16x16xf32>
    %187 = math.exp %186 : vector<2x16x16xf32>
    %cst_56 = arith.constant dense<0.000000e+00> : vector<2x16xf32>
    %188 = vector.multi_reduction <add>, %187, %cst_56 [2] : vector<2x16x16xf32> to vector<2x16xf32>
    %189 = vector.shape_cast %188 : vector<2x16xf32> to vector<2x16x1xf32>
    %190 = tpu.reciprocal %189 {approx = true} : vector<2x16x1xf32> -> vector<2x16x1xf32>
    %191 = vector.broadcast %190 : vector<2x16x1xf32> to vector<2x16x16xf32>
    %192 = arith.mulf %187, %191 : vector<2x16x16xf32>
    %193 = arith.truncf %192 : vector<2x16x16xf32> to vector<2x16x16xbf16>
    %194 = arith.truncf %179 : vector<2x16x32xf32> to vector<2x16x32xbf16>
    "tpu.trace_start"() <{level = 10 : i32, message = "bqk,bkd->bqd"}> : () -> ()
    %cst_57 = arith.constant dense<0.000000e+00> : vector<2x16x32xf32>
    %195 = tpu.matmul %193, %194, %cst_57 {dimension_numbers = #tpu.dot_dimension_numbers<[2], [1], [1], [2], [0, 0, 0, 1, 1, 2], [0], [0]>} : vector<2x16x16xbf16>, vector<2x16x32xbf16>, vector<2x16x32xf32> -> vector<2x16x32xf32>
    "tpu.trace_stop"() : () -> ()
    %196 = vector.shape_cast %195 : vector<2x16x32xf32> to vector<32x32xf32>
    %c0_58 = arith.constant 0 : index
    %c0_59 = arith.constant 0 : index
    %197 = vector.load %arg12[%c0_58, %c0_59] : memref<32x128xf32, #tpu.memory_space<vmem>>, vector<32x32xf32>
    tpu.vector_store %arg12[%c0_58, %c0_59], %196 {strides = array<i32>} : memref<32x128xf32, #tpu.memory_space<vmem>>, vector<32x32xf32>,
    %198 = vector.extract_strided_slice %161 {offsets = [0, 32], sizes = [32, 32], strides = [1, 1]} : vector<32x128xf32> to vector<32x32xf32>
    %199 = vector.shape_cast %198 : vector<32x32xf32> to vector<2x16x32xf32>
    %200 = vector.extract_strided_slice %169 {offsets = [0, 32], sizes = [32, 32], strides = [1, 1]} : vector<32x128xf32> to vector<32x32xf32>
    %201 = vector.shape_cast %200 : vector<32x32xf32> to vector<2x16x32xf32>
    %202 = vector.extract_strided_slice %170 {offsets = [0, 32], sizes = [32, 32], strides = [1, 1]} : vector<32x128xf32> to vector<32x32xf32>
    %203 = vector.shape_cast %202 : vector<32x32xf32> to vector<2x16x32xf32>
    %204 = arith.truncf %199 : vector<2x16x32xf32> to vector<2x16x32xbf16>
    %205 = arith.truncf %201 : vector<2x16x32xf32> to vector<2x16x32xbf16>
    "tpu.trace_start"() <{level = 10 : i32, message = "bqd,bkd->bqk"}> : () -> ()
    %cst_60 = arith.constant dense<0.000000e+00> : vector<2x16x16xf32>
    %206 = tpu.matmul %204, %205, %cst_60 {dimension_numbers = #tpu.dot_dimension_numbers<[2], [2], [1], [1], [0, 0, 0, 1, 1, 1], [0], [0]>} : vector<2x16x32xbf16>, vector<2x16x32xbf16>, vector<2x16x16xf32> -> vector<2x16x16xf32>
    "tpu.trace_stop"() : () -> ()
    %cst_61 = arith.constant dense<0xFF800000> : vector<2x16xf32>
    %207 = vector.multi_reduction <maximumf>, %206, %cst_61 [2] : vector<2x16x16xf32> to vector<2x16xf32>
    %208 = vector.shape_cast %207 : vector<2x16xf32> to vector<2x16x1xf32>
    %209 = vector.broadcast %208 : vector<2x16x1xf32> to vector<2x16x16xf32>
    %210 = arith.subf %206, %209 : vector<2x16x16xf32>
    %211 = math.exp %210 : vector<2x16x16xf32>
    %cst_62 = arith.constant dense<0.000000e+00> : vector<2x16xf32>
    %212 = vector.multi_reduction <add>, %211, %cst_62 [2] : vector<2x16x16xf32> to vector<2x16xf32>
    %213 = vector.shape_cast %212 : vector<2x16xf32> to vector<2x16x1xf32>
    %214 = tpu.reciprocal %213 {approx = true} : vector<2x16x1xf32> -> vector<2x16x1xf32>
    %215 = vector.broadcast %214 : vector<2x16x1xf32> to vector<2x16x16xf32>
    %216 = arith.mulf %211, %215 : vector<2x16x16xf32>
    %217 = arith.truncf %216 : vector<2x16x16xf32> to vector<2x16x16xbf16>
    %218 = arith.truncf %203 : vector<2x16x32xf32> to vector<2x16x32xbf16>
    "tpu.trace_start"() <{level = 10 : i32, message = "bqk,bkd->bqd"}> : () -> ()
    %cst_63 = arith.constant dense<0.000000e+00> : vector<2x16x32xf32>
    %219 = tpu.matmul %217, %218, %cst_63 {dimension_numbers = #tpu.dot_dimension_numbers<[2], [1], [1], [2], [0, 0, 0, 1, 1, 2], [0], [0]>} : vector<2x16x16xbf16>, vector<2x16x32xbf16>, vector<2x16x32xf32> -> vector<2x16x32xf32>
    "tpu.trace_stop"() : () -> ()
    %220 = vector.shape_cast %219 : vector<2x16x32xf32> to vector<32x32xf32>
    %c0_64 = arith.constant 0 : index
    %c32_65 = arith.constant 32 : index
    %221 = vector.load %arg12[%c0_64, %c32_65] : memref<32x128xf32, #tpu.memory_space<vmem>>, vector<32x32xf32>
    tpu.vector_store %arg12[%c0_64, %c32_65], %220 {strides = array<i32>} : memref<32x128xf32, #tpu.memory_space<vmem>>, vector<32x32xf32>,
    %222 = vector.extract_strided_slice %161 {offsets = [0, 64], sizes = [32, 32], strides = [1, 1]} : vector<32x128xf32> to vector<32x32xf32>
    %223 = vector.shape_cast %222 : vector<32x32xf32> to vector<2x16x32xf32>
    %224 = vector.extract_strided_slice %169 {offsets = [0, 64], sizes = [32, 32], strides = [1, 1]} : vector<32x128xf32> to vector<32x32xf32>
    %225 = vector.shape_cast %224 : vector<32x32xf32> to vector<2x16x32xf32>
    %226 = vector.extract_strided_slice %170 {offsets = [0, 64], sizes = [32, 32], strides = [1, 1]} : vector<32x128xf32> to vector<32x32xf32>
    %227 = vector.shape_cast %226 : vector<32x32xf32> to vector<2x16x32xf32>
    %228 = arith.truncf %223 : vector<2x16x32xf32> to vector<2x16x32xbf16>
    %229 = arith.truncf %225 : vector<2x16x32xf32> to vector<2x16x32xbf16>
    "tpu.trace_start"() <{level = 10 : i32, message = "bqd,bkd->bqk"}> : () -> ()
    %cst_66 = arith.constant dense<0.000000e+00> : vector<2x16x16xf32>
    %230 = tpu.matmul %228, %229, %cst_66 {dimension_numbers = #tpu.dot_dimension_numbers<[2], [2], [1], [1], [0, 0, 0, 1, 1, 1], [0], [0]>} : vector<2x16x32xbf16>, vector<2x16x32xbf16>, vector<2x16x16xf32> -> vector<2x16x16xf32>
    "tpu.trace_stop"() : () -> ()
    %cst_67 = arith.constant dense<0xFF800000> : vector<2x16xf32>
    %231 = vector.multi_reduction <maximumf>, %230, %cst_67 [2] : vector<2x16x16xf32> to vector<2x16xf32>
    %232 = vector.shape_cast %231 : vector<2x16xf32> to vector<2x16x1xf32>
    %233 = vector.broadcast %232 : vector<2x16x1xf32> to vector<2x16x16xf32>
    %234 = arith.subf %230, %233 : vector<2x16x16xf32>
    %235 = math.exp %234 : vector<2x16x16xf32>
    %cst_68 = arith.constant dense<0.000000e+00> : vector<2x16xf32>
    %236 = vector.multi_reduction <add>, %235, %cst_68 [2] : vector<2x16x16xf32> to vector<2x16xf32>
    %237 = vector.shape_cast %236 : vector<2x16xf32> to vector<2x16x1xf32>
    %238 = tpu.reciprocal %237 {approx = true} : vector<2x16x1xf32> -> vector<2x16x1xf32>
    %239 = vector.broadcast %238 : vector<2x16x1xf32> to vector<2x16x16xf32>
    %240 = arith.mulf %235, %239 : vector<2x16x16xf32>
    %241 = arith.truncf %240 : vector<2x16x16xf32> to vector<2x16x16xbf16>
    %242 = arith.truncf %227 : vector<2x16x32xf32> to vector<2x16x32xbf16>
    "tpu.trace_start"() <{level = 10 : i32, message = "bqk,bkd->bqd"}> : () -> ()
    %cst_69 = arith.constant dense<0.000000e+00> : vector<2x16x32xf32>
    %243 = tpu.matmul %241, %242, %cst_69 {dimension_numbers = #tpu.dot_dimension_numbers<[2], [1], [1], [2], [0, 0, 0, 1, 1, 2], [0], [0]>} : vector<2x16x16xbf16>, vector<2x16x32xbf16>, vector<2x16x32xf32> -> vector<2x16x32xf32>
    "tpu.trace_stop"() : () -> ()
    %244 = vector.shape_cast %243 : vector<2x16x32xf32> to vector<32x32xf32>
    %c0_70 = arith.constant 0 : index
    %c64_71 = arith.constant 64 : index
    %245 = vector.load %arg12[%c0_70, %c64_71] : memref<32x128xf32, #tpu.memory_space<vmem>>, vector<32x32xf32>
    tpu.vector_store %arg12[%c0_70, %c64_71], %244 {strides = array<i32>} : memref<32x128xf32, #tpu.memory_space<vmem>>, vector<32x32xf32>,
    %246 = vector.extract_strided_slice %161 {offsets = [0, 96], sizes = [32, 32], strides = [1, 1]} : vector<32x128xf32> to vector<32x32xf32>
    %247 = vector.shape_cast %246 : vector<32x32xf32> to vector<2x16x32xf32>
    %248 = vector.extract_strided_slice %169 {offsets = [0, 96], sizes = [32, 32], strides = [1, 1]} : vector<32x128xf32> to vector<32x32xf32>
    %249 = vector.shape_cast %248 : vector<32x32xf32> to vector<2x16x32xf32>
    %250 = vector.extract_strided_slice %170 {offsets = [0, 96], sizes = [32, 32], strides = [1, 1]} : vector<32x128xf32> to vector<32x32xf32>
    %251 = vector.shape_cast %250 : vector<32x32xf32> to vector<2x16x32xf32>
    %252 = arith.truncf %247 : vector<2x16x32xf32> to vector<2x16x32xbf16>
    %253 = arith.truncf %249 : vector<2x16x32xf32> to vector<2x16x32xbf16>
    "tpu.trace_start"() <{level = 10 : i32, message = "bqd,bkd->bqk"}> : () -> ()
    %cst_72 = arith.constant dense<0.000000e+00> : vector<2x16x16xf32>
    %254 = tpu.matmul %252, %253, %cst_72 {dimension_numbers = #tpu.dot_dimension_numbers<[2], [2], [1], [1], [0, 0, 0, 1, 1, 1], [0], [0]>} : vector<2x16x32xbf16>, vector<2x16x32xbf16>, vector<2x16x16xf32> -> vector<2x16x16xf32>
    "tpu.trace_stop"() : () -> ()
    %cst_73 = arith.constant dense<0xFF800000> : vector<2x16xf32>
    %255 = vector.multi_reduction <maximumf>, %254, %cst_73 [2] : vector<2x16x16xf32> to vector<2x16xf32>
    %256 = vector.shape_cast %255 : vector<2x16xf32> to vector<2x16x1xf32>
    %257 = vector.broadcast %256 : vector<2x16x1xf32> to vector<2x16x16xf32>
    %258 = arith.subf %254, %257 : vector<2x16x16xf32>
    %259 = math.exp %258 : vector<2x16x16xf32>
    %cst_74 = arith.constant dense<0.000000e+00> : vector<2x16xf32>
    %260 = vector.multi_reduction <add>, %259, %cst_74 [2] : vector<2x16x16xf32> to vector<2x16xf32>
    %261 = vector.shape_cast %260 : vector<2x16xf32> to vector<2x16x1xf32>
    %262 = tpu.reciprocal %261 {approx = true} : vector<2x16x1xf32> -> vector<2x16x1xf32>
    %263 = vector.broadcast %262 : vector<2x16x1xf32> to vector<2x16x16xf32>
    %264 = arith.mulf %259, %263 : vector<2x16x16xf32>
    %265 = arith.truncf %264 : vector<2x16x16xf32> to vector<2x16x16xbf16>
    %266 = arith.truncf %251 : vector<2x16x32xf32> to vector<2x16x32xbf16>
    "tpu.trace_start"() <{level = 10 : i32, message = "bqk,bkd->bqd"}> : () -> ()
    %cst_75 = arith.constant dense<0.000000e+00> : vector<2x16x32xf32>
    %267 = tpu.matmul %265, %266, %cst_75 {dimension_numbers = #tpu.dot_dimension_numbers<[2], [1], [1], [2], [0, 0, 0, 1, 1, 2], [0], [0]>} : vector<2x16x16xbf16>, vector<2x16x32xbf16>, vector<2x16x32xf32> -> vector<2x16x32xf32>
    "tpu.trace_stop"() : () -> ()
    %268 = vector.shape_cast %267 : vector<2x16x32xf32> to vector<32x32xf32>
    %c0_76 = arith.constant 0 : index
    %c96_77 = arith.constant 96 : index
    %269 = vector.load %arg12[%c0_76, %c96_77] : memref<32x128xf32, #tpu.memory_space<vmem>>, vector<32x32xf32>
    tpu.vector_store %arg12[%c0_76, %c96_77], %268 {strides = array<i32>} : memref<32x128xf32, #tpu.memory_space<vmem>>, vector<32x32xf32>,
    %c0_78 = arith.constant 0 : index
    %c0_79 = arith.constant 0 : index
    %270 = vector.load %arg12[%c0_78, %c0_79] : memref<32x128xf32, #tpu.memory_space<vmem>>, vector<32x128xf32>
    %271 = arith.truncf %270 : vector<32x128xf32> to vector<32x128xbf16>
    %cst_80 = arith.constant dense<0.000000e+00> : vector<32x128xf32>
    %272 = tpu.matmul %271, %172, %cst_80 {dimension_numbers = #tpu.dot_dimension_numbers<[1], [0], [0], [1], [0, 0, 1, 1], [], []>} : vector<32x128xbf16>, vector<128x128xbf16>, vector<32x128xf32> -> vector<32x128xf32>
    %273 = vector.broadcast %173 : vector<1x128xf32> to vector<32x128xf32>
    %274 = arith.addf %272, %273 : vector<32x128xf32>
    %275 = arith.addf %151, %274 : vector<32x128xf32>
    %276 = vector.extract_strided_slice %6 {offsets = [7, 0], sizes = [1, 128], strides = [1, 1]} : vector<12x384xf32> to vector<1x128xf32>
    %277 = vector.extract_strided_slice %6 {offsets = [8, 0], sizes = [1, 128], strides = [1, 1]} : vector<12x384xf32> to vector<1x128xf32>
    %cst_81 = arith.constant dense<0.000000e+00> : vector<32xf32>
    %278 = vector.multi_reduction <add>, %275, %cst_81 [1] : vector<32x128xf32> to vector<32xf32>
    %279 = vector.shape_cast %278 : vector<32xf32> to vector<32x1xf32>
    %cst_82 = arith.constant 1.280000e+02 : f32
    %280 = vector.broadcast %cst_82 : f32 to vector<32x1xf32>
    %281 = arith.divf %279, %280 : vector<32x1xf32>
    %282 = arith.mulf %275, %275 : vector<32x128xf32>
    %cst_83 = arith.constant dense<0.000000e+00> : vector<32xf32>
    %283 = vector.multi_reduction <add>, %282, %cst_83 [1] : vector<32x128xf32> to vector<32xf32>
    %284 = vector.shape_cast %283 : vector<32xf32> to vector<32x1xf32>
    %cst_84 = arith.constant 1.280000e+02 : f32
    %285 = vector.broadcast %cst_84 : f32 to vector<32x1xf32>
    %286 = arith.divf %284, %285 : vector<32x1xf32>
    %287 = arith.mulf %281, %281 : vector<32x1xf32>
    %288 = arith.subf %286, %287 : vector<32x1xf32>
    %289 = vector.broadcast %281 : vector<32x1xf32> to vector<32x128xf32>
    %290 = arith.subf %275, %289 : vector<32x128xf32>
    %cst_85 = arith.constant 1.000000e-10 : f32
    %291 = vector.broadcast %cst_85 : f32 to vector<32x1xf32>
    %292 = arith.addf %288, %291 : vector<32x1xf32>
    %293 = math.rsqrt %292 : vector<32x1xf32>
    %294 = vector.broadcast %293 : vector<32x1xf32> to vector<32x128xf32>
    %295 = arith.mulf %290, %294 : vector<32x128xf32>
    %296 = vector.broadcast %276 : vector<1x128xf32> to vector<32x128xf32>
    %297 = arith.mulf %296, %295 : vector<32x128xf32>
    %298 = vector.broadcast %277 : vector<1x128xf32> to vector<32x128xf32>
    %299 = arith.addf %297, %298 : vector<32x128xf32>
    %c0_86 = arith.constant 0 : index
    %c0_87 = arith.constant 0 : index
    %c1024 = arith.constant 1024 : index
    %300 = vector.load %arg5[%c0_86, %c0_87, %c1024] : memref<1x128x1280xbf16, #tpu.memory_space<vmem>>, vector<1x128x256xbf16>
    %301 = vector.shape_cast %300 : vector<1x128x256xbf16> to vector<128x256xbf16>
    %302 = arith.truncf %299 : vector<32x128xf32> to vector<32x128xbf16>
    %cst_88 = arith.constant dense<0.000000e+00> : vector<32x256xf32>
    %303 = tpu.matmul %302, %301, %cst_88 {dimension_numbers = #tpu.dot_dimension_numbers<[1], [0], [0], [1], [0, 0, 1, 1], [], []>} : vector<32x128xbf16>, vector<128x256xbf16>, vector<32x256xf32> -> vector<32x256xf32>
    %304 = vector.extract_strided_slice %6 {offsets = [2, 0], sizes = [1, 256], strides = [1, 1]} : vector<12x384xf32> to vector<1x256xf32>
    %305 = vector.broadcast %304 : vector<1x256xf32> to vector<32x256xf32>
    %306 = arith.addf %303, %305 : vector<32x256xf32>
    %cst_89 = arith.constant 0.000000e+00 : f32
    %307 = vector.broadcast %cst_89 : f32 to vector<32x256xf32>
    %308 = arith.maximumf %306, %307 : vector<32x256xf32>
    %c0_90 = arith.constant 0 : index
    %c0_91 = arith.constant 0 : index
    %c0_92 = arith.constant 0 : index
    %309 = vector.load %arg6[%c0_90, %c0_91, %c0_92] : memref<1x256x128xbf16, #tpu.memory_space<vmem>>, vector<1x256x128xbf16>
    %310 = vector.shape_cast %309 : vector<1x256x128xbf16> to vector<256x128xbf16>
    %311 = arith.truncf %308 : vector<32x256xf32> to vector<32x256xbf16>
    %cst_93 = arith.constant dense<0.000000e+00> : vector<32x128xf32>
    %312 = tpu.matmul %311, %310, %cst_93 {dimension_numbers = #tpu.dot_dimension_numbers<[1], [0], [0], [1], [0, 0, 1, 1], [], []>} : vector<32x256xbf16>, vector<256x128xbf16>, vector<32x128xf32> -> vector<32x128xf32>
    %313 = arith.addf %299, %312 : vector<32x128xf32>
    %314 = vector.extract_strided_slice %6 {offsets = [9, 0], sizes = [1, 128], strides = [1, 1]} : vector<12x384xf32> to vector<1x128xf32>
    %315 = vector.broadcast %314 : vector<1x128xf32> to vector<32x128xf32>
    %316 = arith.addf %313, %315 : vector<32x128xf32>
    %317 = vector.extract_strided_slice %6 {offsets = [10, 0], sizes = [1, 128], strides = [1, 1]} : vector<12x384xf32> to vector<1x128xf32>
    %318 = vector.extract_strided_slice %6 {offsets = [11, 0], sizes = [1, 128], strides = [1, 1]} : vector<12x384xf32> to vector<1x128xf32>
    %cst_94 = arith.constant dense<0.000000e+00> : vector<32xf32>
    %319 = vector.multi_reduction <add>, %316, %cst_94 [1] : vector<32x128xf32> to vector<32xf32>
    %320 = vector.shape_cast %319 : vector<32xf32> to vector<32x1xf32>
    %cst_95 = arith.constant 1.280000e+02 : f32
    %321 = vector.broadcast %cst_95 : f32 to vector<32x1xf32>
    %322 = arith.divf %320, %321 : vector<32x1xf32>
    %323 = arith.mulf %316, %316 : vector<32x128xf32>
    %cst_96 = arith.constant dense<0.000000e+00> : vector<32xf32>
    %324 = vector.multi_reduction <add>, %323, %cst_96 [1] : vector<32x128xf32> to vector<32xf32>
    %325 = vector.shape_cast %324 : vector<32xf32> to vector<32x1xf32>
    %cst_97 = arith.constant 1.280000e+02 : f32
    %326 = vector.broadcast %cst_97 : f32 to vector<32x1xf32>
    %327 = arith.divf %325, %326 : vector<32x1xf32>
    %328 = arith.mulf %322, %322 : vector<32x1xf32>
    %329 = arith.subf %327, %328 : vector<32x1xf32>
    %330 = vector.broadcast %322 : vector<32x1xf32> to vector<32x128xf32>
    %331 = arith.subf %316, %330 : vector<32x128xf32>
    %cst_98 = arith.constant 1.000000e-10 : f32
    %332 = vector.broadcast %cst_98 : f32 to vector<32x1xf32>
    %333 = arith.addf %329, %332 : vector<32x1xf32>
    %334 = math.rsqrt %333 : vector<32x1xf32>
    %335 = vector.broadcast %334 : vector<32x1xf32> to vector<32x128xf32>
    %336 = arith.mulf %331, %335 : vector<32x128xf32>
    %337 = vector.broadcast %317 : vector<1x128xf32> to vector<32x128xf32>
    %338 = arith.mulf %337, %336 : vector<32x128xf32>
    %339 = vector.broadcast %318 : vector<1x128xf32> to vector<32x128xf32>
    %340 = arith.addf %338, %339 : vector<32x128xf32>
    %c0_99 = arith.constant 0 : index
    %c0_100 = arith.constant 0 : index
    %341 = vector.load %arg11[%c0_99, %c0_100] : memref<32x128xf32, #tpu.memory_space<vmem>>, vector<32x128xf32>
    tpu.vector_store %arg11[%c0_99, %c0_100], %340 {strides = array<i32>} : memref<32x128xf32, #tpu.memory_space<vmem>>, vector<32x128xf32>,
    %c1_i32 = arith.constant 1 : i32
    %342 = arith.cmpi eq, %arg1, %c1_i32 : i32
    %343 = arith.extui %342 : i1 to i32
    %c0_i32_101 = arith.constant 0 : i32
    %344 = arith.cmpi ne, %343, %c0_i32_101 : i32
    scf.if %344 {
      %c0_102 = arith.constant 0 : index
      %c0_103 = arith.constant 0 : index
      %345 = vector.load %arg8[%c0_102, %c0_103] : memref<128x256xbf16, #tpu.memory_space<vmem>>, vector<128x256xbf16>
      %346 = arith.truncf %340 : vector<32x128xf32> to vector<32x128xbf16>
      %cst_104 = arith.constant dense<0.000000e+00> : vector<32x256xf32>
      %347 = tpu.matmul %346, %345, %cst_104 {dimension_numbers = #tpu.dot_dimension_numbers<[1], [0], [0], [1], [0, 0, 1, 1], [], []>} : vector<32x128xbf16>, vector<128x256xbf16>, vector<32x256xf32> -> vector<32x256xf32>
      %c0_105 = arith.constant 0 : index
      %c0_106 = arith.constant 0 : index
      %348 = vector.load %arg9[%c0_105, %c0_106] : memref<1x256xf32, #tpu.memory_space<vmem>>, vector<1x256xf32>
      %349 = vector.broadcast %348 : vector<1x256xf32> to vector<32x256xf32>
      %350 = arith.addf %347, %349 : vector<32x256xf32>
      %c0_107 = arith.constant 0 : index
      %c0_108 = arith.constant 0 : index
      %351 = vector.load %arg10[%c0_107, %c0_108] : memref<32x256xf32, #tpu.memory_space<vmem>>, vector<32x256xf32>
      tpu.vector_store %arg10[%c0_107, %c0_108], %350 {strides = array<i32>} : memref<32x256xf32, #tpu.memory_space<vmem>>, vector<32x256xf32>,
    } else {
    }
    return
  }
  func.func @transform_0(%arg0: i32, %arg1: i32) -> (i32, i32) {
    %c0_i32 = arith.constant 0 : i32
    %c0_i32_0 = arith.constant 0 : i32
    return %arg0, %c0_i32 : i32, i32
  }
  func.func @transform_1(%arg0: i32, %arg1: i32) -> (i32, i32) {
    %c0_i32 = arith.constant 0 : i32
    %c0_i32_0 = arith.constant 0 : i32
    return %arg0, %c0_i32 : i32, i32
  }
  func.func @transform_2(%arg0: i32, %arg1: i32) -> (i32, i32, i32) {
    %c0_i32 = arith.constant 0 : i32
    %c0_i32_0 = arith.constant 0 : i32
    %c0_i32_1 = arith.constant 0 : i32
    return %arg0, %c0_i32, %c0_i32_0 : i32, i32, i32
  }
  func.func @transform_3(%arg0: i32, %arg1: i32) -> (i32, i32, i32) {
    %c0_i32 = arith.constant 0 : i32
    %c0_i32_0 = arith.constant 0 : i32
    %c0_i32_1 = arith.constant 0 : i32
    return %arg1, %c0_i32, %c0_i32_0 : i32, i32, i32
  }
  func.func @transform_4(%arg0: i32, %arg1: i32) -> (i32, i32, i32) {
    %c0_i32 = arith.constant 0 : i32
    %c0_i32_0 = arith.constant 0 : i32
    %c0_i32_1 = arith.constant 0 : i32
    return %arg1, %c0_i32, %c0_i32_0 : i32, i32, i32
  }
  func.func @transform_5(%arg0: i32, %arg1: i32) -> (i32, i32, i32) {
    %c0_i32 = arith.constant 0 : i32
    %c0_i32_0 = arith.constant 0 : i32
    %c0_i32_1 = arith.constant 0 : i32
    return %arg1, %c0_i32, %c0_i32_0 : i32, i32, i32
  }
  func.func @transform_6(%arg0: i32, %arg1: i32) -> (i32, i32) {
    %c0_i32 = arith.constant 0 : i32
    %c0_i32_0 = arith.constant 0 : i32
    %c0_i32_1 = arith.constant 0 : i32
    return %c0_i32, %c0_i32_0 : i32, i32
  }
  func.func @transform_7(%arg0: i32, %arg1: i32) -> (i32, i32) {
    %c0_i32 = arith.constant 0 : i32
    %c0_i32_0 = arith.constant 0 : i32
    %c0_i32_1 = arith.constant 0 : i32
    return %c0_i32, %c0_i32_0 : i32, i32
  }
  func.func @transform_8(%arg0: i32, %arg1: i32) -> (i32, i32) {
    %c0_i32 = arith.constant 0 : i32
    %c0_i32_0 = arith.constant 0 : i32
    return %arg0, %c0_i32 : i32, i32
  }
}

</mosaic_0001>

<llo_original>
// kernel: tpu_custom_call.1
$region0: #{tpu_custom_call.1}
  #allocation0 [shape = 'u32[]', space=smem, size = 0x4, offset = 0x4, fixed_abs, tag = 'smem constant byte address 0x4 - core index']
  #allocation1 [shape = 'u32[144,128]{1,0:T(1,128)}', space=vmem, size = 0x12000, scoped, tag = 'internal scratch']
  #allocation2 [shape = 'f32[32,128]{1,0:T(8,128)}', space=vmem, size = 0x4000, scoped, tag = 'scratch operand']
  #allocation3 [shape = 'f32[32,128]{1,0:T(8,128)}', space=vmem, size = 0x4000, scoped, tag = 'scratch operand']
  %s0 = inlined_call_operand.vmem [shape: f32[32,128], index: 0, kind: input, shape index: {}]
  %s1 = inlined_call_operand.hbm [shape: f32[32,128], index: 1, kind: input, shape index: {}]
  %s2 = inlined_call_operand.hbm [shape: f32[2,16,16], index: 2, kind: input, shape index: {}]
  %s3 = inlined_call_operand.hbm [shape: bf16[2,128,1280], index: 3, kind: input, shape index: {}]
  %s4 = inlined_call_operand.hbm [shape: bf16[2,256,128], index: 4, kind: input, shape index: {}]
  %s5 = inlined_call_operand.vmem [shape: f32[2,12,384], index: 5, kind: input, shape index: {}]
  %s6 = inlined_call_operand.vmem [shape: bf16[128,256], index: 6, kind: input, shape index: {}]
  %s7 = inlined_call_operand.vmem [shape: f32[1,256], index: 7, kind: input, shape index: {}]
  %s8 = inlined_call_operand.hbm [shape: f32[32,256], index: 8, kind: output, shape index: {}]
  %s9 = sld [smem:[#allocation0]]
  $region89: #{tpu_custom_call.1} parent=0
    _
  %s11 = ssub.s32 1, %s9
  %s12 = scalar_select 0, %s11, %s9
  $region1: #{tpu_custom_call.1} parent=0
    #allocation4 [shape = 'u8[16384]{0}', space=vmem, size = 0x4000, scoped, tag = 'input window, operand 1, single buffered']
    #allocation5 [shape = 's32[2]{0}', space=sflag, size = 0x8, scoped, tag = 'scoped memory for tpu_custom_call.1']
    #allocation6 [shape = 's32[2]{0}', space=sflag, size = 0x8, scoped, tag = 'scoped memory for tpu_custom_call.1']
    #allocation7 [shape = 'u8[16384]{0}', space=vmem, size = 0x4000, scoped, tag = 'input window, operand 2, single buffered']
    #allocation8 [shape = 's32[1]{0}', space=sflag, size = 0x4, scoped, tag = 'scoped memory for tpu_custom_call.1']
    #allocation9 [shape = 'u8[655360]{0}', space=vmem, size = 0xa0000, scoped, tag = 'input window, operand 3']
    #allocation10 [shape = 'u8[131072]{0}', space=vmem, size = 0x20000, scoped, tag = 'input window, operand 4']
    #allocation11 [shape = 'u8[32768]{0}', space=vmem, size = 0x8000, scoped, tag = 'output window, operand 0, single buffered']
    %13 = vsyncpa [#allocation5], 0
    %14 = vsyncpa [#allocation8], 0
    %15 = vsyncpa [#allocation6], 0
    loop: start=0, step=1, limit=4
    $region2: #{tpu_custom_call.1} parent=1 // loop_pre_header
      _
    $region3: #{tpu_custom_call.1} parent=1 // loop_header
      %s17 = sphi 0, %s21
      %p18 = scmp.ge.s32.totalorder %s17, 4
      %s24 = sphi 0, %s36
      %s25 = sphi 0, %s32
      %s26 = sphi 0, %s24
      %s27 = sphi 0, %s25
      %s28 = sphi 0, %s26
      %s29 = sphi 0, %s27
      %s39 = sphi 0, %s41
      %s42 = sphi 0, %s39
      %s43 = sphi 0, %s42
      %s59 = sphi 0, %s43
      %s65 = sphi 0, %s67
      %s68 = sphi 0, %s65
      %s69 = sphi 0, %s68
      %s85 = sphi 0, %s69
      %s91 = sphi 0, %s93
      %s94 = sphi 0, %s91
      %s95 = sphi 0, %s94
      %s111 = sphi 0, %s95
      %s117 = sphi 0, %s119
      %s120 = sphi 0, %s117
      %s121 = sphi 0, %s120
      %s137 = sphi 0, %s121
      %s143 = sphi 0, %s145
      %s146 = sphi 0, %s143
      %s147 = sphi 0, %s146
      %s163 = sphi 0, %s147
      %s169 = sphi 0, %s171
      %s172 = sphi 0, %s169
      %s173 = sphi 0, %s172
      %s189 = sphi 0, %s173
      %s193 = sphi 0, %s193
      %s195 = sphi 0, %s193
      %s196 = sphi 0, %s195
      %s210 = sphi 0, %s196
      %s214 = sphi 0, %s214
      %s216 = sphi 0, %s214
      %s217 = sphi 0, %s216
      %s231 = sphi 0, %s217
      %s237 = sphi 0, %s239
      %s240 = sphi 0, %s237
      %s241 = sphi 0, %s240
      %s257 = sphi 0, %s241
    $region4: #{tpu_custom_call.1} parent=1 // loop_header_branch
      %20 = sbr.rel (%p18) target = $region8
    $region5: #{tpu_custom_call.1} parent=1 // loop_body
      %s22 = ssub.s32 %s17, 1
      %s23 = ssub.s32 %s17, 2
      %s30 = sadd.s32 1, %s25
      %p31 = scmp.ge.s32.totalorder %s30, 2
      %s32 = scalar_select %p31, 0, %s30
      %s33 = sadd.s32 1, %s24
      %s34 = scalar_select %p31, %s33, %s24
      %p35 = scmp.ge.s32.totalorder %s34, 1
      %s36 = scalar_select %p35, 0, %s34
      %s37 = ssub.s32 %s24, %s36
      %p38 = scmp.eq.s32.totalorder %s37, 0
      %s40 = sadd.s32 %s39, 1
      %s41 = scalar_select %p38, %s39, %s40
      %p44 = pneg %p38
      %p45 = scmp.eq.s32.totalorder %s17, 1
      %p46 = por %p44, %p45
      %p47 = scmp.ne.s32.totalorder %s39, %s42
      %p48 = scmp.eq.s32.totalorder %s17, 0
      %p49 = por %p47, %p48
      %p50 = scmp.ne.s32.totalorder %s39, %s42
      %p51 = scmp.eq.s32.totalorder %s22, 1
      %p52 = por %p50, %p51
      %p53 = scmp.ne.s32.totalorder %s42, %s43
      %p54 = scmp.eq.s32.totalorder %s22, 0
      %p55 = por %p53, %p54
      %p56 = scmp.ne.s32.totalorder %s42, %s43
      %p57 = scmp.eq.s32.totalorder %s23, 1
      %p58 = por %p56, %p57
      %p60 = scmp.ne.s32.totalorder %s43, %s59
      %p61 = scmp.eq.s32.totalorder %s23, 0
      %p62 = por %p60, %p61
      %s63 = ssub.s32 %s24, %s36
      %p64 = scmp.eq.s32.totalorder %s63, 0
      %s66 = sadd.s32 %s65, 1
      %s67 = scalar_select %p64, %s65, %s66
      %p70 = pneg %p64
      %p71 = scmp.eq.s32.totalorder %s17, 1
      %p72 = por %p70, %p71
      %p73 = scmp.ne.s32.totalorder %s65, %s68
      %p74 = scmp.eq.s32.totalorder %s17, 0
      %p75 = por %p73, %p74
      %p76 = scmp.ne.s32.totalorder %s65, %s68
      %p77 = scmp.eq.s32.totalorder %s22, 1
      %p78 = por %p76, %p77
      %p79 = scmp.ne.s32.totalorder %s68, %s69
      %p80 = scmp.eq.s32.totalorder %s22, 0
      %p81 = por %p79, %p80
      %p82 = scmp.ne.s32.totalorder %s68, %s69
      %p83 = scmp.eq.s32.totalorder %s23, 1
      %p84 = por %p82, %p83
      %p86 = scmp.ne.s32.totalorder %s69, %s85
      %p87 = scmp.eq.s32.totalorder %s23, 0
      %p88 = por %p86, %p87
      %s89 = ssub.s32 %s24, %s36
      %p90 = scmp.eq.s32.totalorder %s89, 0
      %s92 = sadd.s32 %s91, 1
      %s93 = scalar_select %p90, %s91, %s92
      %p96 = pneg %p90
      %p97 = scmp.eq.s32.totalorder %s17, 1
      %p98 = por %p96, %p97
      %p99 = scmp.ne.s32.totalorder %s91, %s94
      %p100 = scmp.eq.s32.totalorder %s17, 0
      %p101 = por %p99, %p100
      %p102 = scmp.ne.s32.totalorder %s91, %s94
      %p103 = scmp.eq.s32.totalorder %s22, 1
      %p104 = por %p102, %p103
      %p105 = scmp.ne.s32.totalorder %s94, %s95
      %p106 = scmp.eq.s32.totalorder %s22, 0
      %p107 = por %p105, %p106
      %p108 = scmp.ne.s32.totalorder %s94, %s95
      %p109 = scmp.eq.s32.totalorder %s23, 1
      %p110 = por %p108, %p109
      %p112 = scmp.ne.s32.totalorder %s95, %s111
      %p113 = scmp.eq.s32.totalorder %s23, 0
      %p114 = por %p112, %p113
      %s115 = ssub.s32 %s25, %s32
      %p116 = scmp.eq.s32.totalorder %s115, 0
      %s118 = sadd.s32 %s117, 1
      %s119 = scalar_select %p116, %s117, %s118
      %p122 = pneg %p116
      %p123 = scmp.eq.s32.totalorder %s17, 1
      %p124 = por %p122, %p123
      %p125 = scmp.ne.s32.totalorder %s117, %s120
      %p126 = scmp.eq.s32.totalorder %s17, 0
      %p127 = por %p125, %p126
      %p128 = scmp.ne.s32.totalorder %s117, %s120
      %p129 = scmp.eq.s32.totalorder %s22, 1
      %p130 = por %p128, %p129
      %p131 = scmp.ne.s32.totalorder %s120, %s121
      %p132 = scmp.eq.s32.totalorder %s22, 0
      %p133 = por %p131, %p132
      %p134 = scmp.ne.s32.totalorder %s120, %s121
      %p135 = scmp.eq.s32.totalorder %s23, 1
      %p136 = por %p134, %p135
      %p138 = scmp.ne.s32.totalorder %s121, %s137
      %p139 = scmp.eq.s32.totalorder %s23, 0
      %p140 = por %p138, %p139
      %s141 = ssub.s32 %s25, %s32
      %p142 = scmp.eq.s32.totalorder %s141, 0
      %s144 = sadd.s32 %s143, 1
      %s145 = scalar_select %p142, %s143, %s144
      %p148 = pneg %p142
      %p149 = scmp.eq.s32.totalorder %s17, 1
      %p150 = por %p148, %p149
      %p151 = scmp.ne.s32.totalorder %s143, %s146
      %p152 = scmp.eq.s32.totalorder %s17, 0
      %p153 = por %p151, %p152
      %p154 = scmp.ne.s32.totalorder %s143, %s146
      %p155 = scmp.eq.s32.totalorder %s22, 1
      %p156 = por %p154, %p155
      %p157 = scmp.ne.s32.totalorder %s146, %s147
      %p158 = scmp.eq.s32.totalorder %s22, 0
      %p159 = por %p157, %p158
      %p160 = scmp.ne.s32.totalorder %s146, %s147
      %p161 = scmp.eq.s32.totalorder %s23, 1
      %p162 = por %p160, %p161
      %p164 = scmp.ne.s32.totalorder %s147, %s163
      %p165 = scmp.eq.s32.totalorder %s23, 0
      %p166 = por %p164, %p165
      %s167 = ssub.s32 %s25, %s32
      %p168 = scmp.eq.s32.totalorder %s167, 0
      %s170 = sadd.s32 %s169, 1
      %s171 = scalar_select %p168, %s169, %s170
      %p174 = pneg %p168
      %p175 = scmp.eq.s32.totalorder %s17, 1
      %p176 = por %p174, %p175
      %p177 = scmp.ne.s32.totalorder %s169, %s172
      %p178 = scmp.eq.s32.totalorder %s17, 0
      %p179 = por %p177, %p178
      %p180 = scmp.ne.s32.totalorder %s169, %s172
      %p181 = scmp.eq.s32.totalorder %s22, 1
      %p182 = por %p180, %p181
      %p183 = scmp.ne.s32.totalorder %s172, %s173
      %p184 = scmp.eq.s32.totalorder %s22, 0
      %p185 = por %p183, %p184
      %p186 = scmp.ne.s32.totalorder %s172, %s173
      %p187 = scmp.eq.s32.totalorder %s23, 1
      %p188 = por %p186, %p187
      %p190 = scmp.ne.s32.totalorder %s173, %s189
      %p191 = scmp.eq.s32.totalorder %s23, 0
      %p192 = por %p190, %p191
      %s194 = sadd.s32 %s193, 1
      %p197 = scmp.eq.s32.totalorder %s17, 1
      %p198 = scmp.ne.s32.totalorder %s193, %s195
      %p199 = scmp.eq.s32.totalorder %s17, 0
      %p200 = por %p198, %p199
      %p201 = scmp.ne.s32.totalorder %s193, %s195
      %p202 = scmp.eq.s32.totalorder %s22, 1
      %p203 = por %p201, %p202
      %p204 = scmp.ne.s32.totalorder %s195, %s196
      %p205 = scmp.eq.s32.totalorder %s22, 0
      %p206 = por %p204, %p205
      %p207 = scmp.ne.s32.totalorder %s195, %s196
      %p208 = scmp.eq.s32.totalorder %s23, 1
      %p209 = por %p207, %p208
      %p211 = scmp.ne.s32.totalorder %s196, %s210
      %p212 = scmp.eq.s32.totalorder %s23, 0
      %p213 = por %p211, %p212
      %s215 = sadd.s32 %s214, 1
      %p218 = scmp.eq.s32.totalorder %s17, 1
      %p219 = scmp.ne.s32.totalorder %s214, %s216
      %p220 = scmp.eq.s32.totalorder %s17, 0
      %p221 = por %p219, %p220
      %p222 = scmp.ne.s32.totalorder %s214, %s216
      %p223 = scmp.eq.s32.totalorder %s22, 1
      %p224 = por %p222, %p223
      %p225 = scmp.ne.s32.totalorder %s216, %s217
      %p226 = scmp.eq.s32.totalorder %s22, 0
      %p227 = por %p225, %p226
      %p228 = scmp.ne.s32.totalorder %s216, %s217
      %p229 = scmp.eq.s32.totalorder %s23, 1
      %p230 = por %p228, %p229
      %p232 = scmp.ne.s32.totalorder %s217, %s231
      %p233 = scmp.eq.s32.totalorder %s23, 0
      %p234 = por %p232, %p233
      %s235 = ssub.s32 %s24, %s36
      %p236 = scmp.eq.s32.totalorder %s235, 0
      %s238 = sadd.s32 %s237, 1
      %s239 = scalar_select %p236, %s237, %s238
      %p242 = pneg %p236
      %p243 = scmp.eq.s32.totalorder %s17, 1
      %p244 = por %p242, %p243
      %p245 = scmp.ne.s32.totalorder %s237, %s240
      %p246 = scmp.eq.s32.totalorder %s17, 0
      %p247 = por %p245, %p246
      %p248 = scmp.ne.s32.totalorder %s237, %s240
      %p249 = scmp.eq.s32.totalorder %s22, 1
      %p250 = por %p248, %p249
      %p251 = scmp.ne.s32.totalorder %s240, %s241
      %p252 = scmp.eq.s32.totalorder %s22, 0
      %p253 = por %p251, %p252
      %p254 = scmp.ne.s32.totalorder %s240, %s241
      %p255 = scmp.eq.s32.totalorder %s23, 1
      %p256 = por %p254, %p255
      %p258 = scmp.ne.s32.totalorder %s241, %s257
      %p259 = scmp.eq.s32.totalorder %s23, 0
      %p260 = por %p258, %p259
      %p261 = scmp.le.s32.totalorder 1, %s17
      %p262 = scmp.lt.s32.totalorder %s17, 3
      %p263 = pnand %p261, %p262
      %p264 = pneg %p263
      // Predicated region
      $region9: #{tpu_custom_call.1} parent=5 // pred_check
        _
      $region10: #{tpu_custom_call.1} parent=5 // pred_check_branch
        %266 = sbr.rel (%p263) target = $region12
      $region11: #{tpu_custom_call.1} parent=5 // pred_region
        %s267 = ssub.s32 %s17, 1
        // Predicated region
        $region13: #{tpu_custom_call.1} parent=11 // pred_check
          %p268 = pneg %p55
        $region14: #{tpu_custom_call.1} parent=11 // pred_check_branch
          %270 = sbr.rel (%p268) target = $region16
        $region15: #{tpu_custom_call.1} parent=11 // pred_region
          %s271 = smul.u32 4, %s26
          %p272 = scmp.lt.s32.totalorder %s271, 3
          %s273 = scalar_select %p272, %s271, 3
          %s274 = smul.addr %s273, 8
          %s275 = scalar_lea.vmem %s0, %s274
          %s276 = smul.u32 4, %s26
        $region16: #{tpu_custom_call.1} parent=11 // pred_fallthru
          _
        // Predicated region
        $region17: #{tpu_custom_call.1} parent=11 // pred_check
          %p277 = pneg %p81
        $region18: #{tpu_custom_call.1} parent=11 // pred_check_branch
          %279 = sbr.rel (%p277) target = $region20
        $region19: #{tpu_custom_call.1} parent=11 // pred_region
          %s280 = smul.u32 4, %s26
          %s282 = ssub.s32 512, 512
          %283 = vsyncadd [#allocation5], %s282
          %s284 = smul.addr %s280, 128
          %s285 = scalar_lea.hbm %s1, %s284
          %s286 = sshll.u32 [#allocation4], 4
          %s287 = int_to_ptr.vmem [resolvable:$true] %s286
          %292 = dma.hbm_to_vmem [thread:$0]  %s285, 512, %s287, [#allocation5], 128, 128, 8
        $region20: #{tpu_custom_call.1} parent=11 // pred_fallthru
          _
        // Predicated region
        $region21: #{tpu_custom_call.1} parent=11 // pred_check
          %p293 = pneg %p107
        $region22: #{tpu_custom_call.1} parent=11 // pred_check_branch
          %295 = sbr.rel (%p293) target = $region24
        $region23: #{tpu_custom_call.1} parent=11 // pred_region
          %s296 = smul.u32 2, %s26
          %s298 = ssub.s32 512, 512
          %299 = vsyncadd [#allocation8], %s298
          %s300 = smul.addr %s296, 2
          %s301 = smul.addr %s300, 128
          %s302 = scalar_lea.hbm %s2, %s301
          %s303 = sshll.u32 [#allocation7], 4
          %s304 = int_to_ptr.vmem [resolvable:$true] %s303
          %309 = dma.hbm_to_vmem [thread:$0]  %s302, 512, %s304, [#allocation8], 128, 128, 8
        $region24: #{tpu_custom_call.1} parent=11 // pred_fallthru
          _
        // Predicated region
        $region25: #{tpu_custom_call.1} parent=11 // pred_check
          %p310 = pneg %p206
        $region26: #{tpu_custom_call.1} parent=11 // pred_check_branch
          %312 = sbr.rel (%p310) target = $region28
        $region27: #{tpu_custom_call.1} parent=11 // pred_region
          _
        $region28: #{tpu_custom_call.1} parent=11 // pred_fallthru
          _
        // Predicated region
        $region29: #{tpu_custom_call.1} parent=11 // pred_check
          %p313 = pneg %p227
        $region30: #{tpu_custom_call.1} parent=11 // pred_check_branch
          %315 = sbr.rel (%p313) target = $region32
        $region31: #{tpu_custom_call.1} parent=11 // pred_region
          _
        $region32: #{tpu_custom_call.1} parent=11 // pred_fallthru
          _
      $region12: #{tpu_custom_call.1} parent=5 // pred_fallthru
        _
      %p316 = scmp.lt.s32.totalorder %s17, 2
      // Predicated region
      $region33: #{tpu_custom_call.1} parent=5 // pred_check
        %p317 = pneg %p316
      $region34: #{tpu_custom_call.1} parent=5 // pred_check_branch
        %319 = sbr.rel (%p317) target = $region36
      $region35: #{tpu_custom_call.1} parent=5 // pred_region
        // Predicated region
        $region37: #{tpu_custom_call.1} parent=35 // pred_check
          %p320 = pneg %p127
        $region38: #{tpu_custom_call.1} parent=35 // pred_check_branch
          %322 = sbr.rel (%p320) target = $region40
        $region39: #{tpu_custom_call.1} parent=35 // pred_region
          %s323 = sand.u32 %s17, 1
          %s324 = scalar_lea.sflag [#allocation5], %s323
          %s325 = sand.u32 %s117, 1
          %s326 = smul.addr %s325, 640
          %s327 = scalar_lea.vmem [#allocation9], %s326
          %s329 = ssub.s32 10240, 10240
          %330 = vsyncadd %s324, %s329
          %s331 = smul.addr %s25, 160
          %s332 = smul.addr %s331, 64
          %s333 = scalar_lea.hbm %s3, %s332
          %s334 = sshll.u32 %s327, 4
          %s335 = int_to_ptr.vmem [resolvable:$true] %s334
          %340 = dma.hbm_to_vmem [thread:$0]  %s333, 10240, %s335, %s324, 640, 640, 40
        $region40: #{tpu_custom_call.1} parent=35 // pred_fallthru
          _
        // Predicated region
        $region41: #{tpu_custom_call.1} parent=35 // pred_check
          %p341 = pneg %p153
        $region42: #{tpu_custom_call.1} parent=35 // pred_check_branch
          %343 = sbr.rel (%p341) target = $region44
        $region43: #{tpu_custom_call.1} parent=35 // pred_region
          %s344 = sand.u32 %s17, 1
          %s345 = scalar_lea.sflag [#allocation5], %s344
          %s346 = sand.u32 %s143, 1
          %s347 = smul.addr %s346, 128
          %s348 = scalar_lea.vmem [#allocation10], %s347
          %s350 = ssub.s32 2048, 2048
          %351 = vsyncadd %s345, %s350
          %s352 = smul.addr %s25, 32
          %s353 = smul.addr %s352, 64
          %s354 = scalar_lea.hbm %s4, %s353
          %s355 = sshll.u32 %s348, 4
          %s356 = int_to_ptr.vmem [resolvable:$true] %s355
          %361 = dma.hbm_to_vmem [thread:$0]  %s354, 2048, %s356, %s345, 64, 64, 4
        $region44: #{tpu_custom_call.1} parent=35 // pred_fallthru
          _
        // Predicated region
        $region45: #{tpu_custom_call.1} parent=35 // pred_check
          %p362 = pneg %p179
        $region46: #{tpu_custom_call.1} parent=35 // pred_check_branch
          %364 = sbr.rel (%p362) target = $region48
        $region47: #{tpu_custom_call.1} parent=35 // pred_region
          %p365 = scmp.lt.s32.totalorder %s25, 1
          %s366 = scalar_select %p365, %s25, 1
          %s367 = smul.addr %s366, 6
          %s368 = smul.addr %s367, 8
          %s369 = scalar_lea.vmem %s5, %s368
        $region48: #{tpu_custom_call.1} parent=35 // pred_fallthru
          _
      $region36: #{tpu_custom_call.1} parent=5 // pred_fallthru
        _
      %p370 = scmp.le.s32.totalorder 1, %s17
      %p371 = scmp.lt.s32.totalorder %s17, 3
      %p372 = pnand %p370, %p371
      %p373 = pneg %p372
      // Predicated region
      $region49: #{tpu_custom_call.1} parent=5 // pred_check
        _
      $region50: #{tpu_custom_call.1} parent=5 // pred_check_branch
        %375 = sbr.rel (%p372) target = $region52
      $region51: #{tpu_custom_call.1} parent=5 // pred_region
        %s376 = ssub.s32 %s17, 1
        // Predicated region
        $region53: #{tpu_custom_call.1} parent=51 // pred_check
          %p377 = pneg %p81
        $region54: #{tpu_custom_call.1} parent=51 // pred_check_branch
          %379 = sbr.rel (%p377) target = $region56
        $region55: #{tpu_custom_call.1} parent=51 // pred_region
          %380 = dma.done [#allocation5], 512
        $region56: #{tpu_custom_call.1} parent=51 // pred_fallthru
          _
        // Predicated region
        $region57: #{tpu_custom_call.1} parent=51 // pred_check
          %p381 = pneg %p107
        $region58: #{tpu_custom_call.1} parent=51 // pred_check_branch
          %383 = sbr.rel (%p381) target = $region60
        $region59: #{tpu_custom_call.1} parent=51 // pred_region
          %384 = dma.done [#allocation8], 512
        $region60: #{tpu_custom_call.1} parent=51 // pred_fallthru
          _
        %s385 = sand.u32 %s22, 1
        %s386 = scalar_lea.sflag [#allocation5], %s385
        %s387 = sand.u32 %s120, 1
        %s388 = smul.addr %s387, 640
        %s389 = scalar_lea.vmem [#allocation9], %s388
        // Predicated region
        $region61: #{tpu_custom_call.1} parent=51 // pred_check
          %p390 = pneg %p133
        $region62: #{tpu_custom_call.1} parent=51 // pred_check_branch
          %392 = sbr.rel (%p390) target = $region64
        $region63: #{tpu_custom_call.1} parent=51 // pred_region
          %393 = dma.done %s386, 10240
        $region64: #{tpu_custom_call.1} parent=51 // pred_fallthru
          _
        %s394 = sand.u32 %s22, 1
        %s395 = scalar_lea.sflag [#allocation5], %s394
        %s396 = sand.u32 %s146, 1
        %s397 = smul.addr %s396, 128
        %s398 = scalar_lea.vmem [#allocation10], %s397
        // Predicated region
        $region65: #{tpu_custom_call.1} parent=51 // pred_check
          %p399 = pneg %p159
        $region66: #{tpu_custom_call.1} parent=51 // pred_check_branch
          %401 = sbr.rel (%p399) target = $region68
        $region67: #{tpu_custom_call.1} parent=51 // pred_region
          %402 = dma.done %s395, 2048
        $region68: #{tpu_custom_call.1} parent=51 // pred_fallthru
          _
        %s403 = smul.u32 4, %s26
        %p404 = scmp.lt.s32.totalorder %s403, 3
        %s405 = scalar_select %p404, %s403, 3
        %s406 = smul.addr %s405, 8
        %s407 = scalar_lea.vmem %s0, %s406
        %p408 = pneg %p55
        %p409 = pneg %p52
        %p410 = pneg %p81
        %p411 = pneg %p78
        %p412 = pneg %p107
        %p413 = pneg %p104
        %s414 = sand.u32 %s22, 1
        %s415 = scalar_lea.sflag [#allocation5], %s414
        %s416 = sand.u32 %s120, 1
        %s417 = smul.addr %s416, 640
        %s418 = scalar_lea.vmem [#allocation9], %s417
        %p419 = pneg %p133
        %p420 = pneg %p130
        %s421 = sand.u32 %s22, 1
        %s422 = scalar_lea.sflag [#allocation5], %s421
        %s423 = sand.u32 %s146, 1
        %s424 = smul.addr %s423, 128
        %s425 = scalar_lea.vmem [#allocation10], %s424
        %p426 = pneg %p159
        %p427 = pneg %p156
        %p428 = scmp.lt.s32.totalorder %s27, 1
        %s429 = scalar_select %p428, %s27, 1
        %s430 = smul.addr %s429, 6
        %s431 = smul.addr %s430, 8
        %s432 = scalar_lea.vmem %s5, %s431
        %p433 = pneg %p185
        %p434 = pneg %p182
        %p435 = pneg %p206
        %p436 = pneg %p203
        %p437 = pneg %p227
        %p438 = pneg %p224
        %p439 = pneg %p253
        %p440 = pneg %p250
        %s441 = smul.u32 4, %s26
        %p442 = scmp.lt.s32.totalorder %s441, 3
        %s443 = scalar_select %p442, %s441, 3
        %s444 = smul.addr %s443, 8
        %s445 = scalar_lea.vmem %s0, %s444
        %s446 = smul.u32 4, %s26
        %s447 = smul.u32 4, %s26
        %s448 = smul.u32 2, %s26
        %p449 = scmp.lt.s32.totalorder %s27, 1
        %s450 = scalar_select %p449, %s27, 1
        %s451 = smul.addr %s450, 6
        %s452 = smul.addr %s451, 8
        %s453 = scalar_lea.vmem %s5, %s452
        %s454 = smul.u32 4, %s26
        %p456 = scmp.eq.s32.totalorder %s27, 0
        // Predicated region
        $region69: #{tpu_custom_call.1} parent=51 // pred_check
          %p457 = pneg %p456
        $region70: #{tpu_custom_call.1} parent=51 // pred_check_branch
          %459 = sbr.rel (%p457) target = $region72
        $region71: #{tpu_custom_call.1} parent=51 // pred_region
          %v460 = vld [vmem:[%s445] sm:$0xff]
          %v461 = vld [vmem:[%s445 + $0x8] sm:$0xff]
          %v462 = vld [vmem:[%s445 + $0x10] sm:$0xff]
          %v463 = vld [vmem:[%s445 + $0x18] sm:$0xff]
          %464 = vst [vmem:[#allocation2] sm:$0xff] %v460
          %465 = vst [vmem:[#allocation2 + $0x8] sm:$0xff] %v461
          %466 = vst [vmem:[#allocation2 + $0x10] sm:$0xff] %v462
          %467 = vst [vmem:[#allocation2 + $0x18] sm:$0xff] %v463
        $region72: #{tpu_custom_call.1} parent=51 // pred_fallthru
          _
        %v468 = vld [vmem:[#allocation2] sm:$0xff]
        %v469 = vld [vmem:[#allocation2 + $0x8] sm:$0xff]
        %v470 = vld [vmem:[#allocation2 + $0x10] sm:$0xff]
        %v471 = vld [vmem:[#allocation2 + $0x18] sm:$0xff]
        %v472 = vld [vmem:[#allocation7] sm:$0xff]
        %v473 = vld [vmem:[#allocation7 + $0x8] sm:$0xff]
        %v474 = vld [vmem:[#allocation7 + $0x10] sm:$0xff]
        %v475 = vld [vmem:[#allocation7 + $0x18] sm:$0xff]
        %v476 = vld [vmem:[%s453] sm:$0xff]
        %v477 = vld [vmem:[%s453 + $0x8] sm:$0xff]
        %v478 = vld [vmem:[%s453 + $0x10] sm:$0xff]
        %v479 = vld [vmem:[%s453 + $0x18] sm:$0xf]
        %v480 = vld [vmem:[%s389] sm:$0xff]
        %v481 = vld [vmem:[%s389 + $0x8] sm:$0xf]
        %v482 = vld [vmem:[%s389 + $0x28] sm:$0xff]
        %v483 = vld [vmem:[%s389 + $0x30] sm:$0xf]
        %v484 = vld [vmem:[%s389 + $0x50] sm:$0xff]
        %v485 = vld [vmem:[%s389 + $0x58] sm:$0xf]
        %v486 = vld [vmem:[%s389 + $0x78] sm:$0xff]
        %v487 = vld [vmem:[%s389 + $0x80] sm:$0xf]
        %v488 = vld [vmem:[%s389 + $0xa0] sm:$0xff]
        %v489 = vld [vmem:[%s389 + $0xa8] sm:$0xf]
        %v490 = vld [vmem:[%s389 + $0xc8] sm:$0xff]
        %v491 = vld [vmem:[%s389 + $0xd0] sm:$0xf]
        %v492 = vld [vmem:[%s389 + $0xf0] sm:$0xff]
        %v493 = vld [vmem:[%s389 + $0xf8] sm:$0xf]
        %v494 = vld [vmem:[%s389 + $0x118] sm:$0xff]
        %v495 = vld [vmem:[%s389 + $0x120] sm:$0xf]
        %v496 = vld [vmem:[%s389 + $0x140] sm:$0xff]
        %v497 = vld [vmem:[%s389 + $0x148] sm:$0xf]
        %v498 = vld [vmem:[%s389 + $0x168] sm:$0xff]
        %v499 = vld [vmem:[%s389 + $0x170] sm:$0xf]
        %v500 = vld [vmem:[%s389 + $0x190] sm:$0xff]
        %v501 = vld [vmem:[%s389 + $0x198] sm:$0xf]
        %v502 = vld [vmem:[%s389 + $0x1b8] sm:$0xff]
        %v503 = vld [vmem:[%s389 + $0x1c0] sm:$0xf]
        %v504 = vld [vmem:[%s389 + $0x1e0] sm:$0xff]
        %v505 = vld [vmem:[%s389 + $0x1e8] sm:$0xf]
        %v506 = vld [vmem:[%s389 + $0x208] sm:$0xff]
        %v507 = vld [vmem:[%s389 + $0x210] sm:$0xf]
        %v508 = vld [vmem:[%s389 + $0x230] sm:$0xff]
        %v509 = vld [vmem:[%s389 + $0x238] sm:$0xf]
        %v510 = vld [vmem:[%s389 + $0x258] sm:$0xff]
        %v511 = vld [vmem:[%s389 + $0x260] sm:$0xf]
        %v512 = vpack.c.bf16 %v469, %v468
        %v513 = vpack.c.bf16 %v471, %v470
        %v514 = vlaneseq
        %v515 = vshrl.u32 %v514, 7
        %v516 = vsub.s32 0, %v515
        %v517 = vrot.slane %v476, %v516
        %v518 = vlaneseq
        %v519 = vshrl.u32 %v518, 7
        %v520 = vsub.s32 0, %v519
        %v521 = vrot.slane %v477, %v520
        %v522 = vlaneseq
        %v523 = vshrl.u32 %v522, 7
        %v524 = vsub.s32 0, %v523
        %v525 = vrot.slane %v478, %v524
        %v558 = vunpack.c.l.b16 %v480
        %v559 = vunpack.c.h.b16 %v480
        %v560 = vunpack.c.l.b16 %v481
        %v561 = vunpack.c.l.b16 %v482
        %v562 = vunpack.c.h.b16 %v482
        %v563 = vunpack.c.l.b16 %v483
        %v564 = vunpack.c.l.b16 %v484
        %v565 = vunpack.c.h.b16 %v484
        %v566 = vunpack.c.l.b16 %v485
        %v567 = vunpack.c.l.b16 %v486
        %v568 = vunpack.c.h.b16 %v486
        %v569 = vunpack.c.l.b16 %v487
        %v570 = vunpack.c.l.b16 %v488
        %v571 = vunpack.c.h.b16 %v488
        %v572 = vunpack.c.l.b16 %v489
        %v573 = vunpack.c.l.b16 %v490
        %v574 = vunpack.c.h.b16 %v490
        %v575 = vunpack.c.l.b16 %v491
        %v576 = vunpack.c.l.b16 %v492
        %v577 = vunpack.c.h.b16 %v492
        %v578 = vunpack.c.l.b16 %v493
        %v579 = vunpack.c.l.b16 %v494
        %v580 = vunpack.c.h.b16 %v494
        %v581 = vunpack.c.l.b16 %v495
        %v582 = vunpack.c.l.b16 %v496
        %v583 = vunpack.c.h.b16 %v496
        %v584 = vunpack.c.l.b16 %v497
        %v585 = vunpack.c.l.b16 %v498
        %v586 = vunpack.c.h.b16 %v498
        %v587 = vunpack.c.l.b16 %v499
        %v588 = vunpack.c.l.b16 %v500
        %v589 = vunpack.c.h.b16 %v500
        %v590 = vunpack.c.l.b16 %v501
        %v591 = vunpack.c.l.b16 %v502
        %v592 = vunpack.c.h.b16 %v502
        %v593 = vunpack.c.l.b16 %v503
        %v594 = vunpack.c.l.b16 %v504
        %v595 = vunpack.c.h.b16 %v504
        %v596 = vunpack.c.l.b16 %v505
        %v597 = vunpack.c.l.b16 %v506
        %v598 = vunpack.c.h.b16 %v506
        %v599 = vunpack.c.l.b16 %v507
        %v600 = vunpack.c.l.b16 %v508
        %v601 = vunpack.c.h.b16 %v508
        %v602 = vunpack.c.l.b16 %v509
        %v603 = vunpack.c.l.b16 %v510
        %v604 = vunpack.c.h.b16 %v510
        %v605 = vunpack.c.l.b16 %v511
        %v606 = vpack.c.b16 %v561, %v558
        %v607 = vpack.c.b16 %v562, %v559
        %v608 = vpack.c.b16 %v563, %v560
        %v609 = vpack.c.b16 %v567, %v564
        %v610 = vpack.c.b16 %v568, %v565
        %v611 = vpack.c.b16 %v569, %v566
        %v612 = vpack.c.b16 %v573, %v570
        %v613 = vpack.c.b16 %v574, %v571
        %v614 = vpack.c.b16 %v575, %v572
        %v615 = vpack.c.b16 %v579, %v576
        %v616 = vpack.c.b16 %v580, %v577
        %v617 = vpack.c.b16 %v581, %v578
        %v618 = vpack.c.b16 %v585, %v582
        %v619 = vpack.c.b16 %v586, %v583
        %v620 = vpack.c.b16 %v587, %v584
        %v621 = vpack.c.b16 %v591, %v588
        %v622 = vpack.c.b16 %v592, %v589
        %v623 = vpack.c.b16 %v593, %v590
        %v624 = vpack.c.b16 %v597, %v594
        %v625 = vpack.c.b16 %v598, %v595
        %v626 = vpack.c.b16 %v599, %v596
        %v627 = vpack.c.b16 %v603, %v600
        %v628 = vpack.c.b16 %v604, %v601
        %v629 = vpack.c.b16 %v605, %v602
        %654 = vmatprep.subr.bf16.mxu0 %v607
        %655 = vmatpush1.bf16.msra.mxu0 %v606
        %656 = vmatprep.subr.bf16.mxu0 %v610
        %657 = vmatpush1.bf16.msra.mxu0 %v609
        %658 = vmatprep.subr.bf16.mxu0 %v613
        %659 = vmatpush1.bf16.msra.mxu0 %v612
        %660 = vmatprep.subr.bf16.mxu0 %v616
        %661 = vmatpush1.bf16.msra.mxu0 %v615
        %662 = vmatprep.subr.bf16.mxu0 %v619
        %663 = vmatpush1.bf16.msra.mxu0 %v618
        %664 = vmatprep.subr.bf16.mxu0 %v622
        %665 = vmatpush1.bf16.msra.mxu0 %v621
        %666 = vmatprep.subr.bf16.mxu0 %v625
        %667 = vmatpush1.bf16.msra.mxu0 %v624
        %668 = vmatprep.subr.bf16.mxu0 %v628
        %669 = vmatpush1.bf16.msra.mxu0 %v627
        %670 = vmatprep.subr.bf16.mxu0 0
        %671 = vmatpush1.bf16.msra.mxu0 0
        %672 = vmatprep.subr.bf16.mxu0 0
        %673 = vmatpush1.bf16.msra.mxu0 0
        %674 = vmatprep.subr.bf16.mxu0 0
        %675 = vmatpush1.bf16.msra.mxu0 0
        %676 = vmatprep.subr.bf16.mxu0 0
        %677 = vmatpush1.bf16.msra.mxu0 0
        %678 = vmatprep.subr.bf16.mxu0 0
        %679 = vmatpush1.bf16.msra.mxu0 0
        %680 = vmatprep.subr.bf16.mxu0 0
        %681 = vmatpush1.bf16.msra.mxu0 0
        %682 = vmatprep.subr.bf16.mxu0 0
        %683 = vmatpush1.bf16.msra.mxu0 0
        %684 = vmatprep.subr.bf16.mxu0 0
        %685 = vmatpush1.bf16.msra.mxu0 0
        %686 = vmatprep.mubr.bf16.mxu0 0
        %687 = vmatmul.mubr.bf16.gmra.mrb[0].mxu0 %v512
        %v688 = vpop.f32.mrb[0].mxu0
        %v689 = vadd.f32 %v517, %v688
        %v690 = vpop.f32.mrb[0].mxu0
        %v691 = vadd.f32 %v521, %v690
        %v692 = vpop.f32.mrb[0].mxu0
        %v693 = vadd.f32 %v517, %v692
        %v694 = vpop.f32.mrb[0].mxu0
        %v695 = vadd.f32 %v521, %v694
        %696 = vmatprep.mubr.bf16.mxu0 0
        %697 = vmatmul.mubr.bf16.gmra.mrb[0].mxu0 %v513
        %v698 = vpop.f32.mrb[0].mxu0
        %v699 = vadd.f32 %v517, %v698
        %v700 = vpop.f32.mrb[0].mxu0
        %v701 = vadd.f32 %v521, %v700
        %v702 = vpop.f32.mrb[0].mxu0
        %v703 = vadd.f32 %v517, %v702
        %v704 = vpop.f32.mrb[0].mxu0
        %v705 = vadd.f32 %v521, %v704
        %706 = vdwg.mxu0
        %707 = vmatprep.subr.bf16.mxu0 0
        %708 = vmatpush1.bf16.msra.mxu0 %v608
        %709 = vmatprep.subr.bf16.mxu0 0
        %710 = vmatpush1.bf16.msra.mxu0 %v611
        %711 = vmatprep.subr.bf16.mxu0 0
        %712 = vmatpush1.bf16.msra.mxu0 %v614
        %713 = vmatprep.subr.bf16.mxu0 0
        %714 = vmatpush1.bf16.msra.mxu0 %v617
        %715 = vmatprep.subr.bf16.mxu0 0
        %716 = vmatpush1.bf16.msra.mxu0 %v620
        %717 = vmatprep.subr.bf16.mxu0 0
        %718 = vmatpush1.bf16.msra.mxu0 %v623
        %719 = vmatprep.subr.bf16.mxu0 0
        %720 = vmatpush1.bf16.msra.mxu0 %v626
        %721 = vmatprep.subr.bf16.mxu0 0
        %722 = vmatpush1.bf16.msra.mxu0 %v629
        %723 = vmatprep.subr.bf16.mxu0 0
        %724 = vmatpush1.bf16.msra.mxu0 0
        %725 = vmatprep.subr.bf16.mxu0 0
        %726 = vmatpush1.bf16.msra.mxu0 0
        %727 = vmatprep.subr.bf16.mxu0 0
        %728 = vmatpush1.bf16.msra.mxu0 0
        %729 = vmatprep.subr.bf16.mxu0 0
        %730 = vmatpush1.bf16.msra.mxu0 0
        %731 = vmatprep.subr.bf16.mxu0 0
        %732 = vmatpush1.bf16.msra.mxu0 0
        %733 = vmatprep.subr.bf16.mxu0 0
        %734 = vmatpush1.bf16.msra.mxu0 0
        %735 = vmatprep.subr.bf16.mxu0 0
        %736 = vmatpush1.bf16.msra.mxu0 0
        %737 = vmatprep.subr.bf16.mxu0 0
        %738 = vmatpush1.bf16.msra.mxu0 0
        %739 = vmatprep.mubr.bf16.mxu0 0
        %740 = vmatmul.mubr.bf16.gmra.mrb[0].mxu0 %v512
        %v741 = vpop.f32.mrb[0].mxu0
        %v742 = vadd.f32 %v525, %v741
        %v743 = vpop.f32.mrb[0].mxu0
        %v744 = vpop.f32.mrb[0].mxu0
        %v745 = vadd.f32 %v525, %v744
        %v746 = vpop.f32.mrb[0].mxu0
        %747 = vmatprep.mubr.bf16.mxu0 0
        %748 = vmatmul.mubr.bf16.gmra.mrb[0].mxu0 %v513
        %v749 = vpop.f32.mrb[0].mxu0
        %v750 = vadd.f32 %v525, %v749
        %v751 = vpop.f32.mrb[0].mxu0
        %v752 = vpop.f32.mrb[0].mxu0
        %v753 = vadd.f32 %v525, %v752
        %v754 = vpop.f32.mrb[0].mxu0
        %755 = vdwg.mxu0
        %v756 = vmul.f32 %v689, 0.17677669
        %v757 = vmul.f32 %v693, 0.17677669
        %v758 = vmul.f32 %v699, 0.17677669
        %v759 = vmul.f32 %v703, 0.17677669
        %v760 = vld [vmem:[%s389 + $0x18] sm:$0xf]
        %v761 = vld [vmem:[%s389 + $0x40] sm:$0xf]
        %v762 = vld [vmem:[%s389 + $0x68] sm:$0xf]
        %v763 = vld [vmem:[%s389 + $0x90] sm:$0xf]
        %v764 = vld [vmem:[%s389 + $0xb8] sm:$0xf]
        %v765 = vld [vmem:[%s389 + $0xe0] sm:$0xf]
        %v766 = vld [vmem:[%s389 + $0x108] sm:$0xf]
        %v767 = vld [vmem:[%s389 + $0x130] sm:$0xf]
        %v768 = vld [vmem:[%s389 + $0x158] sm:$0xf]
        %v769 = vld [vmem:[%s389 + $0x180] sm:$0xf]
        %v770 = vld [vmem:[%s389 + $0x1a8] sm:$0xf]
        %v771 = vld [vmem:[%s389 + $0x1d0] sm:$0xf]
        %v772 = vld [vmem:[%s389 + $0x1f8] sm:$0xf]
        %v773 = vld [vmem:[%s389 + $0x220] sm:$0xf]
        %v774 = vld [vmem:[%s389 + $0x248] sm:$0xf]
        %v775 = vld [vmem:[%s389 + $0x270] sm:$0xf]
        %v776 = vpack.c.bf16 %v757, %v756
        %v777 = vpack.c.bf16 %v759, %v758
        %v778 = vpack.c.bf16 %v695, %v691
        %v779 = vpack.c.bf16 %v705, %v701
        %vm780 = vcmask 261120
        %v782 = vsel %vm780, %v776, 0
        %v785 = vsel %vm780, %v778, 0
        %787 = vmatprep.subr.bf16.mxu0 0
        %788 = vmatpush1.bf16.xpose.msra.mxu0 %v785
        %789 = vmatprep.subr.bf16.mxu0 0
        %790 = vmatpush1.bf16.xpose.msra.mxu0 0
        %791 = vmatprep.subr.bf16.mxu0 0
        %792 = vmatpush1.bf16.xpose.msra.mxu0 0
        %793 = vmatprep.subr.bf16.mxu0 0
        %794 = vmatpush1.bf16.xpose.msra.mxu0 0
        %795 = vmatprep.subr.bf16.mxu0 0
        %796 = vmatpush1.bf16.xpose.msra.mxu0 0
        %797 = vmatprep.subr.bf16.mxu0 0
        %798 = vmatpush1.bf16.xpose.msra.mxu0 0
        %799 = vmatprep.subr.bf16.mxu0 0
        %800 = vmatpush1.bf16.xpose.msra.mxu0 0
        %801 = vmatprep.subr.bf16.mxu0 0
        %802 = vmatpush1.bf16.xpose.msra.mxu0 0
        %803 = vmatprep.subr.bf16.mxu0 0
        %804 = vmatpush1.bf16.xpose.msra.mxu0 0
        %805 = vmatprep.subr.bf16.mxu0 0
        %806 = vmatpush1.bf16.xpose.msra.mxu0 0
        %807 = vmatprep.subr.bf16.mxu0 0
        %808 = vmatpush1.bf16.xpose.msra.mxu0 0
        %809 = vmatprep.subr.bf16.mxu0 0
        %810 = vmatpush1.bf16.xpose.msra.mxu0 0
        %811 = vmatprep.subr.bf16.mxu0 0
        %812 = vmatpush1.bf16.xpose.msra.mxu0 0
        %813 = vmatprep.subr.bf16.mxu0 0
        %814 = vmatpush1.bf16.xpose.msra.mxu0 0
        %815 = vmatprep.subr.bf16.mxu0 0
        %816 = vmatpush1.bf16.xpose.msra.mxu0 0
        %817 = vmatprep.subr.bf16.mxu0 0
        %818 = vmatpush1.bf16.xpose.msra.mxu0 0
        %819 = vmatprep.mubr.bf16.mxu0 0
        %820 = vmatmul.mubr.bf16.gmra.mrb[0].mxu0 %v782
        %v821 = vpop.f32.mrb[0].mxu0
        %v822 = vadd.f32 %v472, %v821
        %v823 = vpop.f32.mrb[0].mxu0
        %v824 = vpop.f32.mrb[0].mxu0
        %v825 = vadd.f32 %v473, %v824
        %v826 = vpop.f32.mrb[0].mxu0
        %827 = vdwg.mxu0
        %v829 = vsel %vm780, %v777, 0
        %v832 = vsel %vm780, %v779, 0
        %834 = vmatprep.subr.bf16.mxu0 0
        %835 = vmatpush1.bf16.xpose.msra.mxu0 %v832
        %836 = vmatprep.subr.bf16.mxu0 0
        %837 = vmatpush1.bf16.xpose.msra.mxu0 0
        %838 = vmatprep.subr.bf16.mxu0 0
        %839 = vmatpush1.bf16.xpose.msra.mxu0 0
        %840 = vmatprep.subr.bf16.mxu0 0
        %841 = vmatpush1.bf16.xpose.msra.mxu0 0
        %842 = vmatprep.subr.bf16.mxu0 0
        %843 = vmatpush1.bf16.xpose.msra.mxu0 0
        %844 = vmatprep.subr.bf16.mxu0 0
        %845 = vmatpush1.bf16.xpose.msra.mxu0 0
        %846 = vmatprep.subr.bf16.mxu0 0
        %847 = vmatpush1.bf16.xpose.msra.mxu0 0
        %848 = vmatprep.subr.bf16.mxu0 0
        %849 = vmatpush1.bf16.xpose.msra.mxu0 0
        %850 = vmatprep.subr.bf16.mxu0 0
        %851 = vmatpush1.bf16.xpose.msra.mxu0 0
        %852 = vmatprep.subr.bf16.mxu0 0
        %853 = vmatpush1.bf16.xpose.msra.mxu0 0
        %854 = vmatprep.subr.bf16.mxu0 0
        %855 = vmatpush1.bf16.xpose.msra.mxu0 0
        %856 = vmatprep.subr.bf16.mxu0 0
        %857 = vmatpush1.bf16.xpose.msra.mxu0 0
        %858 = vmatprep.subr.bf16.mxu0 0
        %859 = vmatpush1.bf16.xpose.msra.mxu0 0
        %860 = vmatprep.subr.bf16.mxu0 0
        %861 = vmatpush1.bf16.xpose.msra.mxu0 0
        %862 = vmatprep.subr.bf16.mxu0 0
        %863 = vmatpush1.bf16.xpose.msra.mxu0 0
        %864 = vmatprep.subr.bf16.mxu0 0
        %865 = vmatpush1.bf16.xpose.msra.mxu0 0
        %866 = vmatprep.mubr.bf16.mxu0 0
        %867 = vmatmul.mubr.bf16.gmra.mrb[0].mxu0 %v829
        %v868 = vpop.f32.mrb[0].mxu0
        %v869 = vadd.f32 %v474, %v868
        %v870 = vpop.f32.mrb[0].mxu0
        %v871 = vpop.f32.mrb[0].mxu0
        %v872 = vadd.f32 %v475, %v871
        %v873 = vpop.f32.mrb[0].mxu0
        %874 = vdwg.mxu0
        %vm875 = vcmask 130048
        %v876 = vsel %vm875, %v822, -inf
        %877 = vmax.xlane.f32.xlu0 %v876
        %v878 = vpop.xlane.xlu0 %877
        %v879 = vsel %vm875, %v825, -inf
        %880 = vmax.xlane.f32.xlu0 %v879
        %v881 = vpop.xlane.xlu0 %880
        %v882 = vsel %vm875, %v869, -inf
        %883 = vmax.xlane.f32.xlu0 %v882
        %v884 = vpop.xlane.xlu0 %883
        %v885 = vsel %vm875, %v872, -inf
        %886 = vmax.xlane.f32.xlu0 %v885
        %v887 = vpop.xlane.xlu0 %886
        %v888 = vsub.f32 %v822, %v878
        %v889 = vsub.f32 %v825, %v881
        %v890 = vsub.f32 %v869, %v884
        %v891 = vsub.f32 %v872, %v887
        %v892 = vmul.f32 %v888, 1.442695
        %v893 = vpow.pop %v892
        %v894 = vmul.f32 %v889, 1.442695
        %v895 = vpow.pop %v894
        %v896 = vmul.f32 %v890, 1.442695
        %v897 = vpow.pop %v896
        %v898 = vmul.f32 %v891, 1.442695
        %v899 = vpow.pop %v898
        %v900 = vsel %vm875, %v893, 0.0
        %901 = vadd.xlane.f32.xlu0 %v900
        %v902 = vpop.xlane.xlu0 %901
        %v903 = vsel %vm875, %v895, 0.0
        %904 = vadd.xlane.f32.xlu0 %v903
        %v905 = vpop.xlane.xlu0 %904
        %v906 = vsel %vm875, %v897, 0.0
        %907 = vadd.xlane.f32.xlu0 %v906
        %v908 = vpop.xlane.xlu0 %907
        %v909 = vsel %vm875, %v899, 0.0
        %910 = vadd.xlane.f32.xlu0 %v909
        %v911 = vpop.xlane.xlu0 %910
        %v912 = vrcp.pop %v902
        %v913 = vrcp.pop %v905
        %v914 = vrcp.pop %v908
        %v915 = vrcp.pop %v911
        %v916 = vmul.f32 %v893, %v912
        %v917 = vmul.f32 %v895, %v913
        %v918 = vmul.f32 %v897, %v914
        %v919 = vmul.f32 %v899, %v915
        %v920 = vpack.c.bf16 %v917, %v916
        %v921 = vpack.c.bf16 %v919, %v918
        %v922 = vpack.c.bf16 %v745, %v742
        %v923 = vpack.c.bf16 %v753, %v750
        %v925 = vsel %vm875, %v920, 0
        %927 = vmatprep.subr.bf16.mxu0 0
        %928 = vmatpush1.bf16.msra.mxu0 %v922
        %929 = vmatprep.subr.bf16.mxu0 0
        %930 = vmatpush1.bf16.msra.mxu0 0
        %931 = vmatprep.subr.bf16.mxu0 0
        %932 = vmatpush1.bf16.msra.mxu0 0
        %933 = vmatprep.subr.bf16.mxu0 0
        %934 = vmatpush1.bf16.msra.mxu0 0
        %935 = vmatprep.subr.bf16.mxu0 0
        %936 = vmatpush1.bf16.msra.mxu0 0
        %937 = vmatprep.subr.bf16.mxu0 0
        %938 = vmatpush1.bf16.msra.mxu0 0
        %939 = vmatprep.subr.bf16.mxu0 0
        %940 = vmatpush1.bf16.msra.mxu0 0
        %941 = vmatprep.subr.bf16.mxu0 0
        %942 = vmatpush1.bf16.msra.mxu0 0
        %943 = vmatprep.subr.bf16.mxu0 0
        %944 = vmatpush1.bf16.msra.mxu0 0
        %945 = vmatprep.subr.bf16.mxu0 0
        %946 = vmatpush1.bf16.msra.mxu0 0
        %947 = vmatprep.subr.bf16.mxu0 0
        %948 = vmatpush1.bf16.msra.mxu0 0
        %949 = vmatprep.subr.bf16.mxu0 0
        %950 = vmatpush1.bf16.msra.mxu0 0
        %951 = vmatprep.subr.bf16.mxu0 0
        %952 = vmatpush1.bf16.msra.mxu0 0
        %953 = vmatprep.subr.bf16.mxu0 0
        %954 = vmatpush1.bf16.msra.mxu0 0
        %955 = vmatprep.subr.bf16.mxu0 0
        %956 = vmatpush1.bf16.msra.mxu0 0
        %957 = vmatprep.subr.bf16.mxu0 0
        %958 = vmatpush1.bf16.msra.mxu0 0
        %959 = vmatprep.mubr.bf16.mxu0 0
        %960 = vmatmul.mubr.bf16.gmra.mrb[0].mxu0 %v925
        %v961 = vpop.f32.mrb[0].mxu0
        %v962 = vadd.f32 0.0, %v961
        %v963 = vpop.f32.mrb[0].mxu0
        %v964 = vpop.f32.mrb[0].mxu0
        %v965 = vadd.f32 0.0, %v964
        %v966 = vpop.f32.mrb[0].mxu0
        %967 = vdwg.mxu0
        %v969 = vsel %vm875, %v921, 0
        %971 = vmatprep.subr.bf16.mxu0 0
        %972 = vmatpush1.bf16.msra.mxu0 %v923
        %973 = vmatprep.subr.bf16.mxu0 0
        %974 = vmatpush1.bf16.msra.mxu0 0
        %975 = vmatprep.subr.bf16.mxu0 0
        %976 = vmatpush1.bf16.msra.mxu0 0
        %977 = vmatprep.subr.bf16.mxu0 0
        %978 = vmatpush1.bf16.msra.mxu0 0
        %979 = vmatprep.subr.bf16.mxu0 0
        %980 = vmatpush1.bf16.msra.mxu0 0
        %981 = vmatprep.subr.bf16.mxu0 0
        %982 = vmatpush1.bf16.msra.mxu0 0
        %983 = vmatprep.subr.bf16.mxu0 0
        %984 = vmatpush1.bf16.msra.mxu0 0
        %985 = vmatprep.subr.bf16.mxu0 0
        %986 = vmatpush1.bf16.msra.mxu0 0
        %987 = vmatprep.subr.bf16.mxu0 0
        %988 = vmatpush1.bf16.msra.mxu0 0
        %989 = vmatprep.subr.bf16.mxu0 0
        %990 = vmatpush1.bf16.msra.mxu0 0
        %991 = vmatprep.subr.bf16.mxu0 0
        %992 = vmatpush1.bf16.msra.mxu0 0
        %993 = vmatprep.subr.bf16.mxu0 0
        %994 = vmatpush1.bf16.msra.mxu0 0
        %995 = vmatprep.subr.bf16.mxu0 0
        %996 = vmatpush1.bf16.msra.mxu0 0
        %997 = vmatprep.subr.bf16.mxu0 0
        %998 = vmatpush1.bf16.msra.mxu0 0
        %999 = vmatprep.subr.bf16.mxu0 0
        %1000 = vmatpush1.bf16.msra.mxu0 0
        %1001 = vmatprep.subr.bf16.mxu0 0
        %1002 = vmatpush1.bf16.msra.mxu0 0
        %1003 = vmatprep.mubr.bf16.mxu0 0
        %1004 = vmatmul.mubr.bf16.gmra.mrb[0].mxu0 %v969
        %v1005 = vpop.f32.mrb[0].mxu0
        %v1006 = vadd.f32 0.0, %v1005
        %v1007 = vpop.f32.mrb[0].mxu0
        %v1008 = vpop.f32.mrb[0].mxu0
        %v1009 = vadd.f32 0.0, %v1008
        %v1010 = vpop.f32.mrb[0].mxu0
        %1011 = vdwg.mxu0
        %1012 = vst.msk [vmem:[#allocation3] sm:$0xff] %vm780, %v962
        %1013 = vst.msk [vmem:[#allocation3 + $0x8] sm:$0xff] %vm780, %v965
        %1014 = vst.msk [vmem:[#allocation3 + $0x10] sm:$0xff] %vm780, %v1006
        %1015 = vst.msk [vmem:[#allocation3 + $0x18] sm:$0xff] %vm780, %v1009
        %1017 = vrot.lane.b32.xlu0 %v776, 96
        %v1018 = vpop.permute.xlu0 %1017
        %1020 = vrot.lane.b32.xlu0 %v778, 96
        %v1021 = vpop.permute.xlu0 %1020
        %v1023 = vsel %vm780, %v1018, 0
        %v1026 = vsel %vm780, %v1021, 0
        %1028 = vmatprep.subr.bf16.mxu0 0
        %1029 = vmatpush1.bf16.xpose.msra.mxu0 %v1026
        %1030 = vmatprep.subr.bf16.mxu0 0
        %1031 = vmatpush1.bf16.xpose.msra.mxu0 0
        %1032 = vmatprep.subr.bf16.mxu0 0
        %1033 = vmatpush1.bf16.xpose.msra.mxu0 0
        %1034 = vmatprep.subr.bf16.mxu0 0
        %1035 = vmatpush1.bf16.xpose.msra.mxu0 0
        %1036 = vmatprep.subr.bf16.mxu0 0
        %1037 = vmatpush1.bf16.xpose.msra.mxu0 0
        %1038 = vmatprep.subr.bf16.mxu0 0
        %1039 = vmatpush1.bf16.xpose.msra.mxu0 0
        %1040 = vmatprep.subr.bf16.mxu0 0
        %1041 = vmatpush1.bf16.xpose.msra.mxu0 0
        %1042 = vmatprep.subr.bf16.mxu0 0
        %1043 = vmatpush1.bf16.xpose.msra.mxu0 0
        %1044 = vmatprep.subr.bf16.mxu0 0
        %1045 = vmatpush1.bf16.xpose.msra.mxu0 0
        %1046 = vmatprep.subr.bf16.mxu0 0
        %1047 = vmatpush1.bf16.xpose.msra.mxu0 0
        %1048 = vmatprep.subr.bf16.mxu0 0
        %1049 = vmatpush1.bf16.xpose.msra.mxu0 0
        %1050 = vmatprep.subr.bf16.mxu0 0
        %1051 = vmatpush1.bf16.xpose.msra.mxu0 0
        %1052 = vmatprep.subr.bf16.mxu0 0
        %1053 = vmatpush1.bf16.xpose.msra.mxu0 0
        %1054 = vmatprep.subr.bf16.mxu0 0
        %1055 = vmatpush1.bf16.xpose.msra.mxu0 0
        %1056 = vmatprep.subr.bf16.mxu0 0
        %1057 = vmatpush1.bf16.xpose.msra.mxu0 0
        %1058 = vmatprep.subr.bf16.mxu0 0
        %1059 = vmatpush1.bf16.xpose.msra.mxu0 0
        %1060 = vmatprep.mubr.bf16.mxu0 0
        %1061 = vmatmul.mubr.bf16.gmra.mrb[0].mxu0 %v1023
        %v1062 = vpop.f32.mrb[0].mxu0
        %v1063 = vadd.f32 %v472, %v1062
        %v1064 = vpop.f32.mrb[0].mxu0
        %v1065 = vpop.f32.mrb[0].mxu0
        %v1066 = vadd.f32 %v473, %v1065
        %v1067 = vpop.f32.mrb[0].mxu0
        %1068 = vdwg.mxu0
        %1070 = vrot.lane.b32.xlu0 %v777, 96
        %v1071 = vpop.permute.xlu0 %1070
        %1073 = vrot.lane.b32.xlu0 %v779, 96
        %v1074 = vpop.permute.xlu0 %1073
        %v1076 = vsel %vm780, %v1071, 0
        %v1079 = vsel %vm780, %v1074, 0
        %1081 = vmatprep.subr.bf16.mxu0 0
        %1082 = vmatpush1.bf16.xpose.msra.mxu0 %v1079
        %1083 = vmatprep.subr.bf16.mxu0 0
        %1084 = vmatpush1.bf16.xpose.msra.mxu0 0
        %1085 = vmatprep.subr.bf16.mxu0 0
        %1086 = vmatpush1.bf16.xpose.msra.mxu0 0
        %1087 = vmatprep.subr.bf16.mxu0 0
        %1088 = vmatpush1.bf16.xpose.msra.mxu0 0
        %1089 = vmatprep.subr.bf16.mxu0 0
        %1090 = vmatpush1.bf16.xpose.msra.mxu0 0
        %1091 = vmatprep.subr.bf16.mxu0 0
        %1092 = vmatpush1.bf16.xpose.msra.mxu0 0
        %1093 = vmatprep.subr.bf16.mxu0 0
        %1094 = vmatpush1.bf16.xpose.msra.mxu0 0
        %1095 = vmatprep.subr.bf16.mxu0 0
        %1096 = vmatpush1.bf16.xpose.msra.mxu0 0
        %1097 = vmatprep.subr.bf16.mxu0 0
        %1098 = vmatpush1.bf16.xpose.msra.mxu0 0
        %1099 = vmatprep.subr.bf16.mxu0 0
        %1100 = vmatpush1.bf16.xpose.msra.mxu0 0
        %1101 = vmatprep.subr.bf16.mxu0 0
        %1102 = vmatpush1.bf16.xpose.msra.mxu0 0
        %1103 = vmatprep.subr.bf16.mxu0 0
        %1104 = vmatpush1.bf16.xpose.msra.mxu0 0
        %1105 = vmatprep.subr.bf16.mxu0 0
        %1106 = vmatpush1.bf16.xpose.msra.mxu0 0
        %1107 = vmatprep.subr.bf16.mxu0 0
        %1108 = vmatpush1.bf16.xpose.msra.mxu0 0
        %1109 = vmatprep.subr.bf16.mxu0 0
        %1110 = vmatpush1.bf16.xpose.msra.mxu0 0
        %1111 = vmatprep.subr.bf16.mxu0 0
        %1112 = vmatpush1.bf16.xpose.msra.mxu0 0
        %1113 = vmatprep.mubr.bf16.mxu0 0
        %1114 = vmatmul.mubr.bf16.gmra.mrb[0].mxu0 %v1076
        %v1115 = vpop.f32.mrb[0].mxu0
        %v1116 = vadd.f32 %v474, %v1115
        %v1117 = vpop.f32.mrb[0].mxu0
        %v1118 = vpop.f32.mrb[0].mxu0
        %v1119 = vadd.f32 %v475, %v1118
        %v1120 = vpop.f32.mrb[0].mxu0
        %1121 = vdwg.mxu0
        %v1122 = vsel %vm875, %v1063, -inf
        %1123 = vmax.xlane.f32.xlu0 %v1122
        %v1124 = vpop.xlane.xlu0 %1123
        %v1125 = vsel %vm875, %v1066, -inf
        %1126 = vmax.xlane.f32.xlu0 %v1125
        %v1127 = vpop.xlane.xlu0 %1126
        %v1128 = vsel %vm875, %v1116, -inf
        %1129 = vmax.xlane.f32.xlu0 %v1128
        %v1130 = vpop.xlane.xlu0 %1129
        %v1131 = vsel %vm875, %v1119, -inf
        %1132 = vmax.xlane.f32.xlu0 %v1131
        %v1133 = vpop.xlane.xlu0 %1132
        %v1134 = vsub.f32 %v1063, %v1124
        %v1135 = vsub.f32 %v1066, %v1127
        %v1136 = vsub.f32 %v1116, %v1130
        %v1137 = vsub.f32 %v1119, %v1133
        %v1138 = vmul.f32 %v1134, 1.442695
        %v1139 = vpow.pop %v1138
        %v1140 = vmul.f32 %v1135, 1.442695
        %v1141 = vpow.pop %v1140
        %v1142 = vmul.f32 %v1136, 1.442695
        %v1143 = vpow.pop %v1142
        %v1144 = vmul.f32 %v1137, 1.442695
        %v1145 = vpow.pop %v1144
        %v1146 = vsel %vm875, %v1139, 0.0
        %1147 = vadd.xlane.f32.xlu0 %v1146
        %v1148 = vpop.xlane.xlu0 %1147
        %v1149 = vsel %vm875, %v1141, 0.0
        %1150 = vadd.xlane.f32.xlu0 %v1149
        %v1151 = vpop.xlane.xlu0 %1150
        %v1152 = vsel %vm875, %v1143, 0.0
        %1153 = vadd.xlane.f32.xlu0 %v1152
        %v1154 = vpop.xlane.xlu0 %1153
        %v1155 = vsel %vm875, %v1145, 0.0
        %1156 = vadd.xlane.f32.xlu0 %v1155
        %v1157 = vpop.xlane.xlu0 %1156
        %v1158 = vrcp.pop %v1148
        %v1159 = vrcp.pop %v1151
        %v1160 = vrcp.pop %v1154
        %v1161 = vrcp.pop %v1157
        %v1162 = vmul.f32 %v1139, %v1158
        %v1163 = vmul.f32 %v1141, %v1159
        %v1164 = vmul.f32 %v1143, %v1160
        %v1165 = vmul.f32 %v1145, %v1161
        %v1166 = vpack.c.bf16 %v1163, %v1162
        %v1167 = vpack.c.bf16 %v1165, %v1164
        %1169 = vrot.lane.b32.xlu0 %v922, 96
        %v1170 = vpop.permute.xlu0 %1169
        %v1173 = vsel %vm875, %v1166, 0
        %1175 = vmatprep.subr.bf16.mxu0 0
        %1176 = vmatpush1.bf16.msra.mxu0 %v1170
        %1177 = vmatprep.subr.bf16.mxu0 0
        %1178 = vmatpush1.bf16.msra.mxu0 0
        %1179 = vmatprep.subr.bf16.mxu0 0
        %1180 = vmatpush1.bf16.msra.mxu0 0
        %1181 = vmatprep.subr.bf16.mxu0 0
        %1182 = vmatpush1.bf16.msra.mxu0 0
        %1183 = vmatprep.subr.bf16.mxu0 0
        %1184 = vmatpush1.bf16.msra.mxu0 0
        %1185 = vmatprep.subr.bf16.mxu0 0
        %1186 = vmatpush1.bf16.msra.mxu0 0
        %1187 = vmatprep.subr.bf16.mxu0 0
        %1188 = vmatpush1.bf16.msra.mxu0 0
        %1189 = vmatprep.subr.bf16.mxu0 0
        %1190 = vmatpush1.bf16.msra.mxu0 0
        %1191 = vmatprep.subr.bf16.mxu0 0
        %1192 = vmatpush1.bf16.msra.mxu0 0
        %1193 = vmatprep.subr.bf16.mxu0 0
        %1194 = vmatpush1.bf16.msra.mxu0 0
        %1195 = vmatprep.subr.bf16.mxu0 0
        %1196 = vmatpush1.bf16.msra.mxu0 0
        %1197 = vmatprep.subr.bf16.mxu0 0
        %1198 = vmatpush1.bf16.msra.mxu0 0
        %1199 = vmatprep.subr.bf16.mxu0 0
        %1200 = vmatpush1.bf16.msra.mxu0 0
        %1201 = vmatprep.subr.bf16.mxu0 0
        %1202 = vmatpush1.bf16.msra.mxu0 0
        %1203 = vmatprep.subr.bf16.mxu0 0
        %1204 = vmatpush1.bf16.msra.mxu0 0
        %1205 = vmatprep.subr.bf16.mxu0 0
        %1206 = vmatpush1.bf16.msra.mxu0 0
        %1207 = vmatprep.mubr.bf16.mxu0 0
        %1208 = vmatmul.mubr.bf16.gmra.mrb[0].mxu0 %v1173
        %v1209 = vpop.f32.mrb[0].mxu0
        %v1210 = vadd.f32 0.0, %v1209
        %v1211 = vpop.f32.mrb[0].mxu0
        %v1212 = vpop.f32.mrb[0].mxu0
        %v1213 = vadd.f32 0.0, %v1212
        %v1214 = vpop.f32.mrb[0].mxu0
        %1215 = vdwg.mxu0
        %1217 = vrot.lane.b32.xlu0 %v923, 96
        %v1218 = vpop.permute.xlu0 %1217
        %v1221 = vsel %vm875, %v1167, 0
        %1223 = vmatprep.subr.bf16.mxu0 0
        %1224 = vmatpush1.bf16.msra.mxu0 %v1218
        %1225 = vmatprep.subr.bf16.mxu0 0
        %1226 = vmatpush1.bf16.msra.mxu0 0
        %1227 = vmatprep.subr.bf16.mxu0 0
        %1228 = vmatpush1.bf16.msra.mxu0 0
        %1229 = vmatprep.subr.bf16.mxu0 0
        %1230 = vmatpush1.bf16.msra.mxu0 0
        %1231 = vmatprep.subr.bf16.mxu0 0
        %1232 = vmatpush1.bf16.msra.mxu0 0
        %1233 = vmatprep.subr.bf16.mxu0 0
        %1234 = vmatpush1.bf16.msra.mxu0 0
        %1235 = vmatprep.subr.bf16.mxu0 0
        %1236 = vmatpush1.bf16.msra.mxu0 0
        %1237 = vmatprep.subr.bf16.mxu0 0
        %1238 = vmatpush1.bf16.msra.mxu0 0
        %1239 = vmatprep.subr.bf16.mxu0 0
        %1240 = vmatpush1.bf16.msra.mxu0 0
        %1241 = vmatprep.subr.bf16.mxu0 0
        %1242 = vmatpush1.bf16.msra.mxu0 0
        %1243 = vmatprep.subr.bf16.mxu0 0
        %1244 = vmatpush1.bf16.msra.mxu0 0
        %1245 = vmatprep.subr.bf16.mxu0 0
        %1246 = vmatpush1.bf16.msra.mxu0 0
        %1247 = vmatprep.subr.bf16.mxu0 0
        %1248 = vmatpush1.bf16.msra.mxu0 0
        %1249 = vmatprep.subr.bf16.mxu0 0
        %1250 = vmatpush1.bf16.msra.mxu0 0
        %1251 = vmatprep.subr.bf16.mxu0 0
        %1252 = vmatpush1.bf16.msra.mxu0 0
        %1253 = vmatprep.subr.bf16.mxu0 0
        %1254 = vmatpush1.bf16.msra.mxu0 0
        %1255 = vmatprep.mubr.bf16.mxu0 0
        %1256 = vmatmul.mubr.bf16.gmra.mrb[0].mxu0 %v1221
        %v1257 = vpop.f32.mrb[0].mxu0
        %v1258 = vadd.f32 0.0, %v1257
        %v1259 = vpop.f32.mrb[0].mxu0
        %v1260 = vpop.f32.mrb[0].mxu0
        %v1261 = vadd.f32 0.0, %v1260
        %v1262 = vpop.f32.mrb[0].mxu0
        %1263 = vdwg.mxu0
        %1268 = vrot.lane.b32.xlu0 %v1210, 32
        %v1269 = vpop.permute.xlu0 %1268
        %1270 = vrot.lane.b32.xlu0 %v1213, 32
        %v1271 = vpop.permute.xlu0 %1270
        %1272 = vrot.lane.b32.xlu0 %v1258, 32
        %v1273 = vpop.permute.xlu0 %1272
        %1274 = vrot.lane.b32.xlu0 %v1261, 32
        %v1275 = vpop.permute.xlu0 %1274
        %vm1280 = vcmask 523520
        %1281 = vst.msk [vmem:[#allocation3] sm:$0xff] %vm1280, %v1269
        %1282 = vst.msk [vmem:[#allocation3 + $0x8] sm:$0xff] %vm1280, %v1271
        %1283 = vst.msk [vmem:[#allocation3 + $0x10] sm:$0xff] %vm1280, %v1273
        %1284 = vst.msk [vmem:[#allocation3 + $0x18] sm:$0xff] %vm1280, %v1275
        %1285 = vrot.lane.b32.xlu0 %v776, 64
        %v1286 = vpop.permute.xlu0 %1285
        %1287 = vrot.lane.b32.xlu0 %v778, 64
        %v1288 = vpop.permute.xlu0 %1287
        %v1290 = vsel %vm780, %v1286, 0
        %v1293 = vsel %vm780, %v1288, 0
        %1295 = vmatprep.subr.bf16.mxu0 0
        %1296 = vmatpush1.bf16.xpose.msra.mxu0 %v1293
        %1297 = vmatprep.subr.bf16.mxu0 0
        %1298 = vmatpush1.bf16.xpose.msra.mxu0 0
        %1299 = vmatprep.subr.bf16.mxu0 0
        %1300 = vmatpush1.bf16.xpose.msra.mxu0 0
        %1301 = vmatprep.subr.bf16.mxu0 0
        %1302 = vmatpush1.bf16.xpose.msra.mxu0 0
        %1303 = vmatprep.subr.bf16.mxu0 0
        %1304 = vmatpush1.bf16.xpose.msra.mxu0 0
        %1305 = vmatprep.subr.bf16.mxu0 0
        %1306 = vmatpush1.bf16.xpose.msra.mxu0 0
        %1307 = vmatprep.subr.bf16.mxu0 0
        %1308 = vmatpush1.bf16.xpose.msra.mxu0 0
        %1309 = vmatprep.subr.bf16.mxu0 0
        %1310 = vmatpush1.bf16.xpose.msra.mxu0 0
        %1311 = vmatprep.subr.bf16.mxu0 0
        %1312 = vmatpush1.bf16.xpose.msra.mxu0 0
        %1313 = vmatprep.subr.bf16.mxu0 0
        %1314 = vmatpush1.bf16.xpose.msra.mxu0 0
        %1315 = vmatprep.subr.bf16.mxu0 0
        %1316 = vmatpush1.bf16.xpose.msra.mxu0 0
        %1317 = vmatprep.subr.bf16.mxu0 0
        %1318 = vmatpush1.bf16.xpose.msra.mxu0 0
        %1319 = vmatprep.subr.bf16.mxu0 0
        %1320 = vmatpush1.bf16.xpose.msra.mxu0 0
        %1321 = vmatprep.subr.bf16.mxu0 0
        %1322 = vmatpush1.bf16.xpose.msra.mxu0 0
        %1323 = vmatprep.subr.bf16.mxu0 0
        %1324 = vmatpush1.bf16.xpose.msra.mxu0 0
        %1325 = vmatprep.subr.bf16.mxu0 0
        %1326 = vmatpush1.bf16.xpose.msra.mxu0 0
        %1327 = vmatprep.mubr.bf16.mxu0 0
        %1328 = vmatmul.mubr.bf16.gmra.mrb[0].mxu0 %v1290
        %v1329 = vpop.f32.mrb[0].mxu0
        %v1330 = vadd.f32 %v472, %v1329
        %v1331 = vpop.f32.mrb[0].mxu0
        %v1332 = vpop.f32.mrb[0].mxu0
        %v1333 = vadd.f32 %v473, %v1332
        %v1334 = vpop.f32.mrb[0].mxu0
        %1335 = vdwg.mxu0
        %1336 = vrot.lane.b32.xlu0 %v777, 64
        %v1337 = vpop.permute.xlu0 %1336
        %1338 = vrot.lane.b32.xlu0 %v779, 64
        %v1339 = vpop.permute.xlu0 %1338
        %v1341 = vsel %vm780, %v1337, 0
        %v1344 = vsel %vm780, %v1339, 0
        %1346 = vmatprep.subr.bf16.mxu0 0
        %1347 = vmatpush1.bf16.xpose.msra.mxu0 %v1344
        %1348 = vmatprep.subr.bf16.mxu0 0
        %1349 = vmatpush1.bf16.xpose.msra.mxu0 0
        %1350 = vmatprep.subr.bf16.mxu0 0
        %1351 = vmatpush1.bf16.xpose.msra.mxu0 0
        %1352 = vmatprep.subr.bf16.mxu0 0
        %1353 = vmatpush1.bf16.xpose.msra.mxu0 0
        %1354 = vmatprep.subr.bf16.mxu0 0
        %1355 = vmatpush1.bf16.xpose.msra.mxu0 0
        %1356 = vmatprep.subr.bf16.mxu0 0
        %1357 = vmatpush1.bf16.xpose.msra.mxu0 0
        %1358 = vmatprep.subr.bf16.mxu0 0
        %1359 = vmatpush1.bf16.xpose.msra.mxu0 0
        %1360 = vmatprep.subr.bf16.mxu0 0
        %1361 = vmatpush1.bf16.xpose.msra.mxu0 0
        %1362 = vmatprep.subr.bf16.mxu0 0
        %1363 = vmatpush1.bf16.xpose.msra.mxu0 0
        %1364 = vmatprep.subr.bf16.mxu0 0
        %1365 = vmatpush1.bf16.xpose.msra.mxu0 0
        %1366 = vmatprep.subr.bf16.mxu0 0
        %1367 = vmatpush1.bf16.xpose.msra.mxu0 0
        %1368 = vmatprep.subr.bf16.mxu0 0
        %1369 = vmatpush1.bf16.xpose.msra.mxu0 0
        %1370 = vmatprep.subr.bf16.mxu0 0
        %1371 = vmatpush1.bf16.xpose.msra.mxu0 0
        %1372 = vmatprep.subr.bf16.mxu0 0
        %1373 = vmatpush1.bf16.xpose.msra.mxu0 0
        %1374 = vmatprep.subr.bf16.mxu0 0
        %1375 = vmatpush1.bf16.xpose.msra.mxu0 0
        %1376 = vmatprep.subr.bf16.mxu0 0
        %1377 = vmatpush1.bf16.xpose.msra.mxu0 0
        %1378 = vmatprep.mubr.bf16.mxu0 0
        %1379 = vmatmul.mubr.bf16.gmra.mrb[0].mxu0 %v1341
        %v1380 = vpop.f32.mrb[0].mxu0
        %v1381 = vadd.f32 %v474, %v1380
        %v1382 = vpop.f32.mrb[0].mxu0
        %v1383 = vpop.f32.mrb[0].mxu0
        %v1384 = vadd.f32 %v475, %v1383
        %v1385 = vpop.f32.mrb[0].mxu0
        %1386 = vdwg.mxu0
        %v1387 = vsel %vm875, %v1330, -inf
        %1388 = vmax.xlane.f32.xlu0 %v1387
        %v1389 = vpop.xlane.xlu0 %1388
        %v1390 = vsel %vm875, %v1333, -inf
        %1391 = vmax.xlane.f32.xlu0 %v1390
        %v1392 = vpop.xlane.xlu0 %1391
        %v1393 = vsel %vm875, %v1381, -inf
        %1394 = vmax.xlane.f32.xlu0 %v1393
        %v1395 = vpop.xlane.xlu0 %1394
        %v1396 = vsel %vm875, %v1384, -inf
        %1397 = vmax.xlane.f32.xlu0 %v1396
        %v1398 = vpop.xlane.xlu0 %1397
        %v1399 = vsub.f32 %v1330, %v1389
        %v1400 = vsub.f32 %v1333, %v1392
        %v1401 = vsub.f32 %v1381, %v1395
        %v1402 = vsub.f32 %v1384, %v1398
        %v1403 = vmul.f32 %v1399, 1.442695
        %v1404 = vpow.pop %v1403
        %v1405 = vmul.f32 %v1400, 1.442695
        %v1406 = vpow.pop %v1405
        %v1407 = vmul.f32 %v1401, 1.442695
        %v1408 = vpow.pop %v1407
        %v1409 = vmul.f32 %v1402, 1.442695
        %v1410 = vpow.pop %v1409
        %v1411 = vsel %vm875, %v1404, 0.0
        %1412 = vadd.xlane.f32.xlu0 %v1411
        %v1413 = vpop.xlane.xlu0 %1412
        %v1414 = vsel %vm875, %v1406, 0.0
        %1415 = vadd.xlane.f32.xlu0 %v1414
        %v1416 = vpop.xlane.xlu0 %1415
        %v1417 = vsel %vm875, %v1408, 0.0
        %1418 = vadd.xlane.f32.xlu0 %v1417
        %v1419 = vpop.xlane.xlu0 %1418
        %v1420 = vsel %vm875, %v1410, 0.0
        %1421 = vadd.xlane.f32.xlu0 %v1420
        %v1422 = vpop.xlane.xlu0 %1421
        %v1423 = vrcp.pop %v1413
        %v1424 = vrcp.pop %v1416
        %v1425 = vrcp.pop %v1419
        %v1426 = vrcp.pop %v1422
        %v1427 = vmul.f32 %v1404, %v1423
        %v1428 = vmul.f32 %v1406, %v1424
        %v1429 = vmul.f32 %v1408, %v1425
        %v1430 = vmul.f32 %v1410, %v1426
        %v1431 = vpack.c.bf16 %v1428, %v1427
        %v1432 = vpack.c.bf16 %v1430, %v1429
        %1433 = vrot.lane.b32.xlu0 %v922, 64
        %v1434 = vpop.permute.xlu0 %1433
        %v1437 = vsel %vm875, %v1431, 0
        %1439 = vmatprep.subr.bf16.mxu0 0
        %1440 = vmatpush1.bf16.msra.mxu0 %v1434
        %1441 = vmatprep.subr.bf16.mxu0 0
        %1442 = vmatpush1.bf16.msra.mxu0 0
        %1443 = vmatprep.subr.bf16.mxu0 0
        %1444 = vmatpush1.bf16.msra.mxu0 0
        %1445 = vmatprep.subr.bf16.mxu0 0
        %1446 = vmatpush1.bf16.msra.mxu0 0
        %1447 = vmatprep.subr.bf16.mxu0 0
        %1448 = vmatpush1.bf16.msra.mxu0 0
        %1449 = vmatprep.subr.bf16.mxu0 0
        %1450 = vmatpush1.bf16.msra.mxu0 0
        %1451 = vmatprep.subr.bf16.mxu0 0
        %1452 = vmatpush1.bf16.msra.mxu0 0
        %1453 = vmatprep.subr.bf16.mxu0 0
        %1454 = vmatpush1.bf16.msra.mxu0 0
        %1455 = vmatprep.subr.bf16.mxu0 0
        %1456 = vmatpush1.bf16.msra.mxu0 0
        %1457 = vmatprep.subr.bf16.mxu0 0
        %1458 = vmatpush1.bf16.msra.mxu0 0
        %1459 = vmatprep.subr.bf16.mxu0 0
        %1460 = vmatpush1.bf16.msra.mxu0 0
        %1461 = vmatprep.subr.bf16.mxu0 0
        %1462 = vmatpush1.bf16.msra.mxu0 0
        %1463 = vmatprep.subr.bf16.mxu0 0
        %1464 = vmatpush1.bf16.msra.mxu0 0
        %1465 = vmatprep.subr.bf16.mxu0 0
        %1466 = vmatpush1.bf16.msra.mxu0 0
        %1467 = vmatprep.subr.bf16.mxu0 0
        %1468 = vmatpush1.bf16.msra.mxu0 0
        %1469 = vmatprep.subr.bf16.mxu0 0
        %1470 = vmatpush1.bf16.msra.mxu0 0
        %1471 = vmatprep.mubr.bf16.mxu0 0
        %1472 = vmatmul.mubr.bf16.gmra.mrb[0].mxu0 %v1437
        %v1473 = vpop.f32.mrb[0].mxu0
        %v1474 = vadd.f32 0.0, %v1473
        %v1475 = vpop.f32.mrb[0].mxu0
        %v1476 = vpop.f32.mrb[0].mxu0
        %v1477 = vadd.f32 0.0, %v1476
        %v1478 = vpop.f32.mrb[0].mxu0
        %1479 = vdwg.mxu0
        %1480 = vrot.lane.b32.xlu0 %v923, 64
        %v1481 = vpop.permute.xlu0 %1480
        %v1484 = vsel %vm875, %v1432, 0
        %1486 = vmatprep.subr.bf16.mxu0 0
        %1487 = vmatpush1.bf16.msra.mxu0 %v1481
        %1488 = vmatprep.subr.bf16.mxu0 0
        %1489 = vmatpush1.bf16.msra.mxu0 0
        %1490 = vmatprep.subr.bf16.mxu0 0
        %1491 = vmatpush1.bf16.msra.mxu0 0
        %1492 = vmatprep.subr.bf16.mxu0 0
        %1493 = vmatpush1.bf16.msra.mxu0 0
        %1494 = vmatprep.subr.bf16.mxu0 0
        %1495 = vmatpush1.bf16.msra.mxu0 0
        %1496 = vmatprep.subr.bf16.mxu0 0
        %1497 = vmatpush1.bf16.msra.mxu0 0
        %1498 = vmatprep.subr.bf16.mxu0 0
        %1499 = vmatpush1.bf16.msra.mxu0 0
        %1500 = vmatprep.subr.bf16.mxu0 0
        %1501 = vmatpush1.bf16.msra.mxu0 0
        %1502 = vmatprep.subr.bf16.mxu0 0
        %1503 = vmatpush1.bf16.msra.mxu0 0
        %1504 = vmatprep.subr.bf16.mxu0 0
        %1505 = vmatpush1.bf16.msra.mxu0 0
        %1506 = vmatprep.subr.bf16.mxu0 0
        %1507 = vmatpush1.bf16.msra.mxu0 0
        %1508 = vmatprep.subr.bf16.mxu0 0
        %1509 = vmatpush1.bf16.msra.mxu0 0
        %1510 = vmatprep.subr.bf16.mxu0 0
        %1511 = vmatpush1.bf16.msra.mxu0 0
        %1512 = vmatprep.subr.bf16.mxu0 0
        %1513 = vmatpush1.bf16.msra.mxu0 0
        %1514 = vmatprep.subr.bf16.mxu0 0
        %1515 = vmatpush1.bf16.msra.mxu0 0
        %1516 = vmatprep.subr.bf16.mxu0 0
        %1517 = vmatpush1.bf16.msra.mxu0 0
        %1518 = vmatprep.mubr.bf16.mxu0 0
        %1519 = vmatmul.mubr.bf16.gmra.mrb[0].mxu0 %v1484
        %v1520 = vpop.f32.mrb[0].mxu0
        %v1521 = vadd.f32 0.0, %v1520
        %v1522 = vpop.f32.mrb[0].mxu0
        %v1523 = vpop.f32.mrb[0].mxu0
        %v1524 = vadd.f32 0.0, %v1523
        %v1525 = vpop.f32.mrb[0].mxu0
        %1526 = vdwg.mxu0
        %1531 = vrot.lane.b32.xlu0 %v1474, 64
        %v1532 = vpop.permute.xlu0 %1531
        %1533 = vrot.lane.b32.xlu0 %v1477, 64
        %v1534 = vpop.permute.xlu0 %1533
        %1535 = vrot.lane.b32.xlu0 %v1521, 64
        %v1536 = vpop.permute.xlu0 %1535
        %1537 = vrot.lane.b32.xlu0 %v1524, 64
        %v1538 = vpop.permute.xlu0 %1537
        %vm1543 = vcmask 785920
        %1544 = vst.msk [vmem:[#allocation3] sm:$0xff] %vm1543, %v1532
        %1545 = vst.msk [vmem:[#allocation3 + $0x8] sm:$0xff] %vm1543, %v1534
        %1546 = vst.msk [vmem:[#allocation3 + $0x10] sm:$0xff] %vm1543, %v1536
        %1547 = vst.msk [vmem:[#allocation3 + $0x18] sm:$0xff] %vm1543, %v1538
        %1548 = vrot.lane.b32.xlu0 %v776, 32
        %v1549 = vpop.permute.xlu0 %1548
        %1550 = vrot.lane.b32.xlu0 %v778, 32
        %v1551 = vpop.permute.xlu0 %1550
        %v1553 = vsel %vm780, %v1549, 0
        %v1556 = vsel %vm780, %v1551, 0
        %1558 = vmatprep.subr.bf16.mxu0 0
        %1559 = vmatpush1.bf16.xpose.msra.mxu0 %v1556
        %1560 = vmatprep.subr.bf16.mxu0 0
        %1561 = vmatpush1.bf16.xpose.msra.mxu0 0
        %1562 = vmatprep.subr.bf16.mxu0 0
        %1563 = vmatpush1.bf16.xpose.msra.mxu0 0
        %1564 = vmatprep.subr.bf16.mxu0 0
        %1565 = vmatpush1.bf16.xpose.msra.mxu0 0
        %1566 = vmatprep.subr.bf16.mxu0 0
        %1567 = vmatpush1.bf16.xpose.msra.mxu0 0
        %1568 = vmatprep.subr.bf16.mxu0 0
        %1569 = vmatpush1.bf16.xpose.msra.mxu0 0
        %1570 = vmatprep.subr.bf16.mxu0 0
        %1571 = vmatpush1.bf16.xpose.msra.mxu0 0
        %1572 = vmatprep.subr.bf16.mxu0 0
        %1573 = vmatpush1.bf16.xpose.msra.mxu0 0
        %1574 = vmatprep.subr.bf16.mxu0 0
        %1575 = vmatpush1.bf16.xpose.msra.mxu0 0
        %1576 = vmatprep.subr.bf16.mxu0 0
        %1577 = vmatpush1.bf16.xpose.msra.mxu0 0
        %1578 = vmatprep.subr.bf16.mxu0 0
        %1579 = vmatpush1.bf16.xpose.msra.mxu0 0
        %1580 = vmatprep.subr.bf16.mxu0 0
        %1581 = vmatpush1.bf16.xpose.msra.mxu0 0
        %1582 = vmatprep.subr.bf16.mxu0 0
        %1583 = vmatpush1.bf16.xpose.msra.mxu0 0
        %1584 = vmatprep.subr.bf16.mxu0 0
        %1585 = vmatpush1.bf16.xpose.msra.mxu0 0
        %1586 = vmatprep.subr.bf16.mxu0 0
        %1587 = vmatpush1.bf16.xpose.msra.mxu0 0
        %1588 = vmatprep.subr.bf16.mxu0 0
        %1589 = vmatpush1.bf16.xpose.msra.mxu0 0
        %1590 = vmatprep.mubr.bf16.mxu0 0
        %1591 = vmatmul.mubr.bf16.gmra.mrb[0].mxu0 %v1553
        %v1592 = vpop.f32.mrb[0].mxu0
        %v1593 = vadd.f32 %v472, %v1592
        %v1594 = vpop.f32.mrb[0].mxu0
        %v1595 = vpop.f32.mrb[0].mxu0
        %v1596 = vadd.f32 %v473, %v1595
        %v1597 = vpop.f32.mrb[0].mxu0
        %1598 = vdwg.mxu0
        %1599 = vrot.lane.b32.xlu0 %v777, 32
        %v1600 = vpop.permute.xlu0 %1599
        %1601 = vrot.lane.b32.xlu0 %v779, 32
        %v1602 = vpop.permute.xlu0 %1601
        %v1604 = vsel %vm780, %v1600, 0
        %v1607 = vsel %vm780, %v1602, 0
        %1609 = vmatprep.subr.bf16.mxu0 0
        %1610 = vmatpush1.bf16.xpose.msra.mxu0 %v1607
        %1611 = vmatprep.subr.bf16.mxu0 0
        %1612 = vmatpush1.bf16.xpose.msra.mxu0 0
        %1613 = vmatprep.subr.bf16.mxu0 0
        %1614 = vmatpush1.bf16.xpose.msra.mxu0 0
        %1615 = vmatprep.subr.bf16.mxu0 0
        %1616 = vmatpush1.bf16.xpose.msra.mxu0 0
        %1617 = vmatprep.subr.bf16.mxu0 0
        %1618 = vmatpush1.bf16.xpose.msra.mxu0 0
        %1619 = vmatprep.subr.bf16.mxu0 0
        %1620 = vmatpush1.bf16.xpose.msra.mxu0 0
        %1621 = vmatprep.subr.bf16.mxu0 0
        %1622 = vmatpush1.bf16.xpose.msra.mxu0 0
        %1623 = vmatprep.subr.bf16.mxu0 0
        %1624 = vmatpush1.bf16.xpose.msra.mxu0 0
        %1625 = vmatprep.subr.bf16.mxu0 0
        %1626 = vmatpush1.bf16.xpose.msra.mxu0 0
        %1627 = vmatprep.subr.bf16.mxu0 0
        %1628 = vmatpush1.bf16.xpose.msra.mxu0 0
        %1629 = vmatprep.subr.bf16.mxu0 0
        %1630 = vmatpush1.bf16.xpose.msra.mxu0 0
        %1631 = vmatprep.subr.bf16.mxu0 0
        %1632 = vmatpush1.bf16.xpose.msra.mxu0 0
        %1633 = vmatprep.subr.bf16.mxu0 0
        %1634 = vmatpush1.bf16.xpose.msra.mxu0 0
        %1635 = vmatprep.subr.bf16.mxu0 0
        %1636 = vmatpush1.bf16.xpose.msra.mxu0 0
        %1637 = vmatprep.subr.bf16.mxu0 0
        %1638 = vmatpush1.bf16.xpose.msra.mxu0 0
        %1639 = vmatprep.subr.bf16.mxu0 0
        %1640 = vmatpush1.bf16.xpose.msra.mxu0 0
        %1641 = vmatprep.mubr.bf16.mxu0 0
        %1642 = vmatmul.mubr.bf16.gmra.mrb[0].mxu0 %v1604
        %v1643 = vpop.f32.mrb[0].mxu0
        %v1644 = vadd.f32 %v474, %v1643
        %v1645 = vpop.f32.mrb[0].mxu0
        %v1646 = vpop.f32.mrb[0].mxu0
        %v1647 = vadd.f32 %v475, %v1646
        %v1648 = vpop.f32.mrb[0].mxu0
        %1649 = vdwg.mxu0
        %v1650 = vsel %vm875, %v1593, -inf
        %1651 = vmax.xlane.f32.xlu0 %v1650
        %v1652 = vpop.xlane.xlu0 %1651
        %v1653 = vsel %vm875, %v1596, -inf
        %1654 = vmax.xlane.f32.xlu0 %v1653
        %v1655 = vpop.xlane.xlu0 %1654
        %v1656 = vsel %vm875, %v1644, -inf
        %1657 = vmax.xlane.f32.xlu0 %v1656
        %v1658 = vpop.xlane.xlu0 %1657
        %v1659 = vsel %vm875, %v1647, -inf
        %1660 = vmax.xlane.f32.xlu0 %v1659
        %v1661 = vpop.xlane.xlu0 %1660
        %v1662 = vsub.f32 %v1593, %v1652
        %v1663 = vsub.f32 %v1596, %v1655
        %v1664 = vsub.f32 %v1644, %v1658
        %v1665 = vsub.f32 %v1647, %v1661
        %v1666 = vmul.f32 %v1662, 1.442695
        %v1667 = vpow.pop %v1666
        %v1668 = vmul.f32 %v1663, 1.442695
        %v1669 = vpow.pop %v1668
        %v1670 = vmul.f32 %v1664, 1.442695
        %v1671 = vpow.pop %v1670
        %v1672 = vmul.f32 %v1665, 1.442695
        %v1673 = vpow.pop %v1672
        %v1674 = vsel %vm875, %v1667, 0.0
        %1675 = vadd.xlane.f32.xlu0 %v1674
        %v1676 = vpop.xlane.xlu0 %1675
        %v1677 = vsel %vm875, %v1669, 0.0
        %1678 = vadd.xlane.f32.xlu0 %v1677
        %v1679 = vpop.xlane.xlu0 %1678
        %v1680 = vsel %vm875, %v1671, 0.0
        %1681 = vadd.xlane.f32.xlu0 %v1680
        %v1682 = vpop.xlane.xlu0 %1681
        %v1683 = vsel %vm875, %v1673, 0.0
        %1684 = vadd.xlane.f32.xlu0 %v1683
        %v1685 = vpop.xlane.xlu0 %1684
        %v1686 = vrcp.pop %v1676
        %v1687 = vrcp.pop %v1679
        %v1688 = vrcp.pop %v1682
        %v1689 = vrcp.pop %v1685
        %v1690 = vmul.f32 %v1667, %v1686
        %v1691 = vmul.f32 %v1669, %v1687
        %v1692 = vmul.f32 %v1671, %v1688
        %v1693 = vmul.f32 %v1673, %v1689
        %v1694 = vpack.c.bf16 %v1691, %v1690
        %v1695 = vpack.c.bf16 %v1693, %v1692
        %1696 = vrot.lane.b32.xlu0 %v922, 32
        %v1697 = vpop.permute.xlu0 %1696
        %v1700 = vsel %vm875, %v1694, 0
        %1702 = vmatprep.subr.bf16.mxu0 0
        %1703 = vmatpush1.bf16.msra.mxu0 %v1697
        %1704 = vmatprep.subr.bf16.mxu0 0
        %1705 = vmatpush1.bf16.msra.mxu0 0
        %1706 = vmatprep.subr.bf16.mxu0 0
        %1707 = vmatpush1.bf16.msra.mxu0 0
        %1708 = vmatprep.subr.bf16.mxu0 0
        %1709 = vmatpush1.bf16.msra.mxu0 0
        %1710 = vmatprep.subr.bf16.mxu0 0
        %1711 = vmatpush1.bf16.msra.mxu0 0
        %1712 = vmatprep.subr.bf16.mxu0 0
        %1713 = vmatpush1.bf16.msra.mxu0 0
        %1714 = vmatprep.subr.bf16.mxu0 0
        %1715 = vmatpush1.bf16.msra.mxu0 0
        %1716 = vmatprep.subr.bf16.mxu0 0
        %1717 = vmatpush1.bf16.msra.mxu0 0
        %1718 = vmatprep.subr.bf16.mxu0 0
        %1719 = vmatpush1.bf16.msra.mxu0 0
        %1720 = vmatprep.subr.bf16.mxu0 0
        %1721 = vmatpush1.bf16.msra.mxu0 0
        %1722 = vmatprep.subr.bf16.mxu0 0
        %1723 = vmatpush1.bf16.msra.mxu0 0
        %1724 = vmatprep.subr.bf16.mxu0 0
        %1725 = vmatpush1.bf16.msra.mxu0 0
        %1726 = vmatprep.subr.bf16.mxu0 0
        %1727 = vmatpush1.bf16.msra.mxu0 0
        %1728 = vmatprep.subr.bf16.mxu0 0
        %1729 = vmatpush1.bf16.msra.mxu0 0
        %1730 = vmatprep.subr.bf16.mxu0 0
        %1731 = vmatpush1.bf16.msra.mxu0 0
        %1732 = vmatprep.subr.bf16.mxu0 0
        %1733 = vmatpush1.bf16.msra.mxu0 0
        %1734 = vmatprep.mubr.bf16.mxu0 0
        %1735 = vmatmul.mubr.bf16.gmra.mrb[0].mxu0 %v1700
        %v1736 = vpop.f32.mrb[0].mxu0
        %v1737 = vadd.f32 0.0, %v1736
        %v1738 = vpop.f32.mrb[0].mxu0
        %v1739 = vpop.f32.mrb[0].mxu0
        %v1740 = vadd.f32 0.0, %v1739
        %v1741 = vpop.f32.mrb[0].mxu0
        %1742 = vdwg.mxu0
        %1743 = vrot.lane.b32.xlu0 %v923, 32
        %v1744 = vpop.permute.xlu0 %1743
        %v1747 = vsel %vm875, %v1695, 0
        %1749 = vmatprep.subr.bf16.mxu0 0
        %1750 = vmatpush1.bf16.msra.mxu0 %v1744
        %1751 = vmatprep.subr.bf16.mxu0 0
        %1752 = vmatpush1.bf16.msra.mxu0 0
        %1753 = vmatprep.subr.bf16.mxu0 0
        %1754 = vmatpush1.bf16.msra.mxu0 0
        %1755 = vmatprep.subr.bf16.mxu0 0
        %1756 = vmatpush1.bf16.msra.mxu0 0
        %1757 = vmatprep.subr.bf16.mxu0 0
        %1758 = vmatpush1.bf16.msra.mxu0 0
        %1759 = vmatprep.subr.bf16.mxu0 0
        %1760 = vmatpush1.bf16.msra.mxu0 0
        %1761 = vmatprep.subr.bf16.mxu0 0
        %1762 = vmatpush1.bf16.msra.mxu0 0
        %1763 = vmatprep.subr.bf16.mxu0 0
        %1764 = vmatpush1.bf16.msra.mxu0 0
        %1765 = vmatprep.subr.bf16.mxu0 0
        %1766 = vmatpush1.bf16.msra.mxu0 0
        %1767 = vmatprep.subr.bf16.mxu0 0
        %1768 = vmatpush1.bf16.msra.mxu0 0
        %1769 = vmatprep.subr.bf16.mxu0 0
        %1770 = vmatpush1.bf16.msra.mxu0 0
        %1771 = vmatprep.subr.bf16.mxu0 0
        %1772 = vmatpush1.bf16.msra.mxu0 0
        %1773 = vmatprep.subr.bf16.mxu0 0
        %1774 = vmatpush1.bf16.msra.mxu0 0
        %1775 = vmatprep.subr.bf16.mxu0 0
        %1776 = vmatpush1.bf16.msra.mxu0 0
        %1777 = vmatprep.subr.bf16.mxu0 0
        %1778 = vmatpush1.bf16.msra.mxu0 0
        %1779 = vmatprep.subr.bf16.mxu0 0
        %1780 = vmatpush1.bf16.msra.mxu0 0
        %1781 = vmatprep.mubr.bf16.mxu0 0
        %1782 = vmatmul.mubr.bf16.gmra.mrb[0].mxu0 %v1747
        %v1783 = vpop.f32.mrb[0].mxu0
        %v1784 = vadd.f32 0.0, %v1783
        %v1785 = vpop.f32.mrb[0].mxu0
        %v1786 = vpop.f32.mrb[0].mxu0
        %v1787 = vadd.f32 0.0, %v1786
        %v1788 = vpop.f32.mrb[0].mxu0
        %1789 = vdwg.mxu0
        %1794 = vrot.lane.b32.xlu0 %v1737, 96
        %v1795 = vpop.permute.xlu0 %1794
        %1796 = vrot.lane.b32.xlu0 %v1740, 96
        %v1797 = vpop.permute.xlu0 %1796
        %1798 = vrot.lane.b32.xlu0 %v1784, 96
        %v1799 = vpop.permute.xlu0 %1798
        %1800 = vrot.lane.b32.xlu0 %v1787, 96
        %v1801 = vpop.permute.xlu0 %1800
        %vm1806 = vcmask 1048320
        %1807 = vst.msk [vmem:[#allocation3] sm:$0xff] %vm1806, %v1795
        %1808 = vst.msk [vmem:[#allocation3 + $0x8] sm:$0xff] %vm1806, %v1797
        %1809 = vst.msk [vmem:[#allocation3 + $0x10] sm:$0xff] %vm1806, %v1799
        %1810 = vst.msk [vmem:[#allocation3 + $0x18] sm:$0xff] %vm1806, %v1801
        %v1811 = vld [vmem:[#allocation3] sm:$0xff]
        %v1812 = vld [vmem:[#allocation3 + $0x8] sm:$0xff]
        %v1813 = vld [vmem:[#allocation3 + $0x10] sm:$0xff]
        %v1814 = vld [vmem:[#allocation3 + $0x18] sm:$0xff]
        %v1815 = vpack.c.bf16 %v1812, %v1811
        %v1816 = vpack.c.bf16 %v1814, %v1813
        %v1817 = vlaneseq
        %v1818 = vshrl.u32 %v1817, 7
        %v1819 = vsub.s32 3, %v1818
        %v1820 = vrot.slane %v476, %v1819
        %v1837 = vunpack.c.l.b16 %v760
        %v1838 = vunpack.c.l.b16 %v761
        %v1839 = vunpack.c.l.b16 %v762
        %v1840 = vunpack.c.l.b16 %v763
        %v1841 = vunpack.c.l.b16 %v764
        %v1842 = vunpack.c.l.b16 %v765
        %v1843 = vunpack.c.l.b16 %v766
        %v1844 = vunpack.c.l.b16 %v767
        %v1845 = vunpack.c.l.b16 %v768
        %v1846 = vunpack.c.l.b16 %v769
        %v1847 = vunpack.c.l.b16 %v770
        %v1848 = vunpack.c.l.b16 %v771
        %v1849 = vunpack.c.l.b16 %v772
        %v1850 = vunpack.c.l.b16 %v773
        %v1851 = vunpack.c.l.b16 %v774
        %v1852 = vunpack.c.l.b16 %v775
        %v1853 = vpack.c.b16 %v1838, %v1837
        %v1854 = vpack.c.b16 %v1840, %v1839
        %v1855 = vpack.c.b16 %v1842, %v1841
        %v1856 = vpack.c.b16 %v1844, %v1843
        %v1857 = vpack.c.b16 %v1846, %v1845
        %v1858 = vpack.c.b16 %v1848, %v1847
        %v1859 = vpack.c.b16 %v1850, %v1849
        %v1860 = vpack.c.b16 %v1852, %v1851
        %1869 = vmatprep.subr.bf16.mxu0 0
        %1870 = vmatpush1.bf16.msra.mxu0 %v1853
        %1871 = vmatprep.subr.bf16.mxu0 0
        %1872 = vmatpush1.bf16.msra.mxu0 %v1854
        %1873 = vmatprep.subr.bf16.mxu0 0
        %1874 = vmatpush1.bf16.msra.mxu0 %v1855
        %1875 = vmatprep.subr.bf16.mxu0 0
        %1876 = vmatpush1.bf16.msra.mxu0 %v1856
        %1877 = vmatprep.subr.bf16.mxu0 0
        %1878 = vmatpush1.bf16.msra.mxu0 %v1857
        %1879 = vmatprep.subr.bf16.mxu0 0
        %1880 = vmatpush1.bf16.msra.mxu0 %v1858
        %1881 = vmatprep.subr.bf16.mxu0 0
        %1882 = vmatpush1.bf16.msra.mxu0 %v1859
        %1883 = vmatprep.subr.bf16.mxu0 0
        %1884 = vmatpush1.bf16.msra.mxu0 %v1860
        %1885 = vmatprep.subr.bf16.mxu0 0
        %1886 = vmatpush1.bf16.msra.mxu0 0
        %1887 = vmatprep.subr.bf16.mxu0 0
        %1888 = vmatpush1.bf16.msra.mxu0 0
        %1889 = vmatprep.subr.bf16.mxu0 0
        %1890 = vmatpush1.bf16.msra.mxu0 0
        %1891 = vmatprep.subr.bf16.mxu0 0
        %1892 = vmatpush1.bf16.msra.mxu0 0
        %1893 = vmatprep.subr.bf16.mxu0 0
        %1894 = vmatpush1.bf16.msra.mxu0 0
        %1895 = vmatprep.subr.bf16.mxu0 0
        %1896 = vmatpush1.bf16.msra.mxu0 0
        %1897 = vmatprep.subr.bf16.mxu0 0
        %1898 = vmatpush1.bf16.msra.mxu0 0
        %1899 = vmatprep.subr.bf16.mxu0 0
        %1900 = vmatpush1.bf16.msra.mxu0 0
        %1901 = vmatprep.mubr.bf16.mxu0 0
        %1902 = vmatmul.mubr.bf16.gmra.mrb[0].mxu0 %v1815
        %v1903 = vpop.f32.mrb[0].mxu0
        %v1904 = vadd.f32 %v1820, %v1903
        %v1905 = vpop.f32.mrb[0].mxu0
        %v1906 = vpop.f32.mrb[0].mxu0
        %v1907 = vadd.f32 %v1820, %v1906
        %v1908 = vpop.f32.mrb[0].mxu0
        %1909 = vmatprep.mubr.bf16.mxu0 0
        %1910 = vmatmul.mubr.bf16.gmra.mrb[0].mxu0 %v1816
        %v1911 = vpop.f32.mrb[0].mxu0
        %v1912 = vadd.f32 %v1820, %v1911
        %v1913 = vpop.f32.mrb[0].mxu0
        %v1914 = vpop.f32.mrb[0].mxu0
        %v1915 = vadd.f32 %v1820, %v1914
        %v1916 = vpop.f32.mrb[0].mxu0
        %1917 = vdwg.mxu0
        %v1918 = vadd.f32 %v468, %v1904
        %v1919 = vadd.f32 %v469, %v1907
        %v1920 = vadd.f32 %v470, %v1912
        %v1921 = vadd.f32 %v471, %v1915
        %1922 = vadd.xlane.f32.xlu0 %v1918
        %v1923 = vpop.xlane.xlu0 %1922
        %1924 = vadd.xlane.f32.xlu0 %v1919
        %v1925 = vpop.xlane.xlu0 %1924
        %1926 = vadd.xlane.f32.xlu0 %v1920
        %v1927 = vpop.xlane.xlu0 %1926
        %1928 = vadd.xlane.f32.xlu0 %v1921
        %v1929 = vpop.xlane.xlu0 %1928
        %v1930 = vrcp.pop 128.0
        %v1931 = vmul.f32 %v1923, %v1930
        %v1932 = vmul.f32 %v1925, %v1930
        %v1933 = vmul.f32 %v1927, %v1930
        %v1934 = vmul.f32 %v1929, %v1930
        %v1935 = vmul.f32 %v1918, %v1918
        %v1936 = vmul.f32 %v1919, %v1919
        %v1937 = vmul.f32 %v1920, %v1920
        %v1938 = vmul.f32 %v1921, %v1921
        %1939 = vadd.xlane.f32.xlu0 %v1935
        %v1940 = vpop.xlane.xlu0 %1939
        %1941 = vadd.xlane.f32.xlu0 %v1936
        %v1942 = vpop.xlane.xlu0 %1941
        %1943 = vadd.xlane.f32.xlu0 %v1937
        %v1944 = vpop.xlane.xlu0 %1943
        %1945 = vadd.xlane.f32.xlu0 %v1938
        %v1946 = vpop.xlane.xlu0 %1945
        %v1947 = vmul.f32 %v1940, %v1930
        %v1948 = vmul.f32 %v1942, %v1930
        %v1949 = vmul.f32 %v1944, %v1930
        %v1950 = vmul.f32 %v1946, %v1930
        %v1951 = vmul.f32 %v1931, %v1931
        %v1952 = vmul.f32 %v1932, %v1932
        %v1953 = vmul.f32 %v1933, %v1933
        %v1954 = vmul.f32 %v1934, %v1934
        %v1955 = vsub.f32 %v1947, %v1951
        %v1956 = vsub.f32 %v1948, %v1952
        %v1957 = vsub.f32 %v1949, %v1953
        %v1958 = vsub.f32 %v1950, %v1954
        %v1959 = vsub.f32 %v1918, %v1931
        %v1960 = vsub.f32 %v1919, %v1932
        %v1961 = vsub.f32 %v1920, %v1933
        %v1962 = vsub.f32 %v1921, %v1934
        %v1963 = vadd.f32 %v1955, 1e-10
        %v1964 = vadd.f32 %v1956, 1e-10
        %v1965 = vadd.f32 %v1957, 1e-10
        %v1966 = vadd.f32 %v1958, 1e-10
        %v1967 = vrsqrt.pop %v1963
        %v1968 = vrsqrt.pop %v1964
        %v1969 = vrsqrt.pop %v1965
        %v1970 = vrsqrt.pop %v1966
        %v1971 = vmul.f32 %v1959, %v1967
        %v1972 = vmul.f32 %v1960, %v1968
        %v1973 = vmul.f32 %v1961, %v1969
        %v1974 = vmul.f32 %v1962, %v1970
        %v1975 = vlaneseq
        %v1976 = vshrl.u32 %v1975, 7
        %v1977 = vsub.s32 4, %v1976
        %v1978 = vrot.slane %v476, %v1977
        %v1979 = vmul.f32 %v1978, %v1971
        %v1980 = vmul.f32 %v1978, %v1972
        %v1981 = vmul.f32 %v1978, %v1973
        %v1982 = vmul.f32 %v1978, %v1974
        %v1983 = vlaneseq
        %v1984 = vshrl.u32 %v1983, 7
        %v1985 = vsub.s32 5, %v1984
        %v1986 = vrot.slane %v476, %v1985
        %v1987 = vadd.f32 %v1979, %v1986
        %v1988 = vadd.f32 %v1980, %v1986
        %v1989 = vadd.f32 %v1981, %v1986
        %v1990 = vadd.f32 %v1982, %v1986
        %v1991 = vld [vmem:[#allocation4] sm:$0xff]
        %v1992 = vld [vmem:[#allocation4 + $0x8] sm:$0xff]
        %v1993 = vld [vmem:[#allocation4 + $0x10] sm:$0xff]
        %v1994 = vld [vmem:[#allocation4 + $0x18] sm:$0xff]
        %v1995 = vld [vmem:[%s389 + $0xc] sm:$0xf]
        %v1996 = vld [vmem:[%s389 + $0x34] sm:$0xf]
        %v1997 = vld [vmem:[%s389 + $0x5c] sm:$0xf]
        %v1998 = vld [vmem:[%s389 + $0x84] sm:$0xf]
        %v1999 = vld [vmem:[%s389 + $0xac] sm:$0xf]
        %v2000 = vld [vmem:[%s389 + $0xd4] sm:$0xf]
        %v2001 = vld [vmem:[%s389 + $0xfc] sm:$0xf]
        %v2002 = vld [vmem:[%s389 + $0x124] sm:$0xf]
        %v2003 = vld [vmem:[%s389 + $0x14c] sm:$0xf]
        %v2004 = vld [vmem:[%s389 + $0x174] sm:$0xf]
        %v2005 = vld [vmem:[%s389 + $0x19c] sm:$0xf]
        %v2006 = vld [vmem:[%s389 + $0x1c4] sm:$0xf]
        %v2007 = vld [vmem:[%s389 + $0x1ec] sm:$0xf]
        %v2008 = vld [vmem:[%s389 + $0x214] sm:$0xf]
        %v2009 = vld [vmem:[%s389 + $0x23c] sm:$0xf]
        %v2010 = vld [vmem:[%s389 + $0x264] sm:$0xf]
        %v2011 = vpack.c.bf16 %v1988, %v1987
        %v2012 = vpack.c.bf16 %v1990, %v1989
        %v2013 = vlaneseq
        %v2014 = vshrl.u32 %v2013, 7
        %v2015 = vsub.s32 1, %v2014
        %v2016 = vrot.slane %v476, %v2015
        %v2033 = vunpack.c.l.b16 %v1995
        %v2034 = vunpack.c.l.b16 %v1996
        %v2035 = vunpack.c.l.b16 %v1997
        %v2036 = vunpack.c.l.b16 %v1998
        %v2037 = vunpack.c.l.b16 %v1999
        %v2038 = vunpack.c.l.b16 %v2000
        %v2039 = vunpack.c.l.b16 %v2001
        %v2040 = vunpack.c.l.b16 %v2002
        %v2041 = vunpack.c.l.b16 %v2003
        %v2042 = vunpack.c.l.b16 %v2004
        %v2043 = vunpack.c.l.b16 %v2005
        %v2044 = vunpack.c.l.b16 %v2006
        %v2045 = vunpack.c.l.b16 %v2007
        %v2046 = vunpack.c.l.b16 %v2008
        %v2047 = vunpack.c.l.b16 %v2009
        %v2048 = vunpack.c.l.b16 %v2010
        %v2049 = vpack.c.b16 %v2034, %v2033
        %v2050 = vpack.c.b16 %v2036, %v2035
        %v2051 = vpack.c.b16 %v2038, %v2037
        %v2052 = vpack.c.b16 %v2040, %v2039
        %v2053 = vpack.c.b16 %v2042, %v2041
        %v2054 = vpack.c.b16 %v2044, %v2043
        %v2055 = vpack.c.b16 %v2046, %v2045
        %v2056 = vpack.c.b16 %v2048, %v2047
        %2065 = vmatprep.subr.bf16.mxu0 0
        %2066 = vmatpush1.bf16.msra.mxu0 %v2049
        %2067 = vmatprep.subr.bf16.mxu0 0
        %2068 = vmatpush1.bf16.msra.mxu0 %v2050
        %2069 = vmatprep.subr.bf16.mxu0 0
        %2070 = vmatpush1.bf16.msra.mxu0 %v2051
        %2071 = vmatprep.subr.bf16.mxu0 0
        %2072 = vmatpush1.bf16.msra.mxu0 %v2052
        %2073 = vmatprep.subr.bf16.mxu0 0
        %2074 = vmatpush1.bf16.msra.mxu0 %v2053
        %2075 = vmatprep.subr.bf16.mxu0 0
        %2076 = vmatpush1.bf16.msra.mxu0 %v2054
        %2077 = vmatprep.subr.bf16.mxu0 0
        %2078 = vmatpush1.bf16.msra.mxu0 %v2055
        %2079 = vmatprep.subr.bf16.mxu0 0
        %2080 = vmatpush1.bf16.msra.mxu0 %v2056
        %2081 = vmatprep.subr.bf16.mxu0 0
        %2082 = vmatpush1.bf16.msra.mxu0 0
        %2083 = vmatprep.subr.bf16.mxu0 0
        %2084 = vmatpush1.bf16.msra.mxu0 0
        %2085 = vmatprep.subr.bf16.mxu0 0
        %2086 = vmatpush1.bf16.msra.mxu0 0
        %2087 = vmatprep.subr.bf16.mxu0 0
        %2088 = vmatpush1.bf16.msra.mxu0 0
        %2089 = vmatprep.subr.bf16.mxu0 0
        %2090 = vmatpush1.bf16.msra.mxu0 0
        %2091 = vmatprep.subr.bf16.mxu0 0
        %2092 = vmatpush1.bf16.msra.mxu0 0
        %2093 = vmatprep.subr.bf16.mxu0 0
        %2094 = vmatpush1.bf16.msra.mxu0 0
        %2095 = vmatprep.subr.bf16.mxu0 0
        %2096 = vmatpush1.bf16.msra.mxu0 0
        %2097 = vmatprep.mubr.bf16.mxu0 0
        %2098 = vmatmul.mubr.bf16.gmra.mrb[0].mxu0 %v2011
        %v2099 = vpop.f32.mrb[0].mxu0
        %v2100 = vadd.f32 %v2016, %v2099
        %v2101 = vpop.f32.mrb[0].mxu0
        %v2102 = vpop.f32.mrb[0].mxu0
        %v2103 = vadd.f32 %v2016, %v2102
        %v2104 = vpop.f32.mrb[0].mxu0
        %2105 = vmatprep.mubr.bf16.mxu0 0
        %2106 = vmatmul.mubr.bf16.gmra.mrb[0].mxu0 %v2012
        %v2107 = vpop.f32.mrb[0].mxu0
        %v2108 = vadd.f32 %v2016, %v2107
        %v2109 = vpop.f32.mrb[0].mxu0
        %v2110 = vpop.f32.mrb[0].mxu0
        %v2111 = vadd.f32 %v2016, %v2110
        %v2112 = vpop.f32.mrb[0].mxu0
        %2113 = vdwg.mxu0
        %v2114 = vmul.f32 %v2100, 0.17677669
        %v2115 = vmul.f32 %v2103, 0.17677669
        %v2116 = vmul.f32 %v2108, 0.17677669
        %v2117 = vmul.f32 %v2111, 0.17677669
        %v2118 = vld [vmem:[%s389 + $0x10] sm:$0xff]
        %v2119 = vld [vmem:[%s389 + $0x38] sm:$0xff]
        %v2120 = vld [vmem:[%s389 + $0x60] sm:$0xff]
        %v2121 = vld [vmem:[%s389 + $0x88] sm:$0xff]
        %v2122 = vld [vmem:[%s389 + $0xb0] sm:$0xff]
        %v2123 = vld [vmem:[%s389 + $0xd8] sm:$0xff]
        %v2124 = vld [vmem:[%s389 + $0x100] sm:$0xff]
        %v2125 = vld [vmem:[%s389 + $0x128] sm:$0xff]
        %v2126 = vld [vmem:[%s389 + $0x150] sm:$0xff]
        %v2127 = vld [vmem:[%s389 + $0x178] sm:$0xff]
        %v2128 = vld [vmem:[%s389 + $0x1a0] sm:$0xff]
        %v2129 = vld [vmem:[%s389 + $0x1c8] sm:$0xff]
        %v2130 = vld [vmem:[%s389 + $0x1f0] sm:$0xff]
        %v2131 = vld [vmem:[%s389 + $0x218] sm:$0xff]
        %v2132 = vld [vmem:[%s389 + $0x240] sm:$0xff]
        %v2133 = vld [vmem:[%s389 + $0x268] sm:$0xff]
        %v2134 = vpack.c.bf16 %v1992, %v1991
        %v2135 = vpack.c.bf16 %v1994, %v1993
        %v2136 = vlaneseq
        %v2137 = vshrl.u32 %v2136, 7
        %v2138 = vsub.s32 1, %v2137
        %v2139 = vrot.slane %v477, %v2138
        %v2140 = vlaneseq
        %v2141 = vshrl.u32 %v2140, 7
        %v2142 = vsub.s32 1, %v2141
        %v2143 = vrot.slane %v478, %v2142
        %v2160 = vunpack.c.l.b16 %v2118
        %v2161 = vunpack.c.h.b16 %v2118
        %v2162 = vunpack.c.l.b16 %v2119
        %v2163 = vunpack.c.h.b16 %v2119
        %v2164 = vunpack.c.l.b16 %v2120
        %v2165 = vunpack.c.h.b16 %v2120
        %v2166 = vunpack.c.l.b16 %v2121
        %v2167 = vunpack.c.h.b16 %v2121
        %v2168 = vunpack.c.l.b16 %v2122
        %v2169 = vunpack.c.h.b16 %v2122
        %v2170 = vunpack.c.l.b16 %v2123
        %v2171 = vunpack.c.h.b16 %v2123
        %v2172 = vunpack.c.l.b16 %v2124
        %v2173 = vunpack.c.h.b16 %v2124
        %v2174 = vunpack.c.l.b16 %v2125
        %v2175 = vunpack.c.h.b16 %v2125
        %v2176 = vunpack.c.l.b16 %v2126
        %v2177 = vunpack.c.h.b16 %v2126
        %v2178 = vunpack.c.l.b16 %v2127
        %v2179 = vunpack.c.h.b16 %v2127
        %v2180 = vunpack.c.l.b16 %v2128
        %v2181 = vunpack.c.h.b16 %v2128
        %v2182 = vunpack.c.l.b16 %v2129
        %v2183 = vunpack.c.h.b16 %v2129
        %v2184 = vunpack.c.l.b16 %v2130
        %v2185 = vunpack.c.h.b16 %v2130
        %v2186 = vunpack.c.l.b16 %v2131
        %v2187 = vunpack.c.h.b16 %v2131
        %v2188 = vunpack.c.l.b16 %v2132
        %v2189 = vunpack.c.h.b16 %v2132
        %v2190 = vunpack.c.l.b16 %v2133
        %v2191 = vunpack.c.h.b16 %v2133
        %v2192 = vpack.c.b16 %v2162, %v2160
        %v2193 = vpack.c.b16 %v2163, %v2161
        %v2194 = vpack.c.b16 %v2166, %v2164
        %v2195 = vpack.c.b16 %v2167, %v2165
        %v2196 = vpack.c.b16 %v2170, %v2168
        %v2197 = vpack.c.b16 %v2171, %v2169
        %v2198 = vpack.c.b16 %v2174, %v2172
        %v2199 = vpack.c.b16 %v2175, %v2173
        %v2200 = vpack.c.b16 %v2178, %v2176
        %v2201 = vpack.c.b16 %v2179, %v2177
        %v2202 = vpack.c.b16 %v2182, %v2180
        %v2203 = vpack.c.b16 %v2183, %v2181
        %v2204 = vpack.c.b16 %v2186, %v2184
        %v2205 = vpack.c.b16 %v2187, %v2185
        %v2206 = vpack.c.b16 %v2190, %v2188
        %v2207 = vpack.c.b16 %v2191, %v2189
        %2224 = vmatprep.subr.bf16.mxu0 %v2193
        %2225 = vmatpush1.bf16.msra.mxu0 %v2192
        %2226 = vmatprep.subr.bf16.mxu0 %v2195
        %2227 = vmatpush1.bf16.msra.mxu0 %v2194
        %2228 = vmatprep.subr.bf16.mxu0 %v2197
        %2229 = vmatpush1.bf16.msra.mxu0 %v2196
        %2230 = vmatprep.subr.bf16.mxu0 %v2199
        %2231 = vmatpush1.bf16.msra.mxu0 %v2198
        %2232 = vmatprep.subr.bf16.mxu0 %v2201
        %2233 = vmatpush1.bf16.msra.mxu0 %v2200
        %2234 = vmatprep.subr.bf16.mxu0 %v2203
        %2235 = vmatpush1.bf16.msra.mxu0 %v2202
        %2236 = vmatprep.subr.bf16.mxu0 %v2205
        %2237 = vmatpush1.bf16.msra.mxu0 %v2204
        %2238 = vmatprep.subr.bf16.mxu0 %v2207
        %2239 = vmatpush1.bf16.msra.mxu0 %v2206
        %2240 = vmatprep.subr.bf16.mxu0 0
        %2241 = vmatpush1.bf16.msra.mxu0 0
        %2242 = vmatprep.subr.bf16.mxu0 0
        %2243 = vmatpush1.bf16.msra.mxu0 0
        %2244 = vmatprep.subr.bf16.mxu0 0
        %2245 = vmatpush1.bf16.msra.mxu0 0
        %2246 = vmatprep.subr.bf16.mxu0 0
        %2247 = vmatpush1.bf16.msra.mxu0 0
        %2248 = vmatprep.subr.bf16.mxu0 0
        %2249 = vmatpush1.bf16.msra.mxu0 0
        %2250 = vmatprep.subr.bf16.mxu0 0
        %2251 = vmatpush1.bf16.msra.mxu0 0
        %2252 = vmatprep.subr.bf16.mxu0 0
        %2253 = vmatpush1.bf16.msra.mxu0 0
        %2254 = vmatprep.subr.bf16.mxu0 0
        %2255 = vmatpush1.bf16.msra.mxu0 0
        %2256 = vmatprep.mubr.bf16.mxu0 0
        %2257 = vmatmul.mubr.bf16.gmra.mrb[0].mxu0 %v2134
        %v2258 = vpop.f32.mrb[0].mxu0
        %v2259 = vadd.f32 %v2139, %v2258
        %v2260 = vpop.f32.mrb[0].mxu0
        %v2261 = vadd.f32 %v2143, %v2260
        %v2262 = vpop.f32.mrb[0].mxu0
        %v2263 = vadd.f32 %v2139, %v2262
        %v2264 = vpop.f32.mrb[0].mxu0
        %v2265 = vadd.f32 %v2143, %v2264
        %2266 = vmatprep.mubr.bf16.mxu0 0
        %2267 = vmatmul.mubr.bf16.gmra.mrb[0].mxu0 %v2135
        %v2268 = vpop.f32.mrb[0].mxu0
        %v2269 = vadd.f32 %v2139, %v2268
        %v2270 = vpop.f32.mrb[0].mxu0
        %v2271 = vadd.f32 %v2143, %v2270
        %v2272 = vpop.f32.mrb[0].mxu0
        %v2273 = vadd.f32 %v2139, %v2272
        %v2274 = vpop.f32.mrb[0].mxu0
        %v2275 = vadd.f32 %v2143, %v2274
        %2276 = vdwg.mxu0
        %v2277 = vld [vmem:[%s389 + $0x1c] sm:$0xf]
        %v2278 = vld [vmem:[%s389 + $0x44] sm:$0xf]
        %v2279 = vld [vmem:[%s389 + $0x6c] sm:$0xf]
        %v2280 = vld [vmem:[%s389 + $0x94] sm:$0xf]
        %v2281 = vld [vmem:[%s389 + $0xbc] sm:$0xf]
        %v2282 = vld [vmem:[%s389 + $0xe4] sm:$0xf]
        %v2283 = vld [vmem:[%s389 + $0x10c] sm:$0xf]
        %v2284 = vld [vmem:[%s389 + $0x134] sm:$0xf]
        %v2285 = vld [vmem:[%s389 + $0x15c] sm:$0xf]
        %v2286 = vld [vmem:[%s389 + $0x184] sm:$0xf]
        %v2287 = vld [vmem:[%s389 + $0x1ac] sm:$0xf]
        %v2288 = vld [vmem:[%s389 + $0x1d4] sm:$0xf]
        %v2289 = vld [vmem:[%s389 + $0x1fc] sm:$0xf]
        %v2290 = vld [vmem:[%s389 + $0x224] sm:$0xf]
        %v2291 = vld [vmem:[%s389 + $0x24c] sm:$0xf]
        %v2292 = vld [vmem:[%s389 + $0x274] sm:$0xf]
        %v2293 = vpack.c.bf16 %v2115, %v2114
        %v2294 = vpack.c.bf16 %v2117, %v2116
        %v2295 = vpack.c.bf16 %v2263, %v2259
        %v2296 = vpack.c.bf16 %v2273, %v2269
        %v2298 = vsel %vm780, %v2293, 0
        %v2301 = vsel %vm780, %v2295, 0
        %2303 = vmatprep.subr.bf16.mxu0 0
        %2304 = vmatpush1.bf16.xpose.msra.mxu0 %v2301
        %2305 = vmatprep.subr.bf16.mxu0 0
        %2306 = vmatpush1.bf16.xpose.msra.mxu0 0
        %2307 = vmatprep.subr.bf16.mxu0 0
        %2308 = vmatpush1.bf16.xpose.msra.mxu0 0
        %2309 = vmatprep.subr.bf16.mxu0 0
        %2310 = vmatpush1.bf16.xpose.msra.mxu0 0
        %2311 = vmatprep.subr.bf16.mxu0 0
        %2312 = vmatpush1.bf16.xpose.msra.mxu0 0
        %2313 = vmatprep.subr.bf16.mxu0 0
        %2314 = vmatpush1.bf16.xpose.msra.mxu0 0
        %2315 = vmatprep.subr.bf16.mxu0 0
        %2316 = vmatpush1.bf16.xpose.msra.mxu0 0
        %2317 = vmatprep.subr.bf16.mxu0 0
        %2318 = vmatpush1.bf16.xpose.msra.mxu0 0
        %2319 = vmatprep.subr.bf16.mxu0 0
        %2320 = vmatpush1.bf16.xpose.msra.mxu0 0
        %2321 = vmatprep.subr.bf16.mxu0 0
        %2322 = vmatpush1.bf16.xpose.msra.mxu0 0
        %2323 = vmatprep.subr.bf16.mxu0 0
        %2324 = vmatpush1.bf16.xpose.msra.mxu0 0
        %2325 = vmatprep.subr.bf16.mxu0 0
        %2326 = vmatpush1.bf16.xpose.msra.mxu0 0
        %2327 = vmatprep.subr.bf16.mxu0 0
        %2328 = vmatpush1.bf16.xpose.msra.mxu0 0
        %2329 = vmatprep.subr.bf16.mxu0 0
        %2330 = vmatpush1.bf16.xpose.msra.mxu0 0
        %2331 = vmatprep.subr.bf16.mxu0 0
        %2332 = vmatpush1.bf16.xpose.msra.mxu0 0
        %2333 = vmatprep.subr.bf16.mxu0 0
        %2334 = vmatpush1.bf16.xpose.msra.mxu0 0
        %2335 = vmatprep.mubr.bf16.mxu0 0
        %2336 = vmatmul.mubr.bf16.gmra.mrb[0].mxu0 %v2298
        %v2337 = vpop.f32.mrb[0].mxu0
        %v2338 = vadd.f32 0.0, %v2337
        %v2339 = vpop.f32.mrb[0].mxu0
        %v2340 = vpop.f32.mrb[0].mxu0
        %v2341 = vadd.f32 0.0, %v2340
        %v2342 = vpop.f32.mrb[0].mxu0
        %2343 = vdwg.mxu0
        %v2345 = vsel %vm780, %v2294, 0
        %v2348 = vsel %vm780, %v2296, 0
        %2350 = vmatprep.subr.bf16.mxu0 0
        %2351 = vmatpush1.bf16.xpose.msra.mxu0 %v2348
        %2352 = vmatprep.subr.bf16.mxu0 0
        %2353 = vmatpush1.bf16.xpose.msra.mxu0 0
        %2354 = vmatprep.subr.bf16.mxu0 0
        %2355 = vmatpush1.bf16.xpose.msra.mxu0 0
        %2356 = vmatprep.subr.bf16.mxu0 0
        %2357 = vmatpush1.bf16.xpose.msra.mxu0 0
        %2358 = vmatprep.subr.bf16.mxu0 0
        %2359 = vmatpush1.bf16.xpose.msra.mxu0 0
        %2360 = vmatprep.subr.bf16.mxu0 0
        %2361 = vmatpush1.bf16.xpose.msra.mxu0 0
        %2362 = vmatprep.subr.bf16.mxu0 0
        %2363 = vmatpush1.bf16.xpose.msra.mxu0 0
        %2364 = vmatprep.subr.bf16.mxu0 0
        %2365 = vmatpush1.bf16.xpose.msra.mxu0 0
        %2366 = vmatprep.subr.bf16.mxu0 0
        %2367 = vmatpush1.bf16.xpose.msra.mxu0 0
        %2368 = vmatprep.subr.bf16.mxu0 0
        %2369 = vmatpush1.bf16.xpose.msra.mxu0 0
        %2370 = vmatprep.subr.bf16.mxu0 0
        %2371 = vmatpush1.bf16.xpose.msra.mxu0 0
        %2372 = vmatprep.subr.bf16.mxu0 0
        %2373 = vmatpush1.bf16.xpose.msra.mxu0 0
        %2374 = vmatprep.subr.bf16.mxu0 0
        %2375 = vmatpush1.bf16.xpose.msra.mxu0 0
        %2376 = vmatprep.subr.bf16.mxu0 0
        %2377 = vmatpush1.bf16.xpose.msra.mxu0 0
        %2378 = vmatprep.subr.bf16.mxu0 0
        %2379 = vmatpush1.bf16.xpose.msra.mxu0 0
        %2380 = vmatprep.subr.bf16.mxu0 0
        %2381 = vmatpush1.bf16.xpose.msra.mxu0 0
        %2382 = vmatprep.mubr.bf16.mxu0 0
        %2383 = vmatmul.mubr.bf16.gmra.mrb[0].mxu0 %v2345
        %v2384 = vpop.f32.mrb[0].mxu0
        %v2385 = vadd.f32 0.0, %v2384
        %v2386 = vpop.f32.mrb[0].mxu0
        %v2387 = vpop.f32.mrb[0].mxu0
        %v2388 = vadd.f32 0.0, %v2387
        %v2389 = vpop.f32.mrb[0].mxu0
        %2390 = vdwg.mxu0
        %v2391 = vsel %vm875, %v2338, -inf
        %2392 = vmax.xlane.f32.xlu0 %v2391
        %v2393 = vpop.xlane.xlu0 %2392
        %v2394 = vsel %vm875, %v2341, -inf
        %2395 = vmax.xlane.f32.xlu0 %v2394
        %v2396 = vpop.xlane.xlu0 %2395
        %v2397 = vsel %vm875, %v2385, -inf
        %2398 = vmax.xlane.f32.xlu0 %v2397
        %v2399 = vpop.xlane.xlu0 %2398
        %v2400 = vsel %vm875, %v2388, -inf
        %2401 = vmax.xlane.f32.xlu0 %v2400
        %v2402 = vpop.xlane.xlu0 %2401
        %v2403 = vsub.f32 %v2338, %v2393
        %v2404 = vsub.f32 %v2341, %v2396
        %v2405 = vsub.f32 %v2385, %v2399
        %v2406 = vsub.f32 %v2388, %v2402
        %v2407 = vmul.f32 %v2403, 1.442695
        %v2408 = vpow.pop %v2407
        %v2409 = vmul.f32 %v2404, 1.442695
        %v2410 = vpow.pop %v2409
        %v2411 = vmul.f32 %v2405, 1.442695
        %v2412 = vpow.pop %v2411
        %v2413 = vmul.f32 %v2406, 1.442695
        %v2414 = vpow.pop %v2413
        %v2415 = vsel %vm875, %v2408, 0.0
        %2416 = vadd.xlane.f32.xlu0 %v2415
        %v2417 = vpop.xlane.xlu0 %2416
        %v2418 = vsel %vm875, %v2410, 0.0
        %2419 = vadd.xlane.f32.xlu0 %v2418
        %v2420 = vpop.xlane.xlu0 %2419
        %v2421 = vsel %vm875, %v2412, 0.0
        %2422 = vadd.xlane.f32.xlu0 %v2421
        %v2423 = vpop.xlane.xlu0 %2422
        %v2424 = vsel %vm875, %v2414, 0.0
        %2425 = vadd.xlane.f32.xlu0 %v2424
        %v2426 = vpop.xlane.xlu0 %2425
        %v2427 = vrcp.pop %v2417
        %v2428 = vrcp.pop %v2420
        %v2429 = vrcp.pop %v2423
        %v2430 = vrcp.pop %v2426
        %v2431 = vmul.f32 %v2408, %v2427
        %v2432 = vmul.f32 %v2410, %v2428
        %v2433 = vmul.f32 %v2412, %v2429
        %v2434 = vmul.f32 %v2414, %v2430
        %v2435 = vpack.c.bf16 %v2432, %v2431
        %v2436 = vpack.c.bf16 %v2434, %v2433
        %v2437 = vpack.c.bf16 %v2265, %v2261
        %v2438 = vpack.c.bf16 %v2275, %v2271
        %v2440 = vsel %vm875, %v2435, 0
        %2442 = vmatprep.subr.bf16.mxu0 0
        %2443 = vmatpush1.bf16.msra.mxu0 %v2437
        %2444 = vmatprep.subr.bf16.mxu0 0
        %2445 = vmatpush1.bf16.msra.mxu0 0
        %2446 = vmatprep.subr.bf16.mxu0 0
        %2447 = vmatpush1.bf16.msra.mxu0 0
        %2448 = vmatprep.subr.bf16.mxu0 0
        %2449 = vmatpush1.bf16.msra.mxu0 0
        %2450 = vmatprep.subr.bf16.mxu0 0
        %2451 = vmatpush1.bf16.msra.mxu0 0
        %2452 = vmatprep.subr.bf16.mxu0 0
        %2453 = vmatpush1.bf16.msra.mxu0 0
        %2454 = vmatprep.subr.bf16.mxu0 0
        %2455 = vmatpush1.bf16.msra.mxu0 0
        %2456 = vmatprep.subr.bf16.mxu0 0
        %2457 = vmatpush1.bf16.msra.mxu0 0
        %2458 = vmatprep.subr.bf16.mxu0 0
        %2459 = vmatpush1.bf16.msra.mxu0 0
        %2460 = vmatprep.subr.bf16.mxu0 0
        %2461 = vmatpush1.bf16.msra.mxu0 0
        %2462 = vmatprep.subr.bf16.mxu0 0
        %2463 = vmatpush1.bf16.msra.mxu0 0
        %2464 = vmatprep.subr.bf16.mxu0 0
        %2465 = vmatpush1.bf16.msra.mxu0 0
        %2466 = vmatprep.subr.bf16.mxu0 0
        %2467 = vmatpush1.bf16.msra.mxu0 0
        %2468 = vmatprep.subr.bf16.mxu0 0
        %2469 = vmatpush1.bf16.msra.mxu0 0
        %2470 = vmatprep.subr.bf16.mxu0 0
        %2471 = vmatpush1.bf16.msra.mxu0 0
        %2472 = vmatprep.subr.bf16.mxu0 0
        %2473 = vmatpush1.bf16.msra.mxu0 0
        %2474 = vmatprep.mubr.bf16.mxu0 0
        %2475 = vmatmul.mubr.bf16.gmra.mrb[0].mxu0 %v2440
        %v2476 = vpop.f32.mrb[0].mxu0
        %v2477 = vadd.f32 0.0, %v2476
        %v2478 = vpop.f32.mrb[0].mxu0
        %v2479 = vpop.f32.mrb[0].mxu0
        %v2480 = vadd.f32 0.0, %v2479
        %v2481 = vpop.f32.mrb[0].mxu0
        %2482 = vdwg.mxu0
        %v2484 = vsel %vm875, %v2436, 0
        %2486 = vmatprep.subr.bf16.mxu0 0
        %2487 = vmatpush1.bf16.msra.mxu0 %v2438
        %2488 = vmatprep.subr.bf16.mxu0 0
        %2489 = vmatpush1.bf16.msra.mxu0 0
        %2490 = vmatprep.subr.bf16.mxu0 0
        %2491 = vmatpush1.bf16.msra.mxu0 0
        %2492 = vmatprep.subr.bf16.mxu0 0
        %2493 = vmatpush1.bf16.msra.mxu0 0
        %2494 = vmatprep.subr.bf16.mxu0 0
        %2495 = vmatpush1.bf16.msra.mxu0 0
        %2496 = vmatprep.subr.bf16.mxu0 0
        %2497 = vmatpush1.bf16.msra.mxu0 0
        %2498 = vmatprep.subr.bf16.mxu0 0
        %2499 = vmatpush1.bf16.msra.mxu0 0
        %2500 = vmatprep.subr.bf16.mxu0 0
        %2501 = vmatpush1.bf16.msra.mxu0 0
        %2502 = vmatprep.subr.bf16.mxu0 0
        %2503 = vmatpush1.bf16.msra.mxu0 0
        %2504 = vmatprep.subr.bf16.mxu0 0
        %2505 = vmatpush1.bf16.msra.mxu0 0
        %2506 = vmatprep.subr.bf16.mxu0 0
        %2507 = vmatpush1.bf16.msra.mxu0 0
        %2508 = vmatprep.subr.bf16.mxu0 0
        %2509 = vmatpush1.bf16.msra.mxu0 0
        %2510 = vmatprep.subr.bf16.mxu0 0
        %2511 = vmatpush1.bf16.msra.mxu0 0
        %2512 = vmatprep.subr.bf16.mxu0 0
        %2513 = vmatpush1.bf16.msra.mxu0 0
        %2514 = vmatprep.subr.bf16.mxu0 0
        %2515 = vmatpush1.bf16.msra.mxu0 0
        %2516 = vmatprep.subr.bf16.mxu0 0
        %2517 = vmatpush1.bf16.msra.mxu0 0
        %2518 = vmatprep.mubr.bf16.mxu0 0
        %2519 = vmatmul.mubr.bf16.gmra.mrb[0].mxu0 %v2484
        %v2520 = vpop.f32.mrb[0].mxu0
        %v2521 = vadd.f32 0.0, %v2520
        %v2522 = vpop.f32.mrb[0].mxu0
        %v2523 = vpop.f32.mrb[0].mxu0
        %v2524 = vadd.f32 0.0, %v2523
        %v2525 = vpop.f32.mrb[0].mxu0
        %2526 = vdwg.mxu0
        %2527 = vst.msk [vmem:[#allocation3] sm:$0xff] %vm780, %v2477
        %2528 = vst.msk [vmem:[#allocation3 + $0x8] sm:$0xff] %vm780, %v2480
        %2529 = vst.msk [vmem:[#allocation3 + $0x10] sm:$0xff] %vm780, %v2521
        %2530 = vst.msk [vmem:[#allocation3 + $0x18] sm:$0xff] %vm780, %v2524
        %2532 = vrot.lane.b32.xlu0 %v2293, 96
        %v2533 = vpop.permute.xlu0 %2532
        %2535 = vrot.lane.b32.xlu0 %v2295, 96
        %v2536 = vpop.permute.xlu0 %2535
        %v2538 = vsel %vm780, %v2533, 0
        %v2541 = vsel %vm780, %v2536, 0
        %2543 = vmatprep.subr.bf16.mxu0 0
        %2544 = vmatpush1.bf16.xpose.msra.mxu0 %v2541
        %2545 = vmatprep.subr.bf16.mxu0 0
        %2546 = vmatpush1.bf16.xpose.msra.mxu0 0
        %2547 = vmatprep.subr.bf16.mxu0 0
        %2548 = vmatpush1.bf16.xpose.msra.mxu0 0
        %2549 = vmatprep.subr.bf16.mxu0 0
        %2550 = vmatpush1.bf16.xpose.msra.mxu0 0
        %2551 = vmatprep.subr.bf16.mxu0 0
        %2552 = vmatpush1.bf16.xpose.msra.mxu0 0
        %2553 = vmatprep.subr.bf16.mxu0 0
        %2554 = vmatpush1.bf16.xpose.msra.mxu0 0
        %2555 = vmatprep.subr.bf16.mxu0 0
        %2556 = vmatpush1.bf16.xpose.msra.mxu0 0
        %2557 = vmatprep.subr.bf16.mxu0 0
        %2558 = vmatpush1.bf16.xpose.msra.mxu0 0
        %2559 = vmatprep.subr.bf16.mxu0 0
        %2560 = vmatpush1.bf16.xpose.msra.mxu0 0
        %2561 = vmatprep.subr.bf16.mxu0 0
        %2562 = vmatpush1.bf16.xpose.msra.mxu0 0
        %2563 = vmatprep.subr.bf16.mxu0 0
        %2564 = vmatpush1.bf16.xpose.msra.mxu0 0
        %2565 = vmatprep.subr.bf16.mxu0 0
        %2566 = vmatpush1.bf16.xpose.msra.mxu0 0
        %2567 = vmatprep.subr.bf16.mxu0 0
        %2568 = vmatpush1.bf16.xpose.msra.mxu0 0
        %2569 = vmatprep.subr.bf16.mxu0 0
        %2570 = vmatpush1.bf16.xpose.msra.mxu0 0
        %2571 = vmatprep.subr.bf16.mxu0 0
        %2572 = vmatpush1.bf16.xpose.msra.mxu0 0
        %2573 = vmatprep.subr.bf16.mxu0 0
        %2574 = vmatpush1.bf16.xpose.msra.mxu0 0
        %2575 = vmatprep.mubr.bf16.mxu0 0
        %2576 = vmatmul.mubr.bf16.gmra.mrb[0].mxu0 %v2538
        %v2577 = vpop.f32.mrb[0].mxu0
        %v2578 = vadd.f32 0.0, %v2577
        %v2579 = vpop.f32.mrb[0].mxu0
        %v2580 = vpop.f32.mrb[0].mxu0
        %v2581 = vadd.f32 0.0, %v2580
        %v2582 = vpop.f32.mrb[0].mxu0
        %2583 = vdwg.mxu0
        %2585 = vrot.lane.b32.xlu0 %v2294, 96
        %v2586 = vpop.permute.xlu0 %2585
        %2588 = vrot.lane.b32.xlu0 %v2296, 96
        %v2589 = vpop.permute.xlu0 %2588
        %v2591 = vsel %vm780, %v2586, 0
        %v2594 = vsel %vm780, %v2589, 0
        %2596 = vmatprep.subr.bf16.mxu0 0
        %2597 = vmatpush1.bf16.xpose.msra.mxu0 %v2594
        %2598 = vmatprep.subr.bf16.mxu0 0
        %2599 = vmatpush1.bf16.xpose.msra.mxu0 0
        %2600 = vmatprep.subr.bf16.mxu0 0
        %2601 = vmatpush1.bf16.xpose.msra.mxu0 0
        %2602 = vmatprep.subr.bf16.mxu0 0
        %2603 = vmatpush1.bf16.xpose.msra.mxu0 0
        %2604 = vmatprep.subr.bf16.mxu0 0
        %2605 = vmatpush1.bf16.xpose.msra.mxu0 0
        %2606 = vmatprep.subr.bf16.mxu0 0
        %2607 = vmatpush1.bf16.xpose.msra.mxu0 0
        %2608 = vmatprep.subr.bf16.mxu0 0
        %2609 = vmatpush1.bf16.xpose.msra.mxu0 0
        %2610 = vmatprep.subr.bf16.mxu0 0
        %2611 = vmatpush1.bf16.xpose.msra.mxu0 0
        %2612 = vmatprep.subr.bf16.mxu0 0
        %2613 = vmatpush1.bf16.xpose.msra.mxu0 0
        %2614 = vmatprep.subr.bf16.mxu0 0
        %2615 = vmatpush1.bf16.xpose.msra.mxu0 0
        %2616 = vmatprep.subr.bf16.mxu0 0
        %2617 = vmatpush1.bf16.xpose.msra.mxu0 0
        %2618 = vmatprep.subr.bf16.mxu0 0
        %2619 = vmatpush1.bf16.xpose.msra.mxu0 0
        %2620 = vmatprep.subr.bf16.mxu0 0
        %2621 = vmatpush1.bf16.xpose.msra.mxu0 0
        %2622 = vmatprep.subr.bf16.mxu0 0
        %2623 = vmatpush1.bf16.xpose.msra.mxu0 0
        %2624 = vmatprep.subr.bf16.mxu0 0
        %2625 = vmatpush1.bf16.xpose.msra.mxu0 0
        %2626 = vmatprep.subr.bf16.mxu0 0
        %2627 = vmatpush1.bf16.xpose.msra.mxu0 0
        %2628 = vmatprep.mubr.bf16.mxu0 0
        %2629 = vmatmul.mubr.bf16.gmra.mrb[0].mxu0 %v2591
        %v2630 = vpop.f32.mrb[0].mxu0
        %v2631 = vadd.f32 0.0, %v2630
        %v2632 = vpop.f32.mrb[0].mxu0
        %v2633 = vpop.f32.mrb[0].mxu0
        %v2634 = vadd.f32 0.0, %v2633
        %v2635 = vpop.f32.mrb[0].mxu0
        %2636 = vdwg.mxu0
        %v2637 = vsel %vm875, %v2578, -inf
        %2638 = vmax.xlane.f32.xlu0 %v2637
        %v2639 = vpop.xlane.xlu0 %2638
        %v2640 = vsel %vm875, %v2581, -inf
        %2641 = vmax.xlane.f32.xlu0 %v2640
        %v2642 = vpop.xlane.xlu0 %2641
        %v2643 = vsel %vm875, %v2631, -inf
        %2644 = vmax.xlane.f32.xlu0 %v2643
        %v2645 = vpop.xlane.xlu0 %2644
        %v2646 = vsel %vm875, %v2634, -inf
        %2647 = vmax.xlane.f32.xlu0 %v2646
        %v2648 = vpop.xlane.xlu0 %2647
        %v2649 = vsub.f32 %v2578, %v2639
        %v2650 = vsub.f32 %v2581, %v2642
        %v2651 = vsub.f32 %v2631, %v2645
        %v2652 = vsub.f32 %v2634, %v2648
        %v2653 = vmul.f32 %v2649, 1.442695
        %v2654 = vpow.pop %v2653
        %v2655 = vmul.f32 %v2650, 1.442695
        %v2656 = vpow.pop %v2655
        %v2657 = vmul.f32 %v2651, 1.442695
        %v2658 = vpow.pop %v2657
        %v2659 = vmul.f32 %v2652, 1.442695
        %v2660 = vpow.pop %v2659
        %v2661 = vsel %vm875, %v2654, 0.0
        %2662 = vadd.xlane.f32.xlu0 %v2661
        %v2663 = vpop.xlane.xlu0 %2662
        %v2664 = vsel %vm875, %v2656, 0.0
        %2665 = vadd.xlane.f32.xlu0 %v2664
        %v2666 = vpop.xlane.xlu0 %2665
        %v2667 = vsel %vm875, %v2658, 0.0
        %2668 = vadd.xlane.f32.xlu0 %v2667
        %v2669 = vpop.xlane.xlu0 %2668
        %v2670 = vsel %vm875, %v2660, 0.0
        %2671 = vadd.xlane.f32.xlu0 %v2670
        %v2672 = vpop.xlane.xlu0 %2671
        %v2673 = vrcp.pop %v2663
        %v2674 = vrcp.pop %v2666
        %v2675 = vrcp.pop %v2669
        %v2676 = vrcp.pop %v2672
        %v2677 = vmul.f32 %v2654, %v2673
        %v2678 = vmul.f32 %v2656, %v2674
        %v2679 = vmul.f32 %v2658, %v2675
        %v2680 = vmul.f32 %v2660, %v2676
        %v2681 = vpack.c.bf16 %v2678, %v2677
        %v2682 = vpack.c.bf16 %v2680, %v2679
        %2684 = vrot.lane.b32.xlu0 %v2437, 96
        %v2685 = vpop.permute.xlu0 %2684
        %v2688 = vsel %vm875, %v2681, 0
        %2690 = vmatprep.subr.bf16.mxu0 0
        %2691 = vmatpush1.bf16.msra.mxu0 %v2685
        %2692 = vmatprep.subr.bf16.mxu0 0
        %2693 = vmatpush1.bf16.msra.mxu0 0
        %2694 = vmatprep.subr.bf16.mxu0 0
        %2695 = vmatpush1.bf16.msra.mxu0 0
        %2696 = vmatprep.subr.bf16.mxu0 0
        %2697 = vmatpush1.bf16.msra.mxu0 0
        %2698 = vmatprep.subr.bf16.mxu0 0
        %2699 = vmatpush1.bf16.msra.mxu0 0
        %2700 = vmatprep.subr.bf16.mxu0 0
        %2701 = vmatpush1.bf16.msra.mxu0 0
        %2702 = vmatprep.subr.bf16.mxu0 0
        %2703 = vmatpush1.bf16.msra.mxu0 0
        %2704 = vmatprep.subr.bf16.mxu0 0
        %2705 = vmatpush1.bf16.msra.mxu0 0
        %2706 = vmatprep.subr.bf16.mxu0 0
        %2707 = vmatpush1.bf16.msra.mxu0 0
        %2708 = vmatprep.subr.bf16.mxu0 0
        %2709 = vmatpush1.bf16.msra.mxu0 0
        %2710 = vmatprep.subr.bf16.mxu0 0
        %2711 = vmatpush1.bf16.msra.mxu0 0
        %2712 = vmatprep.subr.bf16.mxu0 0
        %2713 = vmatpush1.bf16.msra.mxu0 0
        %2714 = vmatprep.subr.bf16.mxu0 0
        %2715 = vmatpush1.bf16.msra.mxu0 0
        %2716 = vmatprep.subr.bf16.mxu0 0
        %2717 = vmatpush1.bf16.msra.mxu0 0
        %2718 = vmatprep.subr.bf16.mxu0 0
        %2719 = vmatpush1.bf16.msra.mxu0 0
        %2720 = vmatprep.subr.bf16.mxu0 0
        %2721 = vmatpush1.bf16.msra.mxu0 0
        %2722 = vmatprep.mubr.bf16.mxu0 0
        %2723 = vmatmul.mubr.bf16.gmra.mrb[0].mxu0 %v2688
        %v2724 = vpop.f32.mrb[0].mxu0
        %v2725 = vadd.f32 0.0, %v2724
        %v2726 = vpop.f32.mrb[0].mxu0
        %v2727 = vpop.f32.mrb[0].mxu0
        %v2728 = vadd.f32 0.0, %v2727
        %v2729 = vpop.f32.mrb[0].mxu0
        %2730 = vdwg.mxu0
        %2732 = vrot.lane.b32.xlu0 %v2438, 96
        %v2733 = vpop.permute.xlu0 %2732
        %v2736 = vsel %vm875, %v2682, 0
        %2738 = vmatprep.subr.bf16.mxu0 0
        %2739 = vmatpush1.bf16.msra.mxu0 %v2733
        %2740 = vmatprep.subr.bf16.mxu0 0
        %2741 = vmatpush1.bf16.msra.mxu0 0
        %2742 = vmatprep.subr.bf16.mxu0 0
        %2743 = vmatpush1.bf16.msra.mxu0 0
        %2744 = vmatprep.subr.bf16.mxu0 0
        %2745 = vmatpush1.bf16.msra.mxu0 0
        %2746 = vmatprep.subr.bf16.mxu0 0
        %2747 = vmatpush1.bf16.msra.mxu0 0
        %2748 = vmatprep.subr.bf16.mxu0 0
        %2749 = vmatpush1.bf16.msra.mxu0 0
        %2750 = vmatprep.subr.bf16.mxu0 0
        %2751 = vmatpush1.bf16.msra.mxu0 0
        %2752 = vmatprep.subr.bf16.mxu0 0
        %2753 = vmatpush1.bf16.msra.mxu0 0
        %2754 = vmatprep.subr.bf16.mxu0 0
        %2755 = vmatpush1.bf16.msra.mxu0 0
        %2756 = vmatprep.subr.bf16.mxu0 0
        %2757 = vmatpush1.bf16.msra.mxu0 0
        %2758 = vmatprep.subr.bf16.mxu0 0
        %2759 = vmatpush1.bf16.msra.mxu0 0
        %2760 = vmatprep.subr.bf16.mxu0 0
        %2761 = vmatpush1.bf16.msra.mxu0 0
        %2762 = vmatprep.subr.bf16.mxu0 0
        %2763 = vmatpush1.bf16.msra.mxu0 0
        %2764 = vmatprep.subr.bf16.mxu0 0
        %2765 = vmatpush1.bf16.msra.mxu0 0
        %2766 = vmatprep.subr.bf16.mxu0 0
        %2767 = vmatpush1.bf16.msra.mxu0 0
        %2768 = vmatprep.subr.bf16.mxu0 0
        %2769 = vmatpush1.bf16.msra.mxu0 0
        %2770 = vmatprep.mubr.bf16.mxu0 0
        %2771 = vmatmul.mubr.bf16.gmra.mrb[0].mxu0 %v2736
        %v2772 = vpop.f32.mrb[0].mxu0
        %v2773 = vadd.f32 0.0, %v2772
        %v2774 = vpop.f32.mrb[0].mxu0
        %v2775 = vpop.f32.mrb[0].mxu0
        %v2776 = vadd.f32 0.0, %v2775
        %v2777 = vpop.f32.mrb[0].mxu0
        %2778 = vdwg.mxu0
        %2783 = vrot.lane.b32.xlu0 %v2725, 32
        %v2784 = vpop.permute.xlu0 %2783
        %2785 = vrot.lane.b32.xlu0 %v2728, 32
        %v2786 = vpop.permute.xlu0 %2785
        %2787 = vrot.lane.b32.xlu0 %v2773, 32
        %v2788 = vpop.permute.xlu0 %2787
        %2789 = vrot.lane.b32.xlu0 %v2776, 32
        %v2790 = vpop.permute.xlu0 %2789
        %2795 = vst.msk [vmem:[#allocation3] sm:$0xff] %vm1280, %v2784
        %2796 = vst.msk [vmem:[#allocation3 + $0x8] sm:$0xff] %vm1280, %v2786
        %2797 = vst.msk [vmem:[#allocation3 + $0x10] sm:$0xff] %vm1280, %v2788
        %2798 = vst.msk [vmem:[#allocation3 + $0x18] sm:$0xff] %vm1280, %v2790
        %2799 = vrot.lane.b32.xlu0 %v2293, 64
        %v2800 = vpop.permute.xlu0 %2799
        %2801 = vrot.lane.b32.xlu0 %v2295, 64
        %v2802 = vpop.permute.xlu0 %2801
        %v2804 = vsel %vm780, %v2800, 0
        %v2807 = vsel %vm780, %v2802, 0
        %2809 = vmatprep.subr.bf16.mxu0 0
        %2810 = vmatpush1.bf16.xpose.msra.mxu0 %v2807
        %2811 = vmatprep.subr.bf16.mxu0 0
        %2812 = vmatpush1.bf16.xpose.msra.mxu0 0
        %2813 = vmatprep.subr.bf16.mxu0 0
        %2814 = vmatpush1.bf16.xpose.msra.mxu0 0
        %2815 = vmatprep.subr.bf16.mxu0 0
        %2816 = vmatpush1.bf16.xpose.msra.mxu0 0
        %2817 = vmatprep.subr.bf16.mxu0 0
        %2818 = vmatpush1.bf16.xpose.msra.mxu0 0
        %2819 = vmatprep.subr.bf16.mxu0 0
        %2820 = vmatpush1.bf16.xpose.msra.mxu0 0
        %2821 = vmatprep.subr.bf16.mxu0 0
        %2822 = vmatpush1.bf16.xpose.msra.mxu0 0
        %2823 = vmatprep.subr.bf16.mxu0 0
        %2824 = vmatpush1.bf16.xpose.msra.mxu0 0
        %2825 = vmatprep.subr.bf16.mxu0 0
        %2826 = vmatpush1.bf16.xpose.msra.mxu0 0
        %2827 = vmatprep.subr.bf16.mxu0 0
        %2828 = vmatpush1.bf16.xpose.msra.mxu0 0
        %2829 = vmatprep.subr.bf16.mxu0 0
        %2830 = vmatpush1.bf16.xpose.msra.mxu0 0
        %2831 = vmatprep.subr.bf16.mxu0 0
        %2832 = vmatpush1.bf16.xpose.msra.mxu0 0
        %2833 = vmatprep.subr.bf16.mxu0 0
        %2834 = vmatpush1.bf16.xpose.msra.mxu0 0
        %2835 = vmatprep.subr.bf16.mxu0 0
        %2836 = vmatpush1.bf16.xpose.msra.mxu0 0
        %2837 = vmatprep.subr.bf16.mxu0 0
        %2838 = vmatpush1.bf16.xpose.msra.mxu0 0
        %2839 = vmatprep.subr.bf16.mxu0 0
        %2840 = vmatpush1.bf16.xpose.msra.mxu0 0
        %2841 = vmatprep.mubr.bf16.mxu0 0
        %2842 = vmatmul.mubr.bf16.gmra.mrb[0].mxu0 %v2804
        %v2843 = vpop.f32.mrb[0].mxu0
        %v2844 = vadd.f32 0.0, %v2843
        %v2845 = vpop.f32.mrb[0].mxu0
        %v2846 = vpop.f32.mrb[0].mxu0
        %v2847 = vadd.f32 0.0, %v2846
        %v2848 = vpop.f32.mrb[0].mxu0
        %2849 = vdwg.mxu0
        %2850 = vrot.lane.b32.xlu0 %v2294, 64
        %v2851 = vpop.permute.xlu0 %2850
        %2852 = vrot.lane.b32.xlu0 %v2296, 64
        %v2853 = vpop.permute.xlu0 %2852
        %v2855 = vsel %vm780, %v2851, 0
        %v2858 = vsel %vm780, %v2853, 0
        %2860 = vmatprep.subr.bf16.mxu0 0
        %2861 = vmatpush1.bf16.xpose.msra.mxu0 %v2858
        %2862 = vmatprep.subr.bf16.mxu0 0
        %2863 = vmatpush1.bf16.xpose.msra.mxu0 0
        %2864 = vmatprep.subr.bf16.mxu0 0
        %2865 = vmatpush1.bf16.xpose.msra.mxu0 0
        %2866 = vmatprep.subr.bf16.mxu0 0
        %2867 = vmatpush1.bf16.xpose.msra.mxu0 0
        %2868 = vmatprep.subr.bf16.mxu0 0
        %2869 = vmatpush1.bf16.xpose.msra.mxu0 0
        %2870 = vmatprep.subr.bf16.mxu0 0
        %2871 = vmatpush1.bf16.xpose.msra.mxu0 0
        %2872 = vmatprep.subr.bf16.mxu0 0
        %2873 = vmatpush1.bf16.xpose.msra.mxu0 0
        %2874 = vmatprep.subr.bf16.mxu0 0
        %2875 = vmatpush1.bf16.xpose.msra.mxu0 0
        %2876 = vmatprep.subr.bf16.mxu0 0
        %2877 = vmatpush1.bf16.xpose.msra.mxu0 0
        %2878 = vmatprep.subr.bf16.mxu0 0
        %2879 = vmatpush1.bf16.xpose.msra.mxu0 0
        %2880 = vmatprep.subr.bf16.mxu0 0
        %2881 = vmatpush1.bf16.xpose.msra.mxu0 0
        %2882 = vmatprep.subr.bf16.mxu0 0
        %2883 = vmatpush1.bf16.xpose.msra.mxu0 0
        %2884 = vmatprep.subr.bf16.mxu0 0
        %2885 = vmatpush1.bf16.xpose.msra.mxu0 0
        %2886 = vmatprep.subr.bf16.mxu0 0
        %2887 = vmatpush1.bf16.xpose.msra.mxu0 0
        %2888 = vmatprep.subr.bf16.mxu0 0
        %2889 = vmatpush1.bf16.xpose.msra.mxu0 0
        %2890 = vmatprep.subr.bf16.mxu0 0
        %2891 = vmatpush1.bf16.xpose.msra.mxu0 0
        %2892 = vmatprep.mubr.bf16.mxu0 0
        %2893 = vmatmul.mubr.bf16.gmra.mrb[0].mxu0 %v2855
        %v2894 = vpop.f32.mrb[0].mxu0
        %v2895 = vadd.f32 0.0, %v2894
        %v2896 = vpop.f32.mrb[0].mxu0
        %v2897 = vpop.f32.mrb[0].mxu0
        %v2898 = vadd.f32 0.0, %v2897
        %v2899 = vpop.f32.mrb[0].mxu0
        %2900 = vdwg.mxu0
        %v2901 = vsel %vm875, %v2844, -inf
        %2902 = vmax.xlane.f32.xlu0 %v2901
        %v2903 = vpop.xlane.xlu0 %2902
        %v2904 = vsel %vm875, %v2847, -inf
        %2905 = vmax.xlane.f32.xlu0 %v2904
        %v2906 = vpop.xlane.xlu0 %2905
        %v2907 = vsel %vm875, %v2895, -inf
        %2908 = vmax.xlane.f32.xlu0 %v2907
        %v2909 = vpop.xlane.xlu0 %2908
        %v2910 = vsel %vm875, %v2898, -inf
        %2911 = vmax.xlane.f32.xlu0 %v2910
        %v2912 = vpop.xlane.xlu0 %2911
        %v2913 = vsub.f32 %v2844, %v2903
        %v2914 = vsub.f32 %v2847, %v2906
        %v2915 = vsub.f32 %v2895, %v2909
        %v2916 = vsub.f32 %v2898, %v2912
        %v2917 = vmul.f32 %v2913, 1.442695
        %v2918 = vpow.pop %v2917
        %v2919 = vmul.f32 %v2914, 1.442695
        %v2920 = vpow.pop %v2919
        %v2921 = vmul.f32 %v2915, 1.442695
        %v2922 = vpow.pop %v2921
        %v2923 = vmul.f32 %v2916, 1.442695
        %v2924 = vpow.pop %v2923
        %v2925 = vsel %vm875, %v2918, 0.0
        %2926 = vadd.xlane.f32.xlu0 %v2925
        %v2927 = vpop.xlane.xlu0 %2926
        %v2928 = vsel %vm875, %v2920, 0.0
        %2929 = vadd.xlane.f32.xlu0 %v2928
        %v2930 = vpop.xlane.xlu0 %2929
        %v2931 = vsel %vm875, %v2922, 0.0
        %2932 = vadd.xlane.f32.xlu0 %v2931
        %v2933 = vpop.xlane.xlu0 %2932
        %v2934 = vsel %vm875, %v2924, 0.0
        %2935 = vadd.xlane.f32.xlu0 %v2934
        %v2936 = vpop.xlane.xlu0 %2935
        %v2937 = vrcp.pop %v2927
        %v2938 = vrcp.pop %v2930
        %v2939 = vrcp.pop %v2933
        %v2940 = vrcp.pop %v2936
        %v2941 = vmul.f32 %v2918, %v2937
        %v2942 = vmul.f32 %v2920, %v2938
        %v2943 = vmul.f32 %v2922, %v2939
        %v2944 = vmul.f32 %v2924, %v2940
        %v2945 = vpack.c.bf16 %v2942, %v2941
        %v2946 = vpack.c.bf16 %v2944, %v2943
        %2947 = vrot.lane.b32.xlu0 %v2437, 64
        %v2948 = vpop.permute.xlu0 %2947
        %v2951 = vsel %vm875, %v2945, 0
        %2953 = vmatprep.subr.bf16.mxu0 0
        %2954 = vmatpush1.bf16.msra.mxu0 %v2948
        %2955 = vmatprep.subr.bf16.mxu0 0
        %2956 = vmatpush1.bf16.msra.mxu0 0
        %2957 = vmatprep.subr.bf16.mxu0 0
        %2958 = vmatpush1.bf16.msra.mxu0 0
        %2959 = vmatprep.subr.bf16.mxu0 0
        %2960 = vmatpush1.bf16.msra.mxu0 0
        %2961 = vmatprep.subr.bf16.mxu0 0
        %2962 = vmatpush1.bf16.msra.mxu0 0
        %2963 = vmatprep.subr.bf16.mxu0 0
        %2964 = vmatpush1.bf16.msra.mxu0 0
        %2965 = vmatprep.subr.bf16.mxu0 0
        %2966 = vmatpush1.bf16.msra.mxu0 0
        %2967 = vmatprep.subr.bf16.mxu0 0
        %2968 = vmatpush1.bf16.msra.mxu0 0
        %2969 = vmatprep.subr.bf16.mxu0 0
        %2970 = vmatpush1.bf16.msra.mxu0 0
        %2971 = vmatprep.subr.bf16.mxu0 0
        %2972 = vmatpush1.bf16.msra.mxu0 0
        %2973 = vmatprep.subr.bf16.mxu0 0
        %2974 = vmatpush1.bf16.msra.mxu0 0
        %2975 = vmatprep.subr.bf16.mxu0 0
        %2976 = vmatpush1.bf16.msra.mxu0 0
        %2977 = vmatprep.subr.bf16.mxu0 0
        %2978 = vmatpush1.bf16.msra.mxu0 0
        %2979 = vmatprep.subr.bf16.mxu0 0
        %2980 = vmatpush1.bf16.msra.mxu0 0
        %2981 = vmatprep.subr.bf16.mxu0 0
        %2982 = vmatpush1.bf16.msra.mxu0 0
        %2983 = vmatprep.subr.bf16.mxu0 0
        %2984 = vmatpush1.bf16.msra.mxu0 0
        %2985 = vmatprep.mubr.bf16.mxu0 0
        %2986 = vmatmul.mubr.bf16.gmra.mrb[0].mxu0 %v2951
        %v2987 = vpop.f32.mrb[0].mxu0
        %v2988 = vadd.f32 0.0, %v2987
        %v2989 = vpop.f32.mrb[0].mxu0
        %v2990 = vpop.f32.mrb[0].mxu0
        %v2991 = vadd.f32 0.0, %v2990
        %v2992 = vpop.f32.mrb[0].mxu0
        %2993 = vdwg.mxu0
        %2994 = vrot.lane.b32.xlu0 %v2438, 64
        %v2995 = vpop.permute.xlu0 %2994
        %v2998 = vsel %vm875, %v2946, 0
        %3000 = vmatprep.subr.bf16.mxu0 0
        %3001 = vmatpush1.bf16.msra.mxu0 %v2995
        %3002 = vmatprep.subr.bf16.mxu0 0
        %3003 = vmatpush1.bf16.msra.mxu0 0
        %3004 = vmatprep.subr.bf16.mxu0 0
        %3005 = vmatpush1.bf16.msra.mxu0 0
        %3006 = vmatprep.subr.bf16.mxu0 0
        %3007 = vmatpush1.bf16.msra.mxu0 0
        %3008 = vmatprep.subr.bf16.mxu0 0
        %3009 = vmatpush1.bf16.msra.mxu0 0
        %3010 = vmatprep.subr.bf16.mxu0 0
        %3011 = vmatpush1.bf16.msra.mxu0 0
        %3012 = vmatprep.subr.bf16.mxu0 0
        %3013 = vmatpush1.bf16.msra.mxu0 0
        %3014 = vmatprep.subr.bf16.mxu0 0
        %3015 = vmatpush1.bf16.msra.mxu0 0
        %3016 = vmatprep.subr.bf16.mxu0 0
        %3017 = vmatpush1.bf16.msra.mxu0 0
        %3018 = vmatprep.subr.bf16.mxu0 0
        %3019 = vmatpush1.bf16.msra.mxu0 0
        %3020 = vmatprep.subr.bf16.mxu0 0
        %3021 = vmatpush1.bf16.msra.mxu0 0
        %3022 = vmatprep.subr.bf16.mxu0 0
        %3023 = vmatpush1.bf16.msra.mxu0 0
        %3024 = vmatprep.subr.bf16.mxu0 0
        %3025 = vmatpush1.bf16.msra.mxu0 0
        %3026 = vmatprep.subr.bf16.mxu0 0
        %3027 = vmatpush1.bf16.msra.mxu0 0
        %3028 = vmatprep.subr.bf16.mxu0 0
        %3029 = vmatpush1.bf16.msra.mxu0 0
        %3030 = vmatprep.subr.bf16.mxu0 0
        %3031 = vmatpush1.bf16.msra.mxu0 0
        %3032 = vmatprep.mubr.bf16.mxu0 0
        %3033 = vmatmul.mubr.bf16.gmra.mrb[0].mxu0 %v2998
        %v3034 = vpop.f32.mrb[0].mxu0
        %v3035 = vadd.f32 0.0, %v3034
        %v3036 = vpop.f32.mrb[0].mxu0
        %v3037 = vpop.f32.mrb[0].mxu0
        %v3038 = vadd.f32 0.0, %v3037
        %v3039 = vpop.f32.mrb[0].mxu0
        %3040 = vdwg.mxu0
        %3045 = vrot.lane.b32.xlu0 %v2988, 64
        %v3046 = vpop.permute.xlu0 %3045
        %3047 = vrot.lane.b32.xlu0 %v2991, 64
        %v3048 = vpop.permute.xlu0 %3047
        %3049 = vrot.lane.b32.xlu0 %v3035, 64
        %v3050 = vpop.permute.xlu0 %3049
        %3051 = vrot.lane.b32.xlu0 %v3038, 64
        %v3052 = vpop.permute.xlu0 %3051
        %3057 = vst.msk [vmem:[#allocation3] sm:$0xff] %vm1543, %v3046
        %3058 = vst.msk [vmem:[#allocation3 + $0x8] sm:$0xff] %vm1543, %v3048
        %3059 = vst.msk [vmem:[#allocation3 + $0x10] sm:$0xff] %vm1543, %v3050
        %3060 = vst.msk [vmem:[#allocation3 + $0x18] sm:$0xff] %vm1543, %v3052
        %3061 = vrot.lane.b32.xlu0 %v2293, 32
        %v3062 = vpop.permute.xlu0 %3061
        %3063 = vrot.lane.b32.xlu0 %v2295, 32
        %v3064 = vpop.permute.xlu0 %3063
        %v3066 = vsel %vm780, %v3062, 0
        %v3069 = vsel %vm780, %v3064, 0
        %3071 = vmatprep.subr.bf16.mxu0 0
        %3072 = vmatpush1.bf16.xpose.msra.mxu0 %v3069
        %3073 = vmatprep.subr.bf16.mxu0 0
        %3074 = vmatpush1.bf16.xpose.msra.mxu0 0
        %3075 = vmatprep.subr.bf16.mxu0 0
        %3076 = vmatpush1.bf16.xpose.msra.mxu0 0
        %3077 = vmatprep.subr.bf16.mxu0 0
        %3078 = vmatpush1.bf16.xpose.msra.mxu0 0
        %3079 = vmatprep.subr.bf16.mxu0 0
        %3080 = vmatpush1.bf16.xpose.msra.mxu0 0
        %3081 = vmatprep.subr.bf16.mxu0 0
        %3082 = vmatpush1.bf16.xpose.msra.mxu0 0
        %3083 = vmatprep.subr.bf16.mxu0 0
        %3084 = vmatpush1.bf16.xpose.msra.mxu0 0
        %3085 = vmatprep.subr.bf16.mxu0 0
        %3086 = vmatpush1.bf16.xpose.msra.mxu0 0
        %3087 = vmatprep.subr.bf16.mxu0 0
        %3088 = vmatpush1.bf16.xpose.msra.mxu0 0
        %3089 = vmatprep.subr.bf16.mxu0 0
        %3090 = vmatpush1.bf16.xpose.msra.mxu0 0
        %3091 = vmatprep.subr.bf16.mxu0 0
        %3092 = vmatpush1.bf16.xpose.msra.mxu0 0
        %3093 = vmatprep.subr.bf16.mxu0 0
        %3094 = vmatpush1.bf16.xpose.msra.mxu0 0
        %3095 = vmatprep.subr.bf16.mxu0 0
        %3096 = vmatpush1.bf16.xpose.msra.mxu0 0
        %3097 = vmatprep.subr.bf16.mxu0 0
        %3098 = vmatpush1.bf16.xpose.msra.mxu0 0
        %3099 = vmatprep.subr.bf16.mxu0 0
        %3100 = vmatpush1.bf16.xpose.msra.mxu0 0
        %3101 = vmatprep.subr.bf16.mxu0 0
        %3102 = vmatpush1.bf16.xpose.msra.mxu0 0
        %3103 = vmatprep.mubr.bf16.mxu0 0
        %3104 = vmatmul.mubr.bf16.gmra.mrb[0].mxu0 %v3066
        %v3105 = vpop.f32.mrb[0].mxu0
        %v3106 = vadd.f32 0.0, %v3105
        %v3107 = vpop.f32.mrb[0].mxu0
        %v3108 = vpop.f32.mrb[0].mxu0
        %v3109 = vadd.f32 0.0, %v3108
        %v3110 = vpop.f32.mrb[0].mxu0
        %3111 = vdwg.mxu0
        %3112 = vrot.lane.b32.xlu0 %v2294, 32
        %v3113 = vpop.permute.xlu0 %3112
        %3114 = vrot.lane.b32.xlu0 %v2296, 32
        %v3115 = vpop.permute.xlu0 %3114
        %v3117 = vsel %vm780, %v3113, 0
        %v3120 = vsel %vm780, %v3115, 0
        %3122 = vmatprep.subr.bf16.mxu0 0
        %3123 = vmatpush1.bf16.xpose.msra.mxu0 %v3120
        %3124 = vmatprep.subr.bf16.mxu0 0
        %3125 = vmatpush1.bf16.xpose.msra.mxu0 0
        %3126 = vmatprep.subr.bf16.mxu0 0
        %3127 = vmatpush1.bf16.xpose.msra.mxu0 0
        %3128 = vmatprep.subr.bf16.mxu0 0
        %3129 = vmatpush1.bf16.xpose.msra.mxu0 0
        %3130 = vmatprep.subr.bf16.mxu0 0
        %3131 = vmatpush1.bf16.xpose.msra.mxu0 0
        %3132 = vmatprep.subr.bf16.mxu0 0
        %3133 = vmatpush1.bf16.xpose.msra.mxu0 0
        %3134 = vmatprep.subr.bf16.mxu0 0
        %3135 = vmatpush1.bf16.xpose.msra.mxu0 0
        %3136 = vmatprep.subr.bf16.mxu0 0
        %3137 = vmatpush1.bf16.xpose.msra.mxu0 0
        %3138 = vmatprep.subr.bf16.mxu0 0
        %3139 = vmatpush1.bf16.xpose.msra.mxu0 0
        %3140 = vmatprep.subr.bf16.mxu0 0
        %3141 = vmatpush1.bf16.xpose.msra.mxu0 0
        %3142 = vmatprep.subr.bf16.mxu0 0
        %3143 = vmatpush1.bf16.xpose.msra.mxu0 0
        %3144 = vmatprep.subr.bf16.mxu0 0
        %3145 = vmatpush1.bf16.xpose.msra.mxu0 0
        %3146 = vmatprep.subr.bf16.mxu0 0
        %3147 = vmatpush1.bf16.xpose.msra.mxu0 0
        %3148 = vmatprep.subr.bf16.mxu0 0
        %3149 = vmatpush1.bf16.xpose.msra.mxu0 0
        %3150 = vmatprep.subr.bf16.mxu0 0
        %3151 = vmatpush1.bf16.xpose.msra.mxu0 0
        %3152 = vmatprep.subr.bf16.mxu0 0
        %3153 = vmatpush1.bf16.xpose.msra.mxu0 0
        %3154 = vmatprep.mubr.bf16.mxu0 0
        %3155 = vmatmul.mubr.bf16.gmra.mrb[0].mxu0 %v3117
        %v3156 = vpop.f32.mrb[0].mxu0
        %v3157 = vadd.f32 0.0, %v3156
        %v3158 = vpop.f32.mrb[0].mxu0
        %v3159 = vpop.f32.mrb[0].mxu0
        %v3160 = vadd.f32 0.0, %v3159
        %v3161 = vpop.f32.mrb[0].mxu0
        %3162 = vdwg.mxu0
        %v3163 = vsel %vm875, %v3106, -inf
        %3164 = vmax.xlane.f32.xlu0 %v3163
        %v3165 = vpop.xlane.xlu0 %3164
        %v3166 = vsel %vm875, %v3109, -inf
        %3167 = vmax.xlane.f32.xlu0 %v3166
        %v3168 = vpop.xlane.xlu0 %3167
        %v3169 = vsel %vm875, %v3157, -inf
        %3170 = vmax.xlane.f32.xlu0 %v3169
        %v3171 = vpop.xlane.xlu0 %3170
        %v3172 = vsel %vm875, %v3160, -inf
        %3173 = vmax.xlane.f32.xlu0 %v3172
        %v3174 = vpop.xlane.xlu0 %3173
        %v3175 = vsub.f32 %v3106, %v3165
        %v3176 = vsub.f32 %v3109, %v3168
        %v3177 = vsub.f32 %v3157, %v3171
        %v3178 = vsub.f32 %v3160, %v3174
        %v3179 = vmul.f32 %v3175, 1.442695
        %v3180 = vpow.pop %v3179
        %v3181 = vmul.f32 %v3176, 1.442695
        %v3182 = vpow.pop %v3181
        %v3183 = vmul.f32 %v3177, 1.442695
        %v3184 = vpow.pop %v3183
        %v3185 = vmul.f32 %v3178, 1.442695
        %v3186 = vpow.pop %v3185
        %v3187 = vsel %vm875, %v3180, 0.0
        %3188 = vadd.xlane.f32.xlu0 %v3187
        %v3189 = vpop.xlane.xlu0 %3188
        %v3190 = vsel %vm875, %v3182, 0.0
        %3191 = vadd.xlane.f32.xlu0 %v3190
        %v3192 = vpop.xlane.xlu0 %3191
        %v3193 = vsel %vm875, %v3184, 0.0
        %3194 = vadd.xlane.f32.xlu0 %v3193
        %v3195 = vpop.xlane.xlu0 %3194
        %v3196 = vsel %vm875, %v3186, 0.0
        %3197 = vadd.xlane.f32.xlu0 %v3196
        %v3198 = vpop.xlane.xlu0 %3197
        %v3199 = vrcp.pop %v3189
        %v3200 = vrcp.pop %v3192
        %v3201 = vrcp.pop %v3195
        %v3202 = vrcp.pop %v3198
        %v3203 = vmul.f32 %v3180, %v3199
        %v3204 = vmul.f32 %v3182, %v3200
        %v3205 = vmul.f32 %v3184, %v3201
        %v3206 = vmul.f32 %v3186, %v3202
        %v3207 = vpack.c.bf16 %v3204, %v3203
        %v3208 = vpack.c.bf16 %v3206, %v3205
        %3209 = vrot.lane.b32.xlu0 %v2437, 32
        %v3210 = vpop.permute.xlu0 %3209
        %v3213 = vsel %vm875, %v3207, 0
        %3215 = vmatprep.subr.bf16.mxu0 0
        %3216 = vmatpush1.bf16.msra.mxu0 %v3210
        %3217 = vmatprep.subr.bf16.mxu0 0
        %3218 = vmatpush1.bf16.msra.mxu0 0
        %3219 = vmatprep.subr.bf16.mxu0 0
        %3220 = vmatpush1.bf16.msra.mxu0 0
        %3221 = vmatprep.subr.bf16.mxu0 0
        %3222 = vmatpush1.bf16.msra.mxu0 0
        %3223 = vmatprep.subr.bf16.mxu0 0
        %3224 = vmatpush1.bf16.msra.mxu0 0
        %3225 = vmatprep.subr.bf16.mxu0 0
        %3226 = vmatpush1.bf16.msra.mxu0 0
        %3227 = vmatprep.subr.bf16.mxu0 0
        %3228 = vmatpush1.bf16.msra.mxu0 0
        %3229 = vmatprep.subr.bf16.mxu0 0
        %3230 = vmatpush1.bf16.msra.mxu0 0
        %3231 = vmatprep.subr.bf16.mxu0 0
        %3232 = vmatpush1.bf16.msra.mxu0 0
        %3233 = vmatprep.subr.bf16.mxu0 0
        %3234 = vmatpush1.bf16.msra.mxu0 0
        %3235 = vmatprep.subr.bf16.mxu0 0
        %3236 = vmatpush1.bf16.msra.mxu0 0
        %3237 = vmatprep.subr.bf16.mxu0 0
        %3238 = vmatpush1.bf16.msra.mxu0 0
        %3239 = vmatprep.subr.bf16.mxu0 0
        %3240 = vmatpush1.bf16.msra.mxu0 0
        %3241 = vmatprep.subr.bf16.mxu0 0
        %3242 = vmatpush1.bf16.msra.mxu0 0
        %3243 = vmatprep.subr.bf16.mxu0 0
        %3244 = vmatpush1.bf16.msra.mxu0 0
        %3245 = vmatprep.subr.bf16.mxu0 0
        %3246 = vmatpush1.bf16.msra.mxu0 0
        %3247 = vmatprep.mubr.bf16.mxu0 0
        %3248 = vmatmul.mubr.bf16.gmra.mrb[0].mxu0 %v3213
        %v3249 = vpop.f32.mrb[0].mxu0
        %v3250 = vadd.f32 0.0, %v3249
        %v3251 = vpop.f32.mrb[0].mxu0
        %v3252 = vpop.f32.mrb[0].mxu0
        %v3253 = vadd.f32 0.0, %v3252
        %v3254 = vpop.f32.mrb[0].mxu0
        %3255 = vdwg.mxu0
        %3256 = vrot.lane.b32.xlu0 %v2438, 32
        %v3257 = vpop.permute.xlu0 %3256
        %v3260 = vsel %vm875, %v3208, 0
        %3262 = vmatprep.subr.bf16.mxu0 0
        %3263 = vmatpush1.bf16.msra.mxu0 %v3257
        %3264 = vmatprep.subr.bf16.mxu0 0
        %3265 = vmatpush1.bf16.msra.mxu0 0
        %3266 = vmatprep.subr.bf16.mxu0 0
        %3267 = vmatpush1.bf16.msra.mxu0 0
        %3268 = vmatprep.subr.bf16.mxu0 0
        %3269 = vmatpush1.bf16.msra.mxu0 0
        %3270 = vmatprep.subr.bf16.mxu0 0
        %3271 = vmatpush1.bf16.msra.mxu0 0
        %3272 = vmatprep.subr.bf16.mxu0 0
        %3273 = vmatpush1.bf16.msra.mxu0 0
        %3274 = vmatprep.subr.bf16.mxu0 0
        %3275 = vmatpush1.bf16.msra.mxu0 0
        %3276 = vmatprep.subr.bf16.mxu0 0
        %3277 = vmatpush1.bf16.msra.mxu0 0
        %3278 = vmatprep.subr.bf16.mxu0 0
        %3279 = vmatpush1.bf16.msra.mxu0 0
        %3280 = vmatprep.subr.bf16.mxu0 0
        %3281 = vmatpush1.bf16.msra.mxu0 0
        %3282 = vmatprep.subr.bf16.mxu0 0
        %3283 = vmatpush1.bf16.msra.mxu0 0
        %3284 = vmatprep.subr.bf16.mxu0 0
        %3285 = vmatpush1.bf16.msra.mxu0 0
        %3286 = vmatprep.subr.bf16.mxu0 0
        %3287 = vmatpush1.bf16.msra.mxu0 0
        %3288 = vmatprep.subr.bf16.mxu0 0
        %3289 = vmatpush1.bf16.msra.mxu0 0
        %3290 = vmatprep.subr.bf16.mxu0 0
        %3291 = vmatpush1.bf16.msra.mxu0 0
        %3292 = vmatprep.subr.bf16.mxu0 0
        %3293 = vmatpush1.bf16.msra.mxu0 0
        %3294 = vmatprep.mubr.bf16.mxu0 0
        %3295 = vmatmul.mubr.bf16.gmra.mrb[0].mxu0 %v3260
        %v3296 = vpop.f32.mrb[0].mxu0
        %v3297 = vadd.f32 0.0, %v3296
        %v3298 = vpop.f32.mrb[0].mxu0
        %v3299 = vpop.f32.mrb[0].mxu0
        %v3300 = vadd.f32 0.0, %v3299
        %v3301 = vpop.f32.mrb[0].mxu0
        %3302 = vdwg.mxu0
        %3307 = vrot.lane.b32.xlu0 %v3250, 96
        %v3308 = vpop.permute.xlu0 %3307
        %3309 = vrot.lane.b32.xlu0 %v3253, 96
        %v3310 = vpop.permute.xlu0 %3309
        %3311 = vrot.lane.b32.xlu0 %v3297, 96
        %v3312 = vpop.permute.xlu0 %3311
        %3313 = vrot.lane.b32.xlu0 %v3300, 96
        %v3314 = vpop.permute.xlu0 %3313
        %3319 = vst.msk [vmem:[#allocation3] sm:$0xff] %vm1806, %v3308
        %3320 = vst.msk [vmem:[#allocation3 + $0x8] sm:$0xff] %vm1806, %v3310
        %3321 = vst.msk [vmem:[#allocation3 + $0x10] sm:$0xff] %vm1806, %v3312
        %3322 = vst.msk [vmem:[#allocation3 + $0x18] sm:$0xff] %vm1806, %v3314
        %v3323 = vld [vmem:[#allocation3] sm:$0xff]
        %v3324 = vld [vmem:[#allocation3 + $0x8] sm:$0xff]
        %v3325 = vld [vmem:[#allocation3 + $0x10] sm:$0xff]
        %v3326 = vld [vmem:[#allocation3 + $0x18] sm:$0xff]
        %v3327 = vpack.c.bf16 %v3324, %v3323
        %v3328 = vpack.c.bf16 %v3326, %v3325
        %v3329 = vlaneseq
        %v3330 = vshrl.u32 %v3329, 7
        %v3331 = vsub.s32 6, %v3330
        %v3332 = vrot.slane %v476, %v3331
        %v3349 = vunpack.c.l.b16 %v2277
        %v3350 = vunpack.c.l.b16 %v2278
        %v3351 = vunpack.c.l.b16 %v2279
        %v3352 = vunpack.c.l.b16 %v2280
        %v3353 = vunpack.c.l.b16 %v2281
        %v3354 = vunpack.c.l.b16 %v2282
        %v3355 = vunpack.c.l.b16 %v2283
        %v3356 = vunpack.c.l.b16 %v2284
        %v3357 = vunpack.c.l.b16 %v2285
        %v3358 = vunpack.c.l.b16 %v2286
        %v3359 = vunpack.c.l.b16 %v2287
        %v3360 = vunpack.c.l.b16 %v2288
        %v3361 = vunpack.c.l.b16 %v2289
        %v3362 = vunpack.c.l.b16 %v2290
        %v3363 = vunpack.c.l.b16 %v2291
        %v3364 = vunpack.c.l.b16 %v2292
        %v3365 = vpack.c.b16 %v3350, %v3349
        %v3366 = vpack.c.b16 %v3352, %v3351
        %v3367 = vpack.c.b16 %v3354, %v3353
        %v3368 = vpack.c.b16 %v3356, %v3355
        %v3369 = vpack.c.b16 %v3358, %v3357
        %v3370 = vpack.c.b16 %v3360, %v3359
        %v3371 = vpack.c.b16 %v3362, %v3361
        %v3372 = vpack.c.b16 %v3364, %v3363
        %3381 = vmatprep.subr.bf16.mxu0 0
        %3382 = vmatpush1.bf16.msra.mxu0 %v3365
        %3383 = vmatprep.subr.bf16.mxu0 0
        %3384 = vmatpush1.bf16.msra.mxu0 %v3366
        %3385 = vmatprep.subr.bf16.mxu0 0
        %3386 = vmatpush1.bf16.msra.mxu0 %v3367
        %3387 = vmatprep.subr.bf16.mxu0 0
        %3388 = vmatpush1.bf16.msra.mxu0 %v3368
        %3389 = vmatprep.subr.bf16.mxu0 0
        %3390 = vmatpush1.bf16.msra.mxu0 %v3369
        %3391 = vmatprep.subr.bf16.mxu0 0
        %3392 = vmatpush1.bf16.msra.mxu0 %v3370
        %3393 = vmatprep.subr.bf16.mxu0 0
        %3394 = vmatpush1.bf16.msra.mxu0 %v3371
        %3395 = vmatprep.subr.bf16.mxu0 0
        %3396 = vmatpush1.bf16.msra.mxu0 %v3372
        %3397 = vmatprep.subr.bf16.mxu0 0
        %3398 = vmatpush1.bf16.msra.mxu0 0
        %3399 = vmatprep.subr.bf16.mxu0 0
        %3400 = vmatpush1.bf16.msra.mxu0 0
        %3401 = vmatprep.subr.bf16.mxu0 0
        %3402 = vmatpush1.bf16.msra.mxu0 0
        %3403 = vmatprep.subr.bf16.mxu0 0
        %3404 = vmatpush1.bf16.msra.mxu0 0
        %3405 = vmatprep.subr.bf16.mxu0 0
        %3406 = vmatpush1.bf16.msra.mxu0 0
        %3407 = vmatprep.subr.bf16.mxu0 0
        %3408 = vmatpush1.bf16.msra.mxu0 0
        %3409 = vmatprep.subr.bf16.mxu0 0
        %3410 = vmatpush1.bf16.msra.mxu0 0
        %3411 = vmatprep.subr.bf16.mxu0 0
        %3412 = vmatpush1.bf16.msra.mxu0 0
        %3413 = vmatprep.mubr.bf16.mxu0 0
        %3414 = vmatmul.mubr.bf16.gmra.mrb[0].mxu0 %v3327
        %v3415 = vpop.f32.mrb[0].mxu0
        %v3416 = vadd.f32 %v3332, %v3415
        %v3417 = vpop.f32.mrb[0].mxu0
        %v3418 = vpop.f32.mrb[0].mxu0
        %v3419 = vadd.f32 %v3332, %v3418
        %v3420 = vpop.f32.mrb[0].mxu0
        %3421 = vmatprep.mubr.bf16.mxu0 0
        %3422 = vmatmul.mubr.bf16.gmra.mrb[0].mxu0 %v3328
        %v3423 = vpop.f32.mrb[0].mxu0
        %v3424 = vadd.f32 %v3332, %v3423
        %v3425 = vpop.f32.mrb[0].mxu0
        %v3426 = vpop.f32.mrb[0].mxu0
        %v3427 = vadd.f32 %v3332, %v3426
        %v3428 = vpop.f32.mrb[0].mxu0
        %3429 = vdwg.mxu0
        %v3430 = vadd.f32 %v1987, %v3416
        %v3431 = vadd.f32 %v1988, %v3419
        %v3432 = vadd.f32 %v1989, %v3424
        %v3433 = vadd.f32 %v1990, %v3427
        %3434 = vadd.xlane.f32.xlu0 %v3430
        %v3435 = vpop.xlane.xlu0 %3434
        %3436 = vadd.xlane.f32.xlu0 %v3431
        %v3437 = vpop.xlane.xlu0 %3436
        %3438 = vadd.xlane.f32.xlu0 %v3432
        %v3439 = vpop.xlane.xlu0 %3438
        %3440 = vadd.xlane.f32.xlu0 %v3433
        %v3441 = vpop.xlane.xlu0 %3440
        %v3442 = vmul.f32 %v3435, %v1930
        %v3443 = vmul.f32 %v3437, %v1930
        %v3444 = vmul.f32 %v3439, %v1930
        %v3445 = vmul.f32 %v3441, %v1930
        %v3446 = vmul.f32 %v3430, %v3430
        %v3447 = vmul.f32 %v3431, %v3431
        %v3448 = vmul.f32 %v3432, %v3432
        %v3449 = vmul.f32 %v3433, %v3433
        %3450 = vadd.xlane.f32.xlu0 %v3446
        %v3451 = vpop.xlane.xlu0 %3450
        %3452 = vadd.xlane.f32.xlu0 %v3447
        %v3453 = vpop.xlane.xlu0 %3452
        %3454 = vadd.xlane.f32.xlu0 %v3448
        %v3455 = vpop.xlane.xlu0 %3454
        %3456 = vadd.xlane.f32.xlu0 %v3449
        %v3457 = vpop.xlane.xlu0 %3456
        %v3458 = vmul.f32 %v3451, %v1930
        %v3459 = vmul.f32 %v3453, %v1930
        %v3460 = vmul.f32 %v3455, %v1930
        %v3461 = vmul.f32 %v3457, %v1930
        %v3462 = vmul.f32 %v3442, %v3442
        %v3463 = vmul.f32 %v3443, %v3443
        %v3464 = vmul.f32 %v3444, %v3444
        %v3465 = vmul.f32 %v3445, %v3445
        %v3466 = vsub.f32 %v3458, %v3462
        %v3467 = vsub.f32 %v3459, %v3463
        %v3468 = vsub.f32 %v3460, %v3464
        %v3469 = vsub.f32 %v3461, %v3465
        %v3470 = vsub.f32 %v3430, %v3442
        %v3471 = vsub.f32 %v3431, %v3443
        %v3472 = vsub.f32 %v3432, %v3444
        %v3473 = vsub.f32 %v3433, %v3445
        %v3474 = vadd.f32 %v3466, 1e-10
        %v3475 = vadd.f32 %v3467, 1e-10
        %v3476 = vadd.f32 %v3468, 1e-10
        %v3477 = vadd.f32 %v3469, 1e-10
        %v3478 = vrsqrt.pop %v3474
        %v3479 = vrsqrt.pop %v3475
        %v3480 = vrsqrt.pop %v3476
        %v3481 = vrsqrt.pop %v3477
        %v3482 = vmul.f32 %v3470, %v3478
        %v3483 = vmul.f32 %v3471, %v3479
        %v3484 = vmul.f32 %v3472, %v3480
        %v3485 = vmul.f32 %v3473, %v3481
        %v3486 = vlaneseq
        %v3487 = vshrl.u32 %v3486, 7
        %v3488 = vsub.s32 7, %v3487
        %v3489 = vrot.slane %v476, %v3488
        %v3490 = vmul.f32 %v3489, %v3482
        %v3491 = vmul.f32 %v3489, %v3483
        %v3492 = vmul.f32 %v3489, %v3484
        %v3493 = vmul.f32 %v3489, %v3485
        %v3494 = vlaneseq
        %v3495 = vshrl.u32 %v3494, 7
        %v3496 = vsub.s32 0, %v3495
        %v3497 = vrot.slane %v479, %v3496
        %v3498 = vadd.f32 %v3490, %v3497
        %v3499 = vadd.f32 %v3491, %v3497
        %v3500 = vadd.f32 %v3492, %v3497
        %v3501 = vadd.f32 %v3493, %v3497
        %v3502 = vld [vmem:[%s389 + $0x20] sm:$0xff]
        %v3503 = vld [vmem:[%s389 + $0x48] sm:$0xff]
        %v3504 = vld [vmem:[%s389 + $0x70] sm:$0xff]
        %v3505 = vld [vmem:[%s389 + $0x98] sm:$0xff]
        %v3506 = vld [vmem:[%s389 + $0xc0] sm:$0xff]
        %v3507 = vld [vmem:[%s389 + $0xe8] sm:$0xff]
        %v3508 = vld [vmem:[%s389 + $0x110] sm:$0xff]
        %v3509 = vld [vmem:[%s389 + $0x138] sm:$0xff]
        %v3510 = vld [vmem:[%s389 + $0x160] sm:$0xff]
        %v3511 = vld [vmem:[%s389 + $0x188] sm:$0xff]
        %v3512 = vld [vmem:[%s389 + $0x1b0] sm:$0xff]
        %v3513 = vld [vmem:[%s389 + $0x1d8] sm:$0xff]
        %v3514 = vld [vmem:[%s389 + $0x200] sm:$0xff]
        %v3515 = vld [vmem:[%s389 + $0x228] sm:$0xff]
        %v3516 = vld [vmem:[%s389 + $0x250] sm:$0xff]
        %v3517 = vld [vmem:[%s389 + $0x278] sm:$0xff]
        %v3518 = vpack.c.bf16 %v3499, %v3498
        %v3519 = vpack.c.bf16 %v3501, %v3500
        %v3520 = vlaneseq
        %v3521 = vshrl.u32 %v3520, 7
        %v3522 = vsub.s32 2, %v3521
        %v3523 = vrot.slane %v476, %v3522
        %v3524 = vlaneseq
        %v3525 = vshrl.u32 %v3524, 7
        %v3526 = vsub.s32 2, %v3525
        %v3527 = vrot.slane %v477, %v3526
        %v3544 = vunpack.c.l.b16 %v3502
        %v3545 = vunpack.c.h.b16 %v3502
        %v3546 = vunpack.c.l.b16 %v3503
        %v3547 = vunpack.c.h.b16 %v3503
        %v3548 = vunpack.c.l.b16 %v3504
        %v3549 = vunpack.c.h.b16 %v3504
        %v3550 = vunpack.c.l.b16 %v3505
        %v3551 = vunpack.c.h.b16 %v3505
        %v3552 = vunpack.c.l.b16 %v3506
        %v3553 = vunpack.c.h.b16 %v3506
        %v3554 = vunpack.c.l.b16 %v3507
        %v3555 = vunpack.c.h.b16 %v3507
        %v3556 = vunpack.c.l.b16 %v3508
        %v3557 = vunpack.c.h.b16 %v3508
        %v3558 = vunpack.c.l.b16 %v3509
        %v3559 = vunpack.c.h.b16 %v3509
        %v3560 = vunpack.c.l.b16 %v3510
        %v3561 = vunpack.c.h.b16 %v3510
        %v3562 = vunpack.c.l.b16 %v3511
        %v3563 = vunpack.c.h.b16 %v3511
        %v3564 = vunpack.c.l.b16 %v3512
        %v3565 = vunpack.c.h.b16 %v3512
        %v3566 = vunpack.c.l.b16 %v3513
        %v3567 = vunpack.c.h.b16 %v3513
        %v3568 = vunpack.c.l.b16 %v3514
        %v3569 = vunpack.c.h.b16 %v3514
        %v3570 = vunpack.c.l.b16 %v3515
        %v3571 = vunpack.c.h.b16 %v3515
        %v3572 = vunpack.c.l.b16 %v3516
        %v3573 = vunpack.c.h.b16 %v3516
        %v3574 = vunpack.c.l.b16 %v3517
        %v3575 = vunpack.c.h.b16 %v3517
        %v3576 = vpack.c.b16 %v3546, %v3544
        %v3577 = vpack.c.b16 %v3547, %v3545
        %v3578 = vpack.c.b16 %v3550, %v3548
        %v3579 = vpack.c.b16 %v3551, %v3549
        %v3580 = vpack.c.b16 %v3554, %v3552
        %v3581 = vpack.c.b16 %v3555, %v3553
        %v3582 = vpack.c.b16 %v3558, %v3556
        %v3583 = vpack.c.b16 %v3559, %v3557
        %v3584 = vpack.c.b16 %v3562, %v3560
        %v3585 = vpack.c.b16 %v3563, %v3561
        %v3586 = vpack.c.b16 %v3566, %v3564
        %v3587 = vpack.c.b16 %v3567, %v3565
        %v3588 = vpack.c.b16 %v3570, %v3568
        %v3589 = vpack.c.b16 %v3571, %v3569
        %v3590 = vpack.c.b16 %v3574, %v3572
        %v3591 = vpack.c.b16 %v3575, %v3573
        %3608 = vmatprep.subr.bf16.mxu0 %v3577
        %3609 = vmatpush1.bf16.msra.mxu0 %v3576
        %3610 = vmatprep.subr.bf16.mxu0 %v3579
        %3611 = vmatpush1.bf16.msra.mxu0 %v3578
        %3612 = vmatprep.subr.bf16.mxu0 %v3581
        %3613 = vmatpush1.bf16.msra.mxu0 %v3580
        %3614 = vmatprep.subr.bf16.mxu0 %v3583
        %3615 = vmatpush1.bf16.msra.mxu0 %v3582
        %3616 = vmatprep.subr.bf16.mxu0 %v3585
        %3617 = vmatpush1.bf16.msra.mxu0 %v3584
        %3618 = vmatprep.subr.bf16.mxu0 %v3587
        %3619 = vmatpush1.bf16.msra.mxu0 %v3586
        %3620 = vmatprep.subr.bf16.mxu0 %v3589
        %3621 = vmatpush1.bf16.msra.mxu0 %v3588
        %3622 = vmatprep.subr.bf16.mxu0 %v3591
        %3623 = vmatpush1.bf16.msra.mxu0 %v3590
        %3624 = vmatprep.subr.bf16.mxu0 0
        %3625 = vmatpush1.bf16.msra.mxu0 0
        %3626 = vmatprep.subr.bf16.mxu0 0
        %3627 = vmatpush1.bf16.msra.mxu0 0
        %3628 = vmatprep.subr.bf16.mxu0 0
        %3629 = vmatpush1.bf16.msra.mxu0 0
        %3630 = vmatprep.subr.bf16.mxu0 0
        %3631 = vmatpush1.bf16.msra.mxu0 0
        %3632 = vmatprep.subr.bf16.mxu0 0
        %3633 = vmatpush1.bf16.msra.mxu0 0
        %3634 = vmatprep.subr.bf16.mxu0 0
        %3635 = vmatpush1.bf16.msra.mxu0 0
        %3636 = vmatprep.subr.bf16.mxu0 0
        %3637 = vmatpush1.bf16.msra.mxu0 0
        %3638 = vmatprep.subr.bf16.mxu0 0
        %3639 = vmatpush1.bf16.msra.mxu0 0
        %3640 = vmatprep.mubr.bf16.mxu0 0
        %3641 = vmatmul.mubr.bf16.gmra.mrb[0].mxu0 %v3518
        %v3642 = vpop.f32.mrb[0].mxu0
        %v3643 = vadd.f32 %v3523, %v3642
        %v3644 = vpop.f32.mrb[0].mxu0
        %v3645 = vadd.f32 %v3527, %v3644
        %v3646 = vpop.f32.mrb[0].mxu0
        %v3647 = vadd.f32 %v3523, %v3646
        %v3648 = vpop.f32.mrb[0].mxu0
        %v3649 = vadd.f32 %v3527, %v3648
        %3650 = vmatprep.mubr.bf16.mxu0 0
        %3651 = vmatmul.mubr.bf16.gmra.mrb[0].mxu0 %v3519
        %v3652 = vpop.f32.mrb[0].mxu0
        %v3653 = vadd.f32 %v3523, %v3652
        %v3654 = vpop.f32.mrb[0].mxu0
        %v3655 = vadd.f32 %v3527, %v3654
        %v3656 = vpop.f32.mrb[0].mxu0
        %v3657 = vadd.f32 %v3523, %v3656
        %v3658 = vpop.f32.mrb[0].mxu0
        %v3659 = vadd.f32 %v3527, %v3658
        %3660 = vdwg.mxu0
        %v3661 = vmax.f32 %v3643, 0.0
        %v3662 = vmax.f32 %v3645, 0.0
        %v3663 = vmax.f32 %v3647, 0.0
        %v3664 = vmax.f32 %v3649, 0.0
        %v3665 = vmax.f32 %v3653, 0.0
        %v3666 = vmax.f32 %v3655, 0.0
        %v3667 = vmax.f32 %v3657, 0.0
        %v3668 = vmax.f32 %v3659, 0.0
        %v3669 = vld [vmem:[%s398] sm:$0xf]
        %v3670 = vld [vmem:[%s398 + $0x4] sm:$0xf]
        %v3671 = vld [vmem:[%s398 + $0x8] sm:$0xf]
        %v3672 = vld [vmem:[%s398 + $0xc] sm:$0xf]
        %v3673 = vld [vmem:[%s398 + $0x10] sm:$0xf]
        %v3674 = vld [vmem:[%s398 + $0x14] sm:$0xf]
        %v3675 = vld [vmem:[%s398 + $0x18] sm:$0xf]
        %v3676 = vld [vmem:[%s398 + $0x1c] sm:$0xf]
        %v3677 = vld [vmem:[%s398 + $0x20] sm:$0xf]
        %v3678 = vld [vmem:[%s398 + $0x24] sm:$0xf]
        %v3679 = vld [vmem:[%s398 + $0x28] sm:$0xf]
        %v3680 = vld [vmem:[%s398 + $0x2c] sm:$0xf]
        %v3681 = vld [vmem:[%s398 + $0x30] sm:$0xf]
        %v3682 = vld [vmem:[%s398 + $0x34] sm:$0xf]
        %v3683 = vld [vmem:[%s398 + $0x38] sm:$0xf]
        %v3684 = vld [vmem:[%s398 + $0x3c] sm:$0xf]
        %v3685 = vld [vmem:[%s398 + $0x40] sm:$0xf]
        %v3686 = vld [vmem:[%s398 + $0x44] sm:$0xf]
        %v3687 = vld [vmem:[%s398 + $0x48] sm:$0xf]
        %v3688 = vld [vmem:[%s398 + $0x4c] sm:$0xf]
        %v3689 = vld [vmem:[%s398 + $0x50] sm:$0xf]
        %v3690 = vld [vmem:[%s398 + $0x54] sm:$0xf]
        %v3691 = vld [vmem:[%s398 + $0x58] sm:$0xf]
        %v3692 = vld [vmem:[%s398 + $0x5c] sm:$0xf]
        %v3693 = vld [vmem:[%s398 + $0x60] sm:$0xf]
        %v3694 = vld [vmem:[%s398 + $0x64] sm:$0xf]
        %v3695 = vld [vmem:[%s398 + $0x68] sm:$0xf]
        %v3696 = vld [vmem:[%s398 + $0x6c] sm:$0xf]
        %v3697 = vld [vmem:[%s398 + $0x70] sm:$0xf]
        %v3698 = vld [vmem:[%s398 + $0x74] sm:$0xf]
        %v3699 = vld [vmem:[%s398 + $0x78] sm:$0xf]
        %v3700 = vld [vmem:[%s398 + $0x7c] sm:$0xf]
        %v3701 = vpack.c.bf16 %v3663, %v3661
        %v3702 = vpack.c.bf16 %v3664, %v3662
        %v3703 = vpack.c.bf16 %v3667, %v3665
        %v3704 = vpack.c.bf16 %v3668, %v3666
        %v3737 = vunpack.c.l.b16 %v3669
        %v3738 = vunpack.c.l.b16 %v3670
        %v3739 = vunpack.c.l.b16 %v3671
        %v3740 = vunpack.c.l.b16 %v3672
        %v3741 = vunpack.c.l.b16 %v3673
        %v3742 = vunpack.c.l.b16 %v3674
        %v3743 = vunpack.c.l.b16 %v3675
        %v3744 = vunpack.c.l.b16 %v3676
        %v3745 = vunpack.c.l.b16 %v3677
        %v3746 = vunpack.c.l.b16 %v3678
        %v3747 = vunpack.c.l.b16 %v3679
        %v3748 = vunpack.c.l.b16 %v3680
        %v3749 = vunpack.c.l.b16 %v3681
        %v3750 = vunpack.c.l.b16 %v3682
        %v3751 = vunpack.c.l.b16 %v3683
        %v3752 = vunpack.c.l.b16 %v3684
        %v3753 = vunpack.c.l.b16 %v3685
        %v3754 = vunpack.c.l.b16 %v3686
        %v3755 = vunpack.c.l.b16 %v3687
        %v3756 = vunpack.c.l.b16 %v3688
        %v3757 = vunpack.c.l.b16 %v3689
        %v3758 = vunpack.c.l.b16 %v3690
        %v3759 = vunpack.c.l.b16 %v3691
        %v3760 = vunpack.c.l.b16 %v3692
        %v3761 = vunpack.c.l.b16 %v3693
        %v3762 = vunpack.c.l.b16 %v3694
        %v3763 = vunpack.c.l.b16 %v3695
        %v3764 = vunpack.c.l.b16 %v3696
        %v3765 = vunpack.c.l.b16 %v3697
        %v3766 = vunpack.c.l.b16 %v3698
        %v3767 = vunpack.c.l.b16 %v3699
        %v3768 = vunpack.c.l.b16 %v3700
        %v3769 = vpack.c.b16 %v3738, %v3737
        %v3770 = vpack.c.b16 %v3740, %v3739
        %v3771 = vpack.c.b16 %v3742, %v3741
        %v3772 = vpack.c.b16 %v3744, %v3743
        %v3773 = vpack.c.b16 %v3746, %v3745
        %v3774 = vpack.c.b16 %v3748, %v3747
        %v3775 = vpack.c.b16 %v3750, %v3749
        %v3776 = vpack.c.b16 %v3752, %v3751
        %v3777 = vpack.c.b16 %v3754, %v3753
        %v3778 = vpack.c.b16 %v3756, %v3755
        %v3779 = vpack.c.b16 %v3758, %v3757
        %v3780 = vpack.c.b16 %v3760, %v3759
        %v3781 = vpack.c.b16 %v3762, %v3761
        %v3782 = vpack.c.b16 %v3764, %v3763
        %v3783 = vpack.c.b16 %v3766, %v3765
        %v3784 = vpack.c.b16 %v3768, %v3767
        %3801 = vmatprep.subr.bf16.mxu0 0
        %3802 = vmatpush1.bf16.msra.mxu0 %v3769
        %3803 = vmatprep.subr.bf16.mxu0 0
        %3804 = vmatpush1.bf16.msra.mxu0 %v3770
        %3805 = vmatprep.subr.bf16.mxu0 0
        %3806 = vmatpush1.bf16.msra.mxu0 %v3771
        %3807 = vmatprep.subr.bf16.mxu0 0
        %3808 = vmatpush1.bf16.msra.mxu0 %v3772
        %3809 = vmatprep.subr.bf16.mxu0 0
        %3810 = vmatpush1.bf16.msra.mxu0 %v3773
        %3811 = vmatprep.subr.bf16.mxu0 0
        %3812 = vmatpush1.bf16.msra.mxu0 %v3774
        %3813 = vmatprep.subr.bf16.mxu0 0
        %3814 = vmatpush1.bf16.msra.mxu0 %v3775
        %3815 = vmatprep.subr.bf16.mxu0 0
        %3816 = vmatpush1.bf16.msra.mxu0 %v3776
        %3817 = vmatprep.subr.bf16.mxu0 0
        %3818 = vmatpush1.bf16.msra.mxu0 %v3777
        %3819 = vmatprep.subr.bf16.mxu0 0
        %3820 = vmatpush1.bf16.msra.mxu0 %v3778
        %3821 = vmatprep.subr.bf16.mxu0 0
        %3822 = vmatpush1.bf16.msra.mxu0 %v3779
        %3823 = vmatprep.subr.bf16.mxu0 0
        %3824 = vmatpush1.bf16.msra.mxu0 %v3780
        %3825 = vmatprep.subr.bf16.mxu0 0
        %3826 = vmatpush1.bf16.msra.mxu0 %v3781
        %3827 = vmatprep.subr.bf16.mxu0 0
        %3828 = vmatpush1.bf16.msra.mxu0 %v3782
        %3829 = vmatprep.subr.bf16.mxu0 0
        %3830 = vmatpush1.bf16.msra.mxu0 %v3783
        %3831 = vmatprep.subr.bf16.mxu0 0
        %3832 = vmatpush1.bf16.msra.mxu0 %v3784
        %3833 = vmatprep.mubr.bf16.mxu0 %v3702
        %3834 = vmatmul.mubr.bf16.gmra.mrb[0].mxu0 %v3701
        %v3835 = vpop.f32.mrb[0].mxu0
        %v3836 = vadd.f32 0.0, %v3835
        %v3837 = vpop.f32.mrb[0].mxu0
        %v3838 = vpop.f32.mrb[0].mxu0
        %v3839 = vadd.f32 0.0, %v3838
        %v3840 = vpop.f32.mrb[0].mxu0
        %3841 = vmatprep.mubr.bf16.mxu0 %v3704
        %3842 = vmatmul.mubr.bf16.gmra.mrb[0].mxu0 %v3703
        %v3843 = vpop.f32.mrb[0].mxu0
        %v3844 = vadd.f32 0.0, %v3843
        %v3845 = vpop.f32.mrb[0].mxu0
        %v3846 = vpop.f32.mrb[0].mxu0
        %v3847 = vadd.f32 0.0, %v3846
        %v3848 = vpop.f32.mrb[0].mxu0
        %3849 = vdwg.mxu0
        %v3850 = vadd.f32 %v3498, %v3836
        %v3851 = vadd.f32 %v3499, %v3839
        %v3852 = vadd.f32 %v3500, %v3844
        %v3853 = vadd.f32 %v3501, %v3847
        %v3854 = vlaneseq
        %v3855 = vshrl.u32 %v3854, 7
        %v3856 = vsub.s32 1, %v3855
        %v3857 = vrot.slane %v479, %v3856
        %v3858 = vadd.f32 %v3850, %v3857
        %v3859 = vadd.f32 %v3851, %v3857
        %v3860 = vadd.f32 %v3852, %v3857
        %v3861 = vadd.f32 %v3853, %v3857
        %3862 = vadd.xlane.f32.xlu0 %v3858
        %v3863 = vpop.xlane.xlu0 %3862
        %3864 = vadd.xlane.f32.xlu0 %v3859
        %v3865 = vpop.xlane.xlu0 %3864
        %3866 = vadd.xlane.f32.xlu0 %v3860
        %v3867 = vpop.xlane.xlu0 %3866
        %3868 = vadd.xlane.f32.xlu0 %v3861
        %v3869 = vpop.xlane.xlu0 %3868
        %v3870 = vmul.f32 %v3863, %v1930
        %v3871 = vmul.f32 %v3865, %v1930
        %v3872 = vmul.f32 %v3867, %v1930
        %v3873 = vmul.f32 %v3869, %v1930
        %v3874 = vmul.f32 %v3858, %v3858
        %v3875 = vmul.f32 %v3859, %v3859
        %v3876 = vmul.f32 %v3860, %v3860
        %v3877 = vmul.f32 %v3861, %v3861
        %3878 = vadd.xlane.f32.xlu0 %v3874
        %v3879 = vpop.xlane.xlu0 %3878
        %3880 = vadd.xlane.f32.xlu0 %v3875
        %v3881 = vpop.xlane.xlu0 %3880
        %3882 = vadd.xlane.f32.xlu0 %v3876
        %v3883 = vpop.xlane.xlu0 %3882
        %3884 = vadd.xlane.f32.xlu0 %v3877
        %v3885 = vpop.xlane.xlu0 %3884
        %v3886 = vmul.f32 %v3879, %v1930
        %v3887 = vmul.f32 %v3881, %v1930
        %v3888 = vmul.f32 %v3883, %v1930
        %v3889 = vmul.f32 %v3885, %v1930
        %v3890 = vmul.f32 %v3870, %v3870
        %v3891 = vmul.f32 %v3871, %v3871
        %v3892 = vmul.f32 %v3872, %v3872
        %v3893 = vmul.f32 %v3873, %v3873
        %v3894 = vsub.f32 %v3886, %v3890
        %v3895 = vsub.f32 %v3887, %v3891
        %v3896 = vsub.f32 %v3888, %v3892
        %v3897 = vsub.f32 %v3889, %v3893
        %v3898 = vsub.f32 %v3858, %v3870
        %v3899 = vsub.f32 %v3859, %v3871
        %v3900 = vsub.f32 %v3860, %v3872
        %v3901 = vsub.f32 %v3861, %v3873
        %v3902 = vadd.f32 %v3894, 1e-10
        %v3903 = vadd.f32 %v3895, 1e-10
        %v3904 = vadd.f32 %v3896, 1e-10
        %v3905 = vadd.f32 %v3897, 1e-10
        %v3906 = vrsqrt.pop %v3902
        %v3907 = vrsqrt.pop %v3903
        %v3908 = vrsqrt.pop %v3904
        %v3909 = vrsqrt.pop %v3905
        %v3910 = vmul.f32 %v3898, %v3906
        %v3911 = vmul.f32 %v3899, %v3907
        %v3912 = vmul.f32 %v3900, %v3908
        %v3913 = vmul.f32 %v3901, %v3909
        %v3914 = vlaneseq
        %v3915 = vshrl.u32 %v3914, 7
        %v3916 = vsub.s32 2, %v3915
        %v3917 = vrot.slane %v479, %v3916
        %v3918 = vmul.f32 %v3917, %v3910
        %v3919 = vmul.f32 %v3917, %v3911
        %v3920 = vmul.f32 %v3917, %v3912
        %v3921 = vmul.f32 %v3917, %v3913
        %v3922 = vlaneseq
        %v3923 = vshrl.u32 %v3922, 7
        %v3924 = vsub.s32 3, %v3923
        %v3925 = vrot.slane %v479, %v3924
        %v3926 = vadd.f32 %v3918, %v3925
        %v3927 = vadd.f32 %v3919, %v3925
        %v3928 = vadd.f32 %v3920, %v3925
        %v3929 = vadd.f32 %v3921, %v3925
        %3930 = vst [vmem:[#allocation2] sm:$0xff] %v3926
        %3931 = vst [vmem:[#allocation2 + $0x8] sm:$0xff] %v3927
        %3932 = vst [vmem:[#allocation2 + $0x10] sm:$0xff] %v3928
        %3933 = vst [vmem:[#allocation2 + $0x18] sm:$0xff] %v3929
        %p3934 = scmp.eq.s32.totalorder %s27, 1
        // Predicated region
        $region73: #{tpu_custom_call.1} parent=51 // pred_check
          %p3935 = pneg %p3934
        $region74: #{tpu_custom_call.1} parent=51 // pred_check_branch
          %3937 = sbr.rel (%p3935) target = $region76
        $region75: #{tpu_custom_call.1} parent=51 // pred_region
          %v3938 = vld [vmem:[%s6] sm:$0xff]
          %v3939 = vld [vmem:[%s6 + $0x8] sm:$0xff]
          %v3940 = vld [vmem:[%s6 + $0x10] sm:$0xff]
          %v3941 = vld [vmem:[%s6 + $0x18] sm:$0xff]
          %v3942 = vld [vmem:[%s6 + $0x20] sm:$0xff]
          %v3943 = vld [vmem:[%s6 + $0x28] sm:$0xff]
          %v3944 = vld [vmem:[%s6 + $0x30] sm:$0xff]
          %v3945 = vld [vmem:[%s6 + $0x38] sm:$0xff]
          %v3946 = vld [vmem:[%s6 + $0x40] sm:$0xff]
          %v3947 = vld [vmem:[%s6 + $0x48] sm:$0xff]
          %v3948 = vld [vmem:[%s6 + $0x50] sm:$0xff]
          %v3949 = vld [vmem:[%s6 + $0x58] sm:$0xff]
          %v3950 = vld [vmem:[%s6 + $0x60] sm:$0xff]
          %v3951 = vld [vmem:[%s6 + $0x68] sm:$0xff]
          %v3952 = vld [vmem:[%s6 + $0x70] sm:$0xff]
          %v3953 = vld [vmem:[%s6 + $0x78] sm:$0xff]
          %v3954 = vpack.c.bf16 %v3927, %v3926
          %v3955 = vpack.c.bf16 %v3929, %v3928
          %v3956 = vld [vmem:[%s7] sm:$0x3]
          %v3958 = vlaneseq
          %v3959 = vshrl.u32 %v3958, 7
          %v3960 = vsub.s32 0, %v3959
          %v3961 = vrot.slane %v3956, %v3960
          %v3962 = vlaneseq
          %v3963 = vshrl.u32 %v3962, 7
          %v3964 = vsub.s32 1, %v3963
          %v3965 = vrot.slane %v3956, %v3964
          %v3984 = vunpack.c.l.b16 %v3938
          %v3985 = vunpack.c.h.b16 %v3938
          %v3986 = vunpack.c.l.b16 %v3939
          %v3987 = vunpack.c.h.b16 %v3939
          %v3988 = vunpack.c.l.b16 %v3940
          %v3989 = vunpack.c.h.b16 %v3940
          %v3990 = vunpack.c.l.b16 %v3941
          %v3991 = vunpack.c.h.b16 %v3941
          %v3992 = vunpack.c.l.b16 %v3942
          %v3993 = vunpack.c.h.b16 %v3942
          %v3994 = vunpack.c.l.b16 %v3943
          %v3995 = vunpack.c.h.b16 %v3943
          %v3996 = vunpack.c.l.b16 %v3944
          %v3997 = vunpack.c.h.b16 %v3944
          %v3998 = vunpack.c.l.b16 %v3945
          %v3999 = vunpack.c.h.b16 %v3945
          %v4000 = vunpack.c.l.b16 %v3946
          %v4001 = vunpack.c.h.b16 %v3946
          %v4002 = vunpack.c.l.b16 %v3947
          %v4003 = vunpack.c.h.b16 %v3947
          %v4004 = vunpack.c.l.b16 %v3948
          %v4005 = vunpack.c.h.b16 %v3948
          %v4006 = vunpack.c.l.b16 %v3949
          %v4007 = vunpack.c.h.b16 %v3949
          %v4008 = vunpack.c.l.b16 %v3950
          %v4009 = vunpack.c.h.b16 %v3950
          %v4010 = vunpack.c.l.b16 %v3951
          %v4011 = vunpack.c.h.b16 %v3951
          %v4012 = vunpack.c.l.b16 %v3952
          %v4013 = vunpack.c.h.b16 %v3952
          %v4014 = vunpack.c.l.b16 %v3953
          %v4015 = vunpack.c.h.b16 %v3953
          %v4016 = vpack.c.b16 %v3986, %v3984
          %v4017 = vpack.c.b16 %v3987, %v3985
          %v4018 = vpack.c.b16 %v3990, %v3988
          %v4019 = vpack.c.b16 %v3991, %v3989
          %v4020 = vpack.c.b16 %v3994, %v3992
          %v4021 = vpack.c.b16 %v3995, %v3993
          %v4022 = vpack.c.b16 %v3998, %v3996
          %v4023 = vpack.c.b16 %v3999, %v3997
          %v4024 = vpack.c.b16 %v4002, %v4000
          %v4025 = vpack.c.b16 %v4003, %v4001
          %v4026 = vpack.c.b16 %v4006, %v4004
          %v4027 = vpack.c.b16 %v4007, %v4005
          %v4028 = vpack.c.b16 %v4010, %v4008
          %v4029 = vpack.c.b16 %v4011, %v4009
          %v4030 = vpack.c.b16 %v4014, %v4012
          %v4031 = vpack.c.b16 %v4015, %v4013
          %4048 = vmatprep.subr.bf16.mxu0 %v4017
          %4049 = vmatpush1.bf16.msra.mxu0 %v4016
          %4050 = vmatprep.subr.bf16.mxu0 %v4019
          %4051 = vmatpush1.bf16.msra.mxu0 %v4018
          %4052 = vmatprep.subr.bf16.mxu0 %v4021
          %4053 = vmatpush1.bf16.msra.mxu0 %v4020
          %4054 = vmatprep.subr.bf16.mxu0 %v4023
          %4055 = vmatpush1.bf16.msra.mxu0 %v4022
          %4056 = vmatprep.subr.bf16.mxu0 %v4025
          %4057 = vmatpush1.bf16.msra.mxu0 %v4024
          %4058 = vmatprep.subr.bf16.mxu0 %v4027
          %4059 = vmatpush1.bf16.msra.mxu0 %v4026
          %4060 = vmatprep.subr.bf16.mxu0 %v4029
          %4061 = vmatpush1.bf16.msra.mxu0 %v4028
          %4062 = vmatprep.subr.bf16.mxu0 %v4031
          %4063 = vmatpush1.bf16.msra.mxu0 %v4030
          %4064 = vmatprep.subr.bf16.mxu0 0
          %4065 = vmatpush1.bf16.msra.mxu0 0
          %4066 = vmatprep.subr.bf16.mxu0 0
          %4067 = vmatpush1.bf16.msra.mxu0 0
          %4068 = vmatprep.subr.bf16.mxu0 0
          %4069 = vmatpush1.bf16.msra.mxu0 0
          %4070 = vmatprep.subr.bf16.mxu0 0
          %4071 = vmatpush1.bf16.msra.mxu0 0
          %4072 = vmatprep.subr.bf16.mxu0 0
          %4073 = vmatpush1.bf16.msra.mxu0 0
          %4074 = vmatprep.subr.bf16.mxu0 0
          %4075 = vmatpush1.bf16.msra.mxu0 0
          %4076 = vmatprep.subr.bf16.mxu0 0
          %4077 = vmatpush1.bf16.msra.mxu0 0
          %4078 = vmatprep.subr.bf16.mxu0 0
          %4079 = vmatpush1.bf16.msra.mxu0 0
          %4080 = vmatprep.mubr.bf16.mxu0 0
          %4081 = vmatmul.mubr.bf16.gmra.mrb[0].mxu0 %v3954
          %v4082 = vpop.f32.mrb[0].mxu0
          %v4083 = vadd.f32 %v3961, %v4082
          %v4084 = vpop.f32.mrb[0].mxu0
          %v4085 = vadd.f32 %v3965, %v4084
          %v4086 = vpop.f32.mrb[0].mxu0
          %v4087 = vadd.f32 %v3961, %v4086
          %v4088 = vpop.f32.mrb[0].mxu0
          %v4089 = vadd.f32 %v3965, %v4088
          %4090 = vmatprep.mubr.bf16.mxu0 0
          %4091 = vmatmul.mubr.bf16.gmra.mrb[0].mxu0 %v3955
          %v4092 = vpop.f32.mrb[0].mxu0
          %v4093 = vadd.f32 %v3961, %v4092
          %v4094 = vpop.f32.mrb[0].mxu0
          %v4095 = vadd.f32 %v3965, %v4094
          %v4096 = vpop.f32.mrb[0].mxu0
          %v4097 = vadd.f32 %v3961, %v4096
          %v4098 = vpop.f32.mrb[0].mxu0
          %v4099 = vadd.f32 %v3965, %v4098
          %4100 = vdwg.mxu0
          %4101 = vst [vmem:[#allocation11] sm:$0xff] %v4083
          %4102 = vst [vmem:[#allocation11 + $0x8] sm:$0xff] %v4085
          %4103 = vst [vmem:[#allocation11 + $0x10] sm:$0xff] %v4087
          %4104 = vst [vmem:[#allocation11 + $0x18] sm:$0xff] %v4089
          %4105 = vst [vmem:[#allocation11 + $0x20] sm:$0xff] %v4093
          %4106 = vst [vmem:[#allocation11 + $0x28] sm:$0xff] %v4095
          %4107 = vst [vmem:[#allocation11 + $0x30] sm:$0xff] %v4097
          %4108 = vst [vmem:[#allocation11 + $0x38] sm:$0xff] %v4099
        $region76: #{tpu_custom_call.1} parent=51 // pred_fallthru
          _
        // Predicated region
        $region77: #{tpu_custom_call.1} parent=51 // pred_check
          %p4109 = pneg %p250
        $region78: #{tpu_custom_call.1} parent=51 // pred_check_branch
          %4111 = sbr.rel (%p4109) target = $region80
        $region79: #{tpu_custom_call.1} parent=51 // pred_region
          %s4112 = smul.u32 4, %s26
          %s4114 = ssub.s32 1024, 1024
          %4115 = vsyncadd [#allocation6], %s4114
          %s4116 = smul.addr %s4112, 2
          %s4117 = smul.addr %s4116, 128
          %s4118 = scalar_lea.hbm %s8, %s4117
          %s4119 = sshll.u32 [#allocation11], 4
          %s4120 = int_to_ptr.vmem [resolvable:$true] %s4119
          %4125 = dma.vmem_to_hbm [thread:$0]  %s4120, 1024, %s4118, [#allocation6], 256, 256, 16
        $region80: #{tpu_custom_call.1} parent=51 // pred_fallthru
          _
        // Predicated region
        $region81: #{tpu_custom_call.1} parent=51 // pred_check
          %p4126 = pneg %p250
        $region82: #{tpu_custom_call.1} parent=51 // pred_check_branch
          %4128 = sbr.rel (%p4126) target = $region84
        $region83: #{tpu_custom_call.1} parent=51 // pred_region
          %4129 = dma.done [#allocation6], 1024
        $region84: #{tpu_custom_call.1} parent=51 // pred_fallthru
          _
      $region52: #{tpu_custom_call.1} parent=5 // pred_fallthru
        _
      %p4130 = scmp.le.s32.totalorder 2, %s17
      // Predicated region
      $region85: #{tpu_custom_call.1} parent=5 // pred_check
        %p4131 = pneg %p4130
      $region86: #{tpu_custom_call.1} parent=5 // pred_check_branch
        %4133 = sbr.rel (%p4131) target = $region88
      $region87: #{tpu_custom_call.1} parent=5 // pred_region
        %s4134 = ssub.s32 %s17, 2
      $region88: #{tpu_custom_call.1} parent=5 // pred_fallthru
        _
    $region6: #{tpu_custom_call.1} parent=1 // loop_footer
      %s21 = sadd.s32 1, %s17
    $region7: #{tpu_custom_call.1} parent=1 // loop_footer_branch
      %16 = sbr.rel target = $region3
    $region8: #{tpu_custom_call.1} parent=1 // loop_exit
      _
    %4135 = vsyncpa [#allocation5], 1
    %s4136 = scalar_lea.sflag [#allocation5], 1
    %4137 = vsyncpa %s4136, 1
    %4138 = vsyncpa [#allocation8], 1
    %4139 = vsyncpa [#allocation6], 1
    %s4140 = scalar_lea.sflag [#allocation6], 1
    %4141 = vsyncpa %s4140, 1

</llo_original>
